<compile_context>
chip_gen: v7x
topology: tpu7x:2x2x1
jax: 0.10.0
libtpu: 0.0.40
codegen_flags: <defaults>
</compile_context>

<pallas_src>
import jax
import jax.numpy as jnp
from jax import lax
from jax.experimental import pallas as pl
from jax.experimental.pallas import tpu as pltpu


_TILE_P = 8  # spatial rows per vreg-resident tile inside the kernel


def _num_grid_blocks(n):
    """2 parallel grid steps on v7x (2 TensorCores/chip); 1 step elsewhere
    (extra steps on single-TC v5e/v6e are pure ~0.35us sequential overhead)."""
    kind = ""
    try:
        kind = jax.devices()[0].device_kind.lower()
    except Exception:
        pass
    n_tc = 2 if ("v7" in kind or "7x" in kind) else 1
    return max(1, min(n, n_tc))


# ----------------------------------------------------------------------------
# Fused per-block kernel: backbone -> stats -> spatial attn -> SE -> pools.
# Grid = (num_blocks,), NB samples per step; weights stay resident in VMEM
# (their block index never changes across the grid).
# ----------------------------------------------------------------------------
def _fused_kernel(sa_ref, x_ref, wbb_ref, bbb_ref, w1_ref, b1_ref, w2_ref,
                  b2_ref, cat_ref):
    NB, P, C_in = x_ref.shape
    C = wbb_ref.shape[1]
    inv_p = 1.0 / P

    # Spatial-attention scalars live in SMEM; they splat into VPU ops for free.
    sa_w0 = sa_ref[0]
    sa_w1 = sa_ref[1]
    sa_b = sa_ref[2]

    wbb = wbb_ref[...]          # (C_in, C) -- tiny, loaded once
    bbb = bbb_ref[...]          # (1, C)

    def tile_body(t, carry):
        cacc, zacc = carry
        r0 = pl.multiple_of(t * _TILE_P, _TILE_P)
        xt = x_ref[:, pl.ds(r0, _TILE_P), :]                   # (NB, TP, C_in)

        # Backbone 1x1 conv + ReLU as VPU broadcast-FMAs (K=3 stays off MXU).
        # TODO(synk): Backbone_44 definition unavailable; stand-in is a 1x1
        # conv (C_in -> 2048) + ReLU so the 2048-channel contract holds.
        feat = bbb + xt[:, :, 0:1] * wbb[0:1, :]
        for k in range(1, C_in):                                # static unroll
            feat = feat + xt[:, :, k:k + 1] * wbb[k:k + 1, :]
        feat = jnp.maximum(feat, 0.0)                           # (NB, TP, C)

        # Spatial attention mask for these rows (CBAM-style 1x1 over
        # [channel-mean, channel-max] + sigmoid).
        # TODO(synk): Spatial_Attention conv config unknown; 1x1 stand-in.
        smean = jnp.mean(feat, axis=2, keepdims=True)           # (NB, TP, 1)
        smax = jnp.max(feat, axis=2, keepdims=True)             # (NB, TP, 1)
        m = jax.nn.sigmoid(sa_w0 * smean + sa_w1 * smax + sa_b)

        # Running pools; feat never leaves vregs / hits VMEM.
        cacc = cacc + jnp.sum(feat, axis=1)                     # (NB, C)
        zacc = zacc + jnp.sum(feat * m, axis=1)                 # (NB, C)
        return cacc, zacc

    zeros = jnp.zeros((NB, C), jnp.float32)
    cacc, zacc = lax.fori_loop(0, P // _TILE_P, tile_body, (zeros, zeros))

    cpool = cacc * inv_p        # avgpool_P(feat)               (NB, C)
    zpool = zacc * inv_p        # avgpool_P(feat * m)           (NB, C)

    # Channel attention (SE), batched over NB on the MXU (bf16 operands,
    # f32 accumulate).  avgpool_P(feat * s) == s * avgpool_P(feat), so the
    # channel branch never re-reads feat.
    h = jnp.maximum(
        jnp.dot(cpool.astype(jnp.bfloat16), w1_ref[...],
                preferred_element_type=jnp.float32) + b1_ref[...], 0.0)
    s = jax.nn.sigmoid(
        jnp.dot(h.astype(jnp.bfloat16), w2_ref[...],
                preferred_element_type=jnp.float32) + b2_ref[...])

    # Single lane-dense concatenated output [ypool | zpool] == torch.cat((y, z)).
    cat_ref[0, :, 0:C] = (s * cpool).astype(cat_ref.dtype)
    cat_ref[0, :, C:2 * C] = zpool.astype(cat_ref.dtype)


def fused_attention_pools(x, params):
    """x: (N, P, C_in) channels-last.  Returns (N, 2C) == [ypool | zpool]."""
    N, P, C_in = x.shape
    C = params["backbone_w"].shape[1]
    Cmid = params["se_w1"].shape[1]
    dtype = x.dtype
    assert P % _TILE_P == 0, "spatial size must be a multiple of 8"

    num_blocks = _num_grid_blocks(N)
    NB = -(-N // num_blocks)                 # ceil(N / num_blocks)
    n_pad = num_blocks * NB
    if n_pad != N:
        x = jnp.concatenate(
            [x, jnp.zeros((n_pad - N, P, C_in), dtype)], axis=0)

    sa = jnp.stack([params["sa_w"][0], params["sa_w"][1],
                    params["sa_b"]]).astype(jnp.float32)        # (3,) -> SMEM
    bbb = params["backbone_b"].reshape(1, C)
    w1 = params["se_w1"].astype(jnp.bfloat16)
    b1 = params["se_b1"].reshape(1, Cmid)
    w2 = params["se_w2"].astype(jnp.bfloat16)
    b2 = params["se_b2"].reshape(1, C)

    fixed = lambda b: (0, 0)                 # weight blocks resident across grid

    cat = pl.pallas_call(
        _fused_kernel,
        out_shape=jax.ShapeDtypeStruct((num_blocks, NB, 2 * C), dtype),
        grid=(num_blocks,),
        in_specs=[
            pl.BlockSpec(memory_space=pltpu.MemorySpace.SMEM),   # sa scalars
            pl.BlockSpec((NB, P, C_in), lambda b: (b, 0, 0)),    # x block
            pl.BlockSpec((C_in, C), fixed),                      # backbone w
            pl.BlockSpec((1, C), fixed),                         # backbone b
            pl.BlockSpec((C, Cmid), fixed),                      # SE fc1 w (bf16)
            pl.BlockSpec((1, Cmid), fixed),                      # SE fc1 b
            pl.BlockSpec((Cmid, C), fixed),                      # SE fc2 w (bf16)
            pl.BlockSpec((1, C), fixed),                         # SE fc2 b
        ],
        out_specs=pl.BlockSpec((1, NB, 2 * C), lambda b: (b, 0, 0)),
        compiler_params=pltpu.CompilerParams(
            dimension_semantics=("parallel",)),                  # v7x: 2 TCs
    )(sa, x, params["backbone_w"], bbb, w1, b1, w2, b2)

    return cat.reshape(n_pad, 2 * C)[:N]


# ----------------------------------------------------------------------------
# Parameters (deterministic synthetic init -- module shapes imply C_feat=2048,
# FC input 4096).
# ----------------------------------------------------------------------------
def init_params(key, c_in=3, c_feat=2048, reduction=16, num_classes=2):
    ks = jax.random.split(key, 5)
    c_mid = c_feat // reduction  # 128
    p = {}
    p["backbone_w"] = jax.random.normal(ks[0], (c_in, c_feat), jnp.float32) * 0.05
    p["backbone_b"] = jnp.zeros((c_feat,), jnp.float32)
    # Channel_Attention(channels=2048): SE-style squeeze-excite.
    p["se_w1"] = jax.random.normal(ks[1], (c_feat, c_mid), jnp.float32) * 0.02
    p["se_b1"] = jnp.zeros((c_mid,), jnp.float32)
    p["se_w2"] = jax.random.normal(ks[2], (c_mid, c_feat), jnp.float32) * 0.02
    p["se_b2"] = jnp.zeros((c_feat,), jnp.float32)
    # Spatial attention: 1x1 conv over [channel-mean, channel-max] + sigmoid.
    p["sa_w"] = jax.random.normal(ks[3], (2,), jnp.float32) * 0.5
    p["sa_b"] = jnp.zeros((), jnp.float32)
    # TODO(synk): FC(4096) definition unknown; using Linear(4096 -> 2).
    p["fc_w"] = jax.random.normal(ks[4], (2 * c_feat, num_classes), jnp.float32) * 0.01
    p["fc_b"] = jnp.zeros((num_classes,), jnp.float32)
    return p


# ----------------------------------------------------------------------------
# Forward pass (mirrors Face_Fake_Net.forward).
# ----------------------------------------------------------------------------
def face_fake_net_forward(params, x_nchw):
    N, C_in, H, W = x_nchw.shape
    # NCHW -> (N, H*W, C_in); tiny tensor, layout plumbing only.
    x = jnp.transpose(x_nchw, (0, 2, 3, 1)).reshape(N, H * W, C_in)
    # backbone -> channel/spatial attn -> adaptive avg pools -> concat, fused.
    cat = fused_attention_pools(x, params)              # (N, 2C) = [y | z]
    # Final FC: output width num_classes=2 (lane-sparse) -> plain XLA.
    return cat @ params["fc_w"] + params["fc_b"]


# Plain-JAX reference of the same (stand-in) forward, f32 throughout.
def _reference_forward(params, x_nchw):
    N, C_in, H, W = x_nchw.shape
    x = jnp.transpose(x_nchw, (0, 2, 3, 1)).reshape(N, H * W, C_in)
    feat = jax.nn.relu(
        jnp.einsum("npk,kc->npc", x, params["backbone_w"]) + params["backbone_b"])
    cpool = jnp.mean(feat, axis=1)
    h = jax.nn.relu(cpool @ params["se_w1"] + params["se_b1"])
    s = jax.nn.sigmoid(h @ params["se_w2"] + params["se_b2"])
    y = jnp.mean(feat * s[:, None, :], axis=1)
    smean = jnp.mean(feat, axis=2, keepdims=True)
    smax = jnp.max(feat, axis=2, keepdims=True)
    m = jax.nn.sigmoid(params["sa_w"][0] * smean + params["sa_w"][1] * smax
                       + params["sa_b"])
    z = jnp.mean(feat * m, axis=1)
    cat = jnp.concatenate([y, z], axis=1)
    return cat @ params["fc_w"] + params["fc_b"]


if __name__ == "__main__":
    key = jax.random.PRNGKey(0)
    pkey, xkey = jax.random.split(key)

    params = init_params(pkey, c_in=3, c_feat=2048, reduction=16, num_classes=2)
    x = jax.random.normal(xkey, (2, 3, 16, 16), jnp.float32)   # NCHW, small

    fwd = jax.jit(face_fake_net_forward)
    out = jax.block_until_ready(fwd(params, x))

    assert out.shape == (2, 2), out.shape
    assert bool(jnp.all(jnp.isfinite(out)))

    # Correctness vs. plain-JAX reference (loose tolerance: SE runs bf16 on MXU).
    ref = _reference_forward(params, x)
    assert jnp.allclose(out, ref, rtol=5e-2, atol=1e-2), (out, ref)

    print("KERNEL_OK")
</pallas_src>

<mosaic_0001>
module attributes {stable_mosaic.version = 11 : i64} {
  func.func @_fused_kernel(%arg0: i32, %arg1: memref<3xf32, #tpu.memory_space<smem>>, %arg2: memref<2x256x3xf32, #tpu.memory_space<vmem>>, %arg3: memref<3x2048xf32, #tpu.memory_space<vmem>>, %arg4: memref<1x2048xf32, #tpu.memory_space<vmem>>, %arg5: memref<2048x128xbf16, #tpu.memory_space<vmem>>, %arg6: memref<1x128xf32, #tpu.memory_space<vmem>>, %arg7: memref<128x2048xbf16, #tpu.memory_space<vmem>>, %arg8: memref<1x2048xf32, #tpu.memory_space<vmem>>, %arg9: memref<1x2x4096xf32, #tpu.memory_space<vmem>>) attributes {dimension_semantics = [#tpu.dimension_semantics<parallel>], iteration_bounds = array<i64: 1>, scalar_prefetch = 0 : i64, scratch_operands = 0 : i64, tpu.core_type = #tpu.core_type<tc>, window_params = [{transform_indices = @transform_0, window_bounds = array<i64: 3>}, {transform_indices = @transform_1, window_bounds = array<i64: 2, 256, 3>}, {pipeline_mode = #tpu.pipeline_mode<synchronous>, transform_indices = @transform_2, window_bounds = array<i64: 3, 2048>}, {pipeline_mode = #tpu.pipeline_mode<synchronous>, transform_indices = @transform_3, window_bounds = array<i64: 1, 2048>}, {pipeline_mode = #tpu.pipeline_mode<synchronous>, transform_indices = @transform_4, window_bounds = array<i64: 2048, 128>}, {pipeline_mode = #tpu.pipeline_mode<synchronous>, transform_indices = @transform_5, window_bounds = array<i64: 1, 128>}, {pipeline_mode = #tpu.pipeline_mode<synchronous>, transform_indices = @transform_6, window_bounds = array<i64: 128, 2048>}, {pipeline_mode = #tpu.pipeline_mode<synchronous>, transform_indices = @transform_7, window_bounds = array<i64: 1, 2048>}, {transform_indices = @transform_8, window_bounds = array<i64: 1, 2, 4096>}]} {
    %c0 = arith.constant 0 : index
    %0 = memref.load %arg1[%c0] : memref<3xf32, #tpu.memory_space<smem>>
    %c1 = arith.constant 1 : index
    %1 = memref.load %arg1[%c1] : memref<3xf32, #tpu.memory_space<smem>>
    %c2 = arith.constant 2 : index
    %2 = memref.load %arg1[%c2] : memref<3xf32, #tpu.memory_space<smem>>
    %c0_0 = arith.constant 0 : index
    %c0_1 = arith.constant 0 : index
    %3 = vector.load %arg3[%c0_0, %c0_1] : memref<3x2048xf32, #tpu.memory_space<vmem>>, vector<3x2048xf32>
    %c0_2 = arith.constant 0 : index
    %c0_3 = arith.constant 0 : index
    %4 = vector.load %arg4[%c0_2, %c0_3] : memref<1x2048xf32, #tpu.memory_space<vmem>>, vector<1x2048xf32>
    %cst = arith.constant 0.000000e+00 : f32
    %5 = vector.broadcast %cst : f32 to vector<2x2048xf32>
    %c0_i32 = arith.constant 0 : i32
    %c32_i32 = arith.constant 32 : i32
    %6 = arith.addi %c0_i32, %c32_i32 : i32
    %c1_i32 = arith.constant 1 : i32
    %7:2 = scf.for %arg10 = %c0_i32 to %6 step %c1_i32 iter_args(%arg11 = %5, %arg12 = %5) -> (vector<2x2048xf32>, vector<2x2048xf32>)  : i32 {
      %c8_i32 = arith.constant 8 : i32
      %38 = arith.muli %arg10, %c8_i32 : i32
      %39 = tpu.assume_multiple %38, 8 : i32
      %c0_24 = arith.constant 0 : index
      %40 = arith.index_cast %39 : i32 to index
      %c0_25 = arith.constant 0 : index
      %41 = vector.load %arg2[%c0_24, %40, %c0_25] : memref<2x256x3xf32, #tpu.memory_space<vmem>>, vector<2x8x3xf32>
      %42 = vector.extract_strided_slice %41 {offsets = [0, 0, 0], sizes = [2, 8, 1], strides = [1, 1, 1]} : vector<2x8x3xf32> to vector<2x8x1xf32>
      %43 = vector.extract_strided_slice %3 {offsets = [0, 0], sizes = [1, 2048], strides = [1, 1]} : vector<3x2048xf32> to vector<1x2048xf32>
      %44 = vector.shape_cast %43 : vector<1x2048xf32> to vector<1x1x2048xf32>
      %45 = vector.broadcast %42 : vector<2x8x1xf32> to vector<2x8x2048xf32>
      %46 = vector.broadcast %44 : vector<1x1x2048xf32> to vector<2x8x2048xf32>
      %47 = arith.mulf %45, %46 : vector<2x8x2048xf32>
      %48 = vector.shape_cast %4 : vector<1x2048xf32> to vector<1x1x2048xf32>
      %49 = vector.broadcast %48 : vector<1x1x2048xf32> to vector<2x8x2048xf32>
      %50 = arith.addf %49, %47 : vector<2x8x2048xf32>
      %51 = vector.extract_strided_slice %41 {offsets = [0, 0, 1], sizes = [2, 8, 1], strides = [1, 1, 1]} : vector<2x8x3xf32> to vector<2x8x1xf32>
      %52 = vector.extract_strided_slice %3 {offsets = [1, 0], sizes = [1, 2048], strides = [1, 1]} : vector<3x2048xf32> to vector<1x2048xf32>
      %53 = vector.shape_cast %52 : vector<1x2048xf32> to vector<1x1x2048xf32>
      %54 = vector.broadcast %51 : vector<2x8x1xf32> to vector<2x8x2048xf32>
      %55 = vector.broadcast %53 : vector<1x1x2048xf32> to vector<2x8x2048xf32>
      %56 = arith.mulf %54, %55 : vector<2x8x2048xf32>
      %57 = arith.addf %50, %56 : vector<2x8x2048xf32>
      %58 = vector.extract_strided_slice %41 {offsets = [0, 0, 2], sizes = [2, 8, 1], strides = [1, 1, 1]} : vector<2x8x3xf32> to vector<2x8x1xf32>
      %59 = vector.extract_strided_slice %3 {offsets = [2, 0], sizes = [1, 2048], strides = [1, 1]} : vector<3x2048xf32> to vector<1x2048xf32>
      %60 = vector.shape_cast %59 : vector<1x2048xf32> to vector<1x1x2048xf32>
      %61 = vector.broadcast %58 : vector<2x8x1xf32> to vector<2x8x2048xf32>
      %62 = vector.broadcast %60 : vector<1x1x2048xf32> to vector<2x8x2048xf32>
      %63 = arith.mulf %61, %62 : vector<2x8x2048xf32>
      %64 = arith.addf %57, %63 : vector<2x8x2048xf32>
      %cst_26 = arith.constant 0.000000e+00 : f32
      %65 = vector.broadcast %cst_26 : f32 to vector<2x8x2048xf32>
      %66 = arith.maximumf %64, %65 : vector<2x8x2048xf32>
      %cst_27 = arith.constant dense<0.000000e+00> : vector<2x8xf32>
      %67 = vector.multi_reduction <add>, %66, %cst_27 [2] : vector<2x8x2048xf32> to vector<2x8xf32>
      %68 = vector.shape_cast %67 : vector<2x8xf32> to vector<2x8x1xf32>
      %cst_28 = arith.constant 2.048000e+03 : f32
      %69 = vector.broadcast %cst_28 : f32 to vector<2x8x1xf32>
      %70 = arith.divf %68, %69 : vector<2x8x1xf32>
      %cst_29 = arith.constant dense<0xFF800000> : vector<2x8xf32>
      %71 = vector.multi_reduction <maximumf>, %66, %cst_29 [2] : vector<2x8x2048xf32> to vector<2x8xf32>
      %72 = vector.shape_cast %71 : vector<2x8xf32> to vector<2x8x1xf32>
      %73 = vector.broadcast %0 : f32 to vector<2x8x1xf32>
      %74 = arith.mulf %73, %70 : vector<2x8x1xf32>
      %75 = vector.broadcast %1 : f32 to vector<2x8x1xf32>
      %76 = arith.mulf %75, %72 : vector<2x8x1xf32>
      %77 = arith.addf %74, %76 : vector<2x8x1xf32>
      %78 = vector.broadcast %2 : f32 to vector<2x8x1xf32>
      %79 = arith.addf %77, %78 : vector<2x8x1xf32>
      %80 = arith.negf %79 : vector<2x8x1xf32>
      %81 = math.exp %80 : vector<2x8x1xf32>
      %cst_30 = arith.constant 1.000000e+00 : f32
      %82 = vector.broadcast %cst_30 : f32 to vector<2x8x1xf32>
      %83 = arith.addf %82, %81 : vector<2x8x1xf32>
      %84 = arith.divf %82, %83 : vector<2x8x1xf32>
      %cst_31 = arith.constant dense<0.000000e+00> : vector<2x2048xf32>
      %85 = vector.multi_reduction <add>, %66, %cst_31 [1] : vector<2x8x2048xf32> to vector<2x2048xf32>
      %86 = arith.addf %arg11, %85 : vector<2x2048xf32>
      %87 = vector.broadcast %84 : vector<2x8x1xf32> to vector<2x8x2048xf32>
      %88 = arith.mulf %66, %87 : vector<2x8x2048xf32>
      %cst_32 = arith.constant dense<0.000000e+00> : vector<2x2048xf32>
      %89 = vector.multi_reduction <add>, %88, %cst_32 [1] : vector<2x8x2048xf32> to vector<2x2048xf32>
      %90 = arith.addf %arg12, %89 : vector<2x2048xf32>
      scf.yield %86, %90 : vector<2x2048xf32>, vector<2x2048xf32>
    }
    %c32_i32_4 = arith.constant 32 : i32
    %cst_5 = arith.constant 3.906250e-03 : f32
    %8 = vector.broadcast %cst_5 : f32 to vector<2x2048xf32>
    %9 = arith.mulf %7#0, %8 : vector<2x2048xf32>
    %cst_6 = arith.constant 3.906250e-03 : f32
    %10 = vector.broadcast %cst_6 : f32 to vector<2x2048xf32>
    %11 = arith.mulf %7#1, %10 : vector<2x2048xf32>
    %12 = arith.truncf %9 : vector<2x2048xf32> to vector<2x2048xbf16>
    %c0_7 = arith.constant 0 : index
    %c0_8 = arith.constant 0 : index
    %13 = vector.load %arg5[%c0_7, %c0_8] : memref<2048x128xbf16, #tpu.memory_space<vmem>>, vector<2048x128xbf16>
    %cst_9 = arith.constant dense<0.000000e+00> : vector<2x128xf32>
    %14 = tpu.matmul %12, %13, %cst_9 {dimension_numbers = #tpu.dot_dimension_numbers<[1], [0], [0], [1], [0, 0, 1, 1], [], []>} : vector<2x2048xbf16>, vector<2048x128xbf16>, vector<2x128xf32> -> vector<2x128xf32>
    %c0_10 = arith.constant 0 : index
    %c0_11 = arith.constant 0 : index
    %15 = vector.load %arg6[%c0_10, %c0_11] : memref<1x128xf32, #tpu.memory_space<vmem>>, vector<1x128xf32>
    %16 = vector.broadcast %15 : vector<1x128xf32> to vector<2x128xf32>
    %17 = arith.addf %14, %16 : vector<2x128xf32>
    %cst_12 = arith.constant 0.000000e+00 : f32
    %18 = vector.broadcast %cst_12 : f32 to vector<2x128xf32>
    %19 = arith.maximumf %17, %18 : vector<2x128xf32>
    %20 = arith.truncf %19 : vector<2x128xf32> to vector<2x128xbf16>
    %c0_13 = arith.constant 0 : index
    %c0_14 = arith.constant 0 : index
    %21 = vector.load %arg7[%c0_13, %c0_14] : memref<128x2048xbf16, #tpu.memory_space<vmem>>, vector<128x2048xbf16>
    %cst_15 = arith.constant dense<0.000000e+00> : vector<2x2048xf32>
    %22 = tpu.matmul %20, %21, %cst_15 {dimension_numbers = #tpu.dot_dimension_numbers<[1], [0], [0], [1], [0, 0, 1, 1], [], []>} : vector<2x128xbf16>, vector<128x2048xbf16>, vector<2x2048xf32> -> vector<2x2048xf32>
    %c0_16 = arith.constant 0 : index
    %c0_17 = arith.constant 0 : index
    %23 = vector.load %arg8[%c0_16, %c0_17] : memref<1x2048xf32, #tpu.memory_space<vmem>>, vector<1x2048xf32>
    %24 = vector.broadcast %23 : vector<1x2048xf32> to vector<2x2048xf32>
    %25 = arith.addf %22, %24 : vector<2x2048xf32>
    %26 = arith.negf %25 : vector<2x2048xf32>
    %27 = math.exp %26 : vector<2x2048xf32>
    %cst_18 = arith.constant 1.000000e+00 : f32
    %28 = vector.broadcast %cst_18 : f32 to vector<2x2048xf32>
    %29 = arith.addf %28, %27 : vector<2x2048xf32>
    %30 = arith.divf %28, %29 : vector<2x2048xf32>
    %31 = arith.mulf %30, %9 : vector<2x2048xf32>
    %c0_19 = arith.constant 0 : index
    %c0_20 = arith.constant 0 : index
    %c0_21 = arith.constant 0 : index
    %32 = vector.load %arg9[%c0_19, %c0_20, %c0_21] : memref<1x2x4096xf32, #tpu.memory_space<vmem>>, vector<1x2x2048xf32>
    %33 = vector.shape_cast %32 : vector<1x2x2048xf32> to vector<2x2048xf32>
    %34 = vector.shape_cast %31 : vector<2x2048xf32> to vector<1x2x2048xf32>
    tpu.vector_store %arg9[%c0_19, %c0_20, %c0_21], %34 {strides = array<i32>} : memref<1x2x4096xf32, #tpu.memory_space<vmem>>, vector<1x2x2048xf32>,
    %c0_22 = arith.constant 0 : index
    %c0_23 = arith.constant 0 : index
    %c2048 = arith.constant 2048 : index
    %35 = vector.load %arg9[%c0_22, %c0_23, %c2048] : memref<1x2x4096xf32, #tpu.memory_space<vmem>>, vector<1x2x2048xf32>
    %36 = vector.shape_cast %35 : vector<1x2x2048xf32> to vector<2x2048xf32>
    %37 = vector.shape_cast %11 : vector<2x2048xf32> to vector<1x2x2048xf32>
    tpu.vector_store %arg9[%c0_22, %c0_23, %c2048], %37 {strides = array<i32>} : memref<1x2x4096xf32, #tpu.memory_space<vmem>>, vector<1x2x2048xf32>,
    return
  }
  func.func @transform_0(%arg0: i32) -> i32 {
    %c0_i32 = arith.constant 0 : i32
    %c0_i32_0 = arith.constant 0 : i32
    return %c0_i32 : i32
  }
  func.func @transform_1(%arg0: i32) -> (i32, i32, i32) {
    %c0_i32 = arith.constant 0 : i32
    %c0_i32_0 = arith.constant 0 : i32
    %c0_i32_1 = arith.constant 0 : i32
    return %arg0, %c0_i32, %c0_i32_0 : i32, i32, i32
  }
  func.func @transform_2(%arg0: i32) -> (i32, i32) {
    %c0_i32 = arith.constant 0 : i32
    %c0_i32_0 = arith.constant 0 : i32
    %c0_i32_1 = arith.constant 0 : i32
    return %c0_i32, %c0_i32_0 : i32, i32
  }
  func.func @transform_3(%arg0: i32) -> (i32, i32) {
    %c0_i32 = arith.constant 0 : i32
    %c0_i32_0 = arith.constant 0 : i32
    %c0_i32_1 = arith.constant 0 : i32
    return %c0_i32, %c0_i32_0 : i32, i32
  }
  func.func @transform_4(%arg0: i32) -> (i32, i32) {
    %c0_i32 = arith.constant 0 : i32
    %c0_i32_0 = arith.constant 0 : i32
    %c0_i32_1 = arith.constant 0 : i32
    return %c0_i32, %c0_i32_0 : i32, i32
  }
  func.func @transform_5(%arg0: i32) -> (i32, i32) {
    %c0_i32 = arith.constant 0 : i32
    %c0_i32_0 = arith.constant 0 : i32
    %c0_i32_1 = arith.constant 0 : i32
    return %c0_i32, %c0_i32_0 : i32, i32
  }
  func.func @transform_6(%arg0: i32) -> (i32, i32) {
    %c0_i32 = arith.constant 0 : i32
    %c0_i32_0 = arith.constant 0 : i32
    %c0_i32_1 = arith.constant 0 : i32
    return %c0_i32, %c0_i32_0 : i32, i32
  }
  func.func @transform_7(%arg0: i32) -> (i32, i32) {
    %c0_i32 = arith.constant 0 : i32
    %c0_i32_0 = arith.constant 0 : i32
    %c0_i32_1 = arith.constant 0 : i32
    return %c0_i32, %c0_i32_0 : i32, i32
  }
  func.func @transform_8(%arg0: i32) -> (i32, i32, i32) {
    %c0_i32 = arith.constant 0 : i32
    %c0_i32_0 = arith.constant 0 : i32
    %c0_i32_1 = arith.constant 0 : i32
    return %arg0, %c0_i32, %c0_i32_0 : i32, i32, i32
  }
}

</mosaic_0001>

<llo_original>
// kernel: face_fake_net_forward.1
$region0: #{face_fake_net_forward.1}
  #allocation0 [shape = 'u32[]', space=smem, size = 0x4, offset = 0x4, fixed_abs, tag = 'smem constant byte address 0x4 - core index']
  #allocation1 [shape = 'u32[144,128]{1,0:T(1,128)}', space=vmem, size = 0x12000, scoped, tag = 'internal scratch']
  %s0 = inlined_call_operand.vmem [shape: f32[3], index: 0, kind: input, shape index: {}]
  %s1 = inlined_call_operand.vmem [shape: f32[2,256,3], index: 1, kind: input, shape index: {}]
  %s2 = inlined_call_operand.vmem [shape: f32[3,2048], index: 2, kind: input, shape index: {}]
  %s3 = inlined_call_operand.vmem [shape: f32[1,2048], index: 3, kind: input, shape index: {}]
  %s4 = inlined_call_operand.vmem [shape: bf16[2048,128], index: 4, kind: input, shape index: {}]
  %s5 = inlined_call_operand.vmem [shape: f32[1,128], index: 5, kind: input, shape index: {}]
  %s6 = inlined_call_operand.vmem [shape: bf16[128,2048], index: 6, kind: input, shape index: {}]
  %s7 = inlined_call_operand.vmem [shape: f32[1,2048], index: 7, kind: input, shape index: {}]
  %s8 = inlined_call_operand.vmem [shape: f32[1,2,4096], index: 8, kind: output, shape index: {}]
  %s9 = sld [smem:[#allocation0]]
  $region53: #{face_fake_net_forward.1} parent=0
    _
  %s11 = ssub.s32 1, %s9
  %s12 = scalar_select 0, %s11, %s9
  $region1: #{face_fake_net_forward.1} parent=0
    #allocation2 [shape = 'u8[512]{0}', space=smem, size = 0x200, scoped, tag = 'input window, operand 0, single buffered']
    #allocation3 [shape = 's32[1]{0}', space=sflag, size = 0x4, scoped, tag = 'scoped memory for face_fake_net_forward.1']
    %13 = vsyncpa [#allocation3], 0
    // Predicated region
    $region2: #{face_fake_net_forward.1} parent=1 // pred_check
      _
    $region3: #{face_fake_net_forward.1} parent=1 // pred_check_branch
      %15 = sbr.rel (0) target = $region5
    $region4: #{face_fake_net_forward.1} parent=1 // pred_region
      %s17 = ssub.s32 16, 16
      %18 = vsyncadd [#allocation3], %s17
      %s20 = sshll.u32 %s0, 4
      %s21 = int_to_ptr.vmem [resolvable:$true] %s20
      %23 = dma.vmem_to_smem %s21, 16, [#allocation2], [#allocation3]
    $region5: #{face_fake_net_forward.1} parent=1 // pred_fallthru
      _
    // Predicated region
    $region6: #{face_fake_net_forward.1} parent=1 // pred_check
      _
    $region7: #{face_fake_net_forward.1} parent=1 // pred_check_branch
      %25 = sbr.rel (0) target = $region9
    $region8: #{face_fake_net_forward.1} parent=1 // pred_region
      _
    $region9: #{face_fake_net_forward.1} parent=1 // pred_fallthru
      _
    // Predicated region
    $region10: #{face_fake_net_forward.1} parent=1 // pred_check
      _
    $region11: #{face_fake_net_forward.1} parent=1 // pred_check_branch
      %27 = sbr.rel (0) target = $region13
    $region12: #{face_fake_net_forward.1} parent=1 // pred_region
      _
    $region13: #{face_fake_net_forward.1} parent=1 // pred_fallthru
      _
    // Predicated region
    $region14: #{face_fake_net_forward.1} parent=1 // pred_check
      _
    $region15: #{face_fake_net_forward.1} parent=1 // pred_check_branch
      %29 = sbr.rel (0) target = $region17
    $region16: #{face_fake_net_forward.1} parent=1 // pred_region
      _
    $region17: #{face_fake_net_forward.1} parent=1 // pred_fallthru
      _
    // Predicated region
    $region18: #{face_fake_net_forward.1} parent=1 // pred_check
      _
    $region19: #{face_fake_net_forward.1} parent=1 // pred_check_branch
      %31 = sbr.rel (0) target = $region21
    $region20: #{face_fake_net_forward.1} parent=1 // pred_region
      _
    $region21: #{face_fake_net_forward.1} parent=1 // pred_fallthru
      _
    // Predicated region
    $region22: #{face_fake_net_forward.1} parent=1 // pred_check
      _
    $region23: #{face_fake_net_forward.1} parent=1 // pred_check_branch
      %33 = sbr.rel (0) target = $region25
    $region24: #{face_fake_net_forward.1} parent=1 // pred_region
      _
    $region25: #{face_fake_net_forward.1} parent=1 // pred_fallthru
      _
    // Predicated region
    $region26: #{face_fake_net_forward.1} parent=1 // pred_check
      _
    $region27: #{face_fake_net_forward.1} parent=1 // pred_check_branch
      %35 = sbr.rel (0) target = $region29
    $region28: #{face_fake_net_forward.1} parent=1 // pred_region
      _
    $region29: #{face_fake_net_forward.1} parent=1 // pred_fallthru
      _
    // Predicated region
    $region30: #{face_fake_net_forward.1} parent=1 // pred_check
      _
    $region31: #{face_fake_net_forward.1} parent=1 // pred_check_branch
      %37 = sbr.rel (0) target = $region33
    $region32: #{face_fake_net_forward.1} parent=1 // pred_region
      _
    $region33: #{face_fake_net_forward.1} parent=1 // pred_fallthru
      _
    // Predicated region
    $region34: #{face_fake_net_forward.1} parent=1 // pred_check
      _
    $region35: #{face_fake_net_forward.1} parent=1 // pred_check_branch
      %39 = sbr.rel (0) target = $region37
    $region36: #{face_fake_net_forward.1} parent=1 // pred_region
      %40 = dma.done [#allocation3], 16
    $region37: #{face_fake_net_forward.1} parent=1 // pred_fallthru
      _
    %41 = sfence
    %s43 = sld [smem:[#allocation2]]
    %s44 = sld [smem:[#allocation2 + $0x1]]
    %s45 = sld [smem:[#allocation2 + $0x2]]
    %v46 = vld [vmem:[%s2] sm:$0x77]
    %v47 = vld [vmem:[%s2 + $0x8] sm:$0x77]
    %v48 = vld [vmem:[%s2 + $0x10] sm:$0x77]
    %v49 = vld [vmem:[%s2 + $0x18] sm:$0x77]
    %v50 = vld [vmem:[%s2 + $0x20] sm:$0x77]
    %v51 = vld [vmem:[%s2 + $0x28] sm:$0x77]
    %v52 = vld [vmem:[%s2 + $0x30] sm:$0x77]
    %v53 = vld [vmem:[%s2 + $0x38] sm:$0x77]
    %v54 = vld [vmem:[%s3] sm:$0xff]
    %v55 = vld [vmem:[%s3 + $0x8] sm:$0xff]
    loop: start=0, step=1, limit=32
    $region38: #{face_fake_net_forward.1} parent=1 // loop_pre_header
      _
    $region39: #{face_fake_net_forward.1} parent=1 // loop_header
      %s57 = sphi 0, %s61
      %p58 = scmp.ge.s32.totalorder %s57, 32
      %v62 = vphi 0.0, %v1188
      %v63 = vphi 0.0, %v1189
      %v64 = vphi 0.0, %v1190
      %v65 = vphi 0.0, %v1191
      %v66 = vphi 0.0, %v1192
      %v67 = vphi 0.0, %v1193
      %v68 = vphi 0.0, %v1194
      %v69 = vphi 0.0, %v1195
      %v70 = vphi 0.0, %v1196
      %v71 = vphi 0.0, %v1197
      %v72 = vphi 0.0, %v1198
      %v73 = vphi 0.0, %v1199
      %v74 = vphi 0.0, %v1200
      %v75 = vphi 0.0, %v1201
      %v76 = vphi 0.0, %v1202
      %v77 = vphi 0.0, %v1203
      %v78 = vphi 0.0, %v1204
      %v79 = vphi 0.0, %v1205
      %v80 = vphi 0.0, %v1206
      %v81 = vphi 0.0, %v1207
      %v82 = vphi 0.0, %v1208
      %v83 = vphi 0.0, %v1209
      %v84 = vphi 0.0, %v1210
      %v85 = vphi 0.0, %v1211
      %v86 = vphi 0.0, %v1212
      %v87 = vphi 0.0, %v1213
      %v88 = vphi 0.0, %v1214
      %v89 = vphi 0.0, %v1215
      %v90 = vphi 0.0, %v1216
      %v91 = vphi 0.0, %v1217
      %v92 = vphi 0.0, %v1218
      %v93 = vphi 0.0, %v1219
      %v94 = vphi 0.0, %v1444
      %v95 = vphi 0.0, %v1445
      %v96 = vphi 0.0, %v1446
      %v97 = vphi 0.0, %v1447
      %v98 = vphi 0.0, %v1448
      %v99 = vphi 0.0, %v1449
      %v100 = vphi 0.0, %v1450
      %v101 = vphi 0.0, %v1451
      %v102 = vphi 0.0, %v1452
      %v103 = vphi 0.0, %v1453
      %v104 = vphi 0.0, %v1454
      %v105 = vphi 0.0, %v1455
      %v106 = vphi 0.0, %v1456
      %v107 = vphi 0.0, %v1457
      %v108 = vphi 0.0, %v1458
      %v109 = vphi 0.0, %v1459
      %v110 = vphi 0.0, %v1460
      %v111 = vphi 0.0, %v1461
      %v112 = vphi 0.0, %v1462
      %v113 = vphi 0.0, %v1463
      %v114 = vphi 0.0, %v1464
      %v115 = vphi 0.0, %v1465
      %v116 = vphi 0.0, %v1466
      %v117 = vphi 0.0, %v1467
      %v118 = vphi 0.0, %v1468
      %v119 = vphi 0.0, %v1469
      %v120 = vphi 0.0, %v1470
      %v121 = vphi 0.0, %v1471
      %v122 = vphi 0.0, %v1472
      %v123 = vphi 0.0, %v1473
      %v124 = vphi 0.0, %v1474
      %v125 = vphi 0.0, %v1475
    $region40: #{face_fake_net_forward.1} parent=1 // loop_header_branch
      %60 = sbr.rel (%p58) target = $region44
    $region41: #{face_fake_net_forward.1} parent=1 // loop_body
      %s126 = smul.u32 %s57, 8
      %s127 = scalar_lea.vmem %s1, %s126
      %v128 = vld [vmem:[%s127] sm:$0xff]
      %v129 = vld [vmem:[%s127 + $0x100] sm:$0xff]
      %131 = vset.pattern.permute.xlu0 0
      %132 = vperm.xlu0 %131, %v128
      %v133 = vpop.permute.xlu0 %132
      %136 = vset.pattern.permute.xlu0 0
      %137 = vperm.xlu0 %136, %v129
      %v138 = vpop.permute.xlu0 %137
      %v148 = vlaneseq
      %v149 = vshrl.u32 %v148, 7
      %v150 = vsub.s32 0, %v149
      %v151 = vrot.slane %v46, %v150
      %v152 = vlaneseq
      %v153 = vshrl.u32 %v152, 7
      %v154 = vsub.s32 4, %v153
      %v155 = vrot.slane %v46, %v154
      %v156 = vlaneseq
      %v157 = vshrl.u32 %v156, 7
      %v158 = vsub.s32 0, %v157
      %v159 = vrot.slane %v47, %v158
      %v160 = vlaneseq
      %v161 = vshrl.u32 %v160, 7
      %v162 = vsub.s32 4, %v161
      %v163 = vrot.slane %v47, %v162
      %v164 = vlaneseq
      %v165 = vshrl.u32 %v164, 7
      %v166 = vsub.s32 0, %v165
      %v167 = vrot.slane %v48, %v166
      %v168 = vlaneseq
      %v169 = vshrl.u32 %v168, 7
      %v170 = vsub.s32 4, %v169
      %v171 = vrot.slane %v48, %v170
      %v172 = vlaneseq
      %v173 = vshrl.u32 %v172, 7
      %v174 = vsub.s32 0, %v173
      %v175 = vrot.slane %v49, %v174
      %v176 = vlaneseq
      %v177 = vshrl.u32 %v176, 7
      %v178 = vsub.s32 4, %v177
      %v179 = vrot.slane %v49, %v178
      %v180 = vlaneseq
      %v181 = vshrl.u32 %v180, 7
      %v182 = vsub.s32 0, %v181
      %v183 = vrot.slane %v50, %v182
      %v184 = vlaneseq
      %v185 = vshrl.u32 %v184, 7
      %v186 = vsub.s32 4, %v185
      %v187 = vrot.slane %v50, %v186
      %v188 = vlaneseq
      %v189 = vshrl.u32 %v188, 7
      %v190 = vsub.s32 0, %v189
      %v191 = vrot.slane %v51, %v190
      %v192 = vlaneseq
      %v193 = vshrl.u32 %v192, 7
      %v194 = vsub.s32 4, %v193
      %v195 = vrot.slane %v51, %v194
      %v196 = vlaneseq
      %v197 = vshrl.u32 %v196, 7
      %v198 = vsub.s32 0, %v197
      %v199 = vrot.slane %v52, %v198
      %v200 = vlaneseq
      %v201 = vshrl.u32 %v200, 7
      %v202 = vsub.s32 4, %v201
      %v203 = vrot.slane %v52, %v202
      %v204 = vlaneseq
      %v205 = vshrl.u32 %v204, 7
      %v206 = vsub.s32 0, %v205
      %v207 = vrot.slane %v53, %v206
      %v208 = vlaneseq
      %v209 = vshrl.u32 %v208, 7
      %v210 = vsub.s32 4, %v209
      %v211 = vrot.slane %v53, %v210
      %v228 = vlaneseq
      %v229 = vshrl.u32 %v228, 7
      %v230 = vsub.s32 0, %v229
      %v231 = vrot.slane %v151, %v230
      %v232 = vlaneseq
      %v233 = vshrl.u32 %v232, 7
      %v234 = vsub.s32 0, %v233
      %v235 = vrot.slane %v155, %v234
      %v236 = vlaneseq
      %v237 = vshrl.u32 %v236, 7
      %v238 = vsub.s32 0, %v237
      %v239 = vrot.slane %v159, %v238
      %v240 = vlaneseq
      %v241 = vshrl.u32 %v240, 7
      %v242 = vsub.s32 0, %v241
      %v243 = vrot.slane %v163, %v242
      %v244 = vlaneseq
      %v245 = vshrl.u32 %v244, 7
      %v246 = vsub.s32 0, %v245
      %v247 = vrot.slane %v167, %v246
      %v248 = vlaneseq
      %v249 = vshrl.u32 %v248, 7
      %v250 = vsub.s32 0, %v249
      %v251 = vrot.slane %v171, %v250
      %v252 = vlaneseq
      %v253 = vshrl.u32 %v252, 7
      %v254 = vsub.s32 0, %v253
      %v255 = vrot.slane %v175, %v254
      %v256 = vlaneseq
      %v257 = vshrl.u32 %v256, 7
      %v258 = vsub.s32 0, %v257
      %v259 = vrot.slane %v179, %v258
      %v260 = vlaneseq
      %v261 = vshrl.u32 %v260, 7
      %v262 = vsub.s32 0, %v261
      %v263 = vrot.slane %v183, %v262
      %v264 = vlaneseq
      %v265 = vshrl.u32 %v264, 7
      %v266 = vsub.s32 0, %v265
      %v267 = vrot.slane %v187, %v266
      %v268 = vlaneseq
      %v269 = vshrl.u32 %v268, 7
      %v270 = vsub.s32 0, %v269
      %v271 = vrot.slane %v191, %v270
      %v272 = vlaneseq
      %v273 = vshrl.u32 %v272, 7
      %v274 = vsub.s32 0, %v273
      %v275 = vrot.slane %v195, %v274
      %v276 = vlaneseq
      %v277 = vshrl.u32 %v276, 7
      %v278 = vsub.s32 0, %v277
      %v279 = vrot.slane %v199, %v278
      %v280 = vlaneseq
      %v281 = vshrl.u32 %v280, 7
      %v282 = vsub.s32 0, %v281
      %v283 = vrot.slane %v203, %v282
      %v284 = vlaneseq
      %v285 = vshrl.u32 %v284, 7
      %v286 = vsub.s32 0, %v285
      %v287 = vrot.slane %v207, %v286
      %v288 = vlaneseq
      %v289 = vshrl.u32 %v288, 7
      %v290 = vsub.s32 0, %v289
      %v291 = vrot.slane %v211, %v290
      %v292 = vmul.f32 %v133, %v231
      %v293 = vmul.f32 %v133, %v235
      %v294 = vmul.f32 %v133, %v239
      %v295 = vmul.f32 %v133, %v243
      %v296 = vmul.f32 %v133, %v247
      %v297 = vmul.f32 %v133, %v251
      %v298 = vmul.f32 %v133, %v255
      %v299 = vmul.f32 %v133, %v259
      %v300 = vmul.f32 %v133, %v263
      %v301 = vmul.f32 %v133, %v267
      %v302 = vmul.f32 %v133, %v271
      %v303 = vmul.f32 %v133, %v275
      %v304 = vmul.f32 %v133, %v279
      %v305 = vmul.f32 %v133, %v283
      %v306 = vmul.f32 %v133, %v287
      %v307 = vmul.f32 %v133, %v291
      %v308 = vmul.f32 %v138, %v231
      %v309 = vmul.f32 %v138, %v235
      %v310 = vmul.f32 %v138, %v239
      %v311 = vmul.f32 %v138, %v243
      %v312 = vmul.f32 %v138, %v247
      %v313 = vmul.f32 %v138, %v251
      %v314 = vmul.f32 %v138, %v255
      %v315 = vmul.f32 %v138, %v259
      %v316 = vmul.f32 %v138, %v263
      %v317 = vmul.f32 %v138, %v267
      %v318 = vmul.f32 %v138, %v271
      %v319 = vmul.f32 %v138, %v275
      %v320 = vmul.f32 %v138, %v279
      %v321 = vmul.f32 %v138, %v283
      %v322 = vmul.f32 %v138, %v287
      %v323 = vmul.f32 %v138, %v291
      %v326 = vlaneseq
      %v327 = vshrl.u32 %v326, 7
      %v328 = vsub.s32 0, %v327
      %v329 = vrot.slane %v54, %v328
      %v330 = vlaneseq
      %v331 = vshrl.u32 %v330, 7
      %v332 = vsub.s32 1, %v331
      %v333 = vrot.slane %v54, %v332
      %v334 = vlaneseq
      %v335 = vshrl.u32 %v334, 7
      %v336 = vsub.s32 2, %v335
      %v337 = vrot.slane %v54, %v336
      %v338 = vlaneseq
      %v339 = vshrl.u32 %v338, 7
      %v340 = vsub.s32 3, %v339
      %v341 = vrot.slane %v54, %v340
      %v342 = vlaneseq
      %v343 = vshrl.u32 %v342, 7
      %v344 = vsub.s32 4, %v343
      %v345 = vrot.slane %v54, %v344
      %v346 = vlaneseq
      %v347 = vshrl.u32 %v346, 7
      %v348 = vsub.s32 5, %v347
      %v349 = vrot.slane %v54, %v348
      %v350 = vlaneseq
      %v351 = vshrl.u32 %v350, 7
      %v352 = vsub.s32 6, %v351
      %v353 = vrot.slane %v54, %v352
      %v354 = vlaneseq
      %v355 = vshrl.u32 %v354, 7
      %v356 = vsub.s32 7, %v355
      %v357 = vrot.slane %v54, %v356
      %v358 = vlaneseq
      %v359 = vshrl.u32 %v358, 7
      %v360 = vsub.s32 0, %v359
      %v361 = vrot.slane %v55, %v360
      %v362 = vlaneseq
      %v363 = vshrl.u32 %v362, 7
      %v364 = vsub.s32 1, %v363
      %v365 = vrot.slane %v55, %v364
      %v366 = vlaneseq
      %v367 = vshrl.u32 %v366, 7
      %v368 = vsub.s32 2, %v367
      %v369 = vrot.slane %v55, %v368
      %v370 = vlaneseq
      %v371 = vshrl.u32 %v370, 7
      %v372 = vsub.s32 3, %v371
      %v373 = vrot.slane %v55, %v372
      %v374 = vlaneseq
      %v375 = vshrl.u32 %v374, 7
      %v376 = vsub.s32 4, %v375
      %v377 = vrot.slane %v55, %v376
      %v378 = vlaneseq
      %v379 = vshrl.u32 %v378, 7
      %v380 = vsub.s32 5, %v379
      %v381 = vrot.slane %v55, %v380
      %v382 = vlaneseq
      %v383 = vshrl.u32 %v382, 7
      %v384 = vsub.s32 6, %v383
      %v385 = vrot.slane %v55, %v384
      %v386 = vlaneseq
      %v387 = vshrl.u32 %v386, 7
      %v388 = vsub.s32 7, %v387
      %v389 = vrot.slane %v55, %v388
      %v406 = vadd.f32 %v329, %v292
      %v407 = vadd.f32 %v333, %v293
      %v408 = vadd.f32 %v337, %v294
      %v409 = vadd.f32 %v341, %v295
      %v410 = vadd.f32 %v345, %v296
      %v411 = vadd.f32 %v349, %v297
      %v412 = vadd.f32 %v353, %v298
      %v413 = vadd.f32 %v357, %v299
      %v414 = vadd.f32 %v361, %v300
      %v415 = vadd.f32 %v365, %v301
      %v416 = vadd.f32 %v369, %v302
      %v417 = vadd.f32 %v373, %v303
      %v418 = vadd.f32 %v377, %v304
      %v419 = vadd.f32 %v381, %v305
      %v420 = vadd.f32 %v385, %v306
      %v421 = vadd.f32 %v389, %v307
      %v422 = vadd.f32 %v329, %v308
      %v423 = vadd.f32 %v333, %v309
      %v424 = vadd.f32 %v337, %v310
      %v425 = vadd.f32 %v341, %v311
      %v426 = vadd.f32 %v345, %v312
      %v427 = vadd.f32 %v349, %v313
      %v428 = vadd.f32 %v353, %v314
      %v429 = vadd.f32 %v357, %v315
      %v430 = vadd.f32 %v361, %v316
      %v431 = vadd.f32 %v365, %v317
      %v432 = vadd.f32 %v369, %v318
      %v433 = vadd.f32 %v373, %v319
      %v434 = vadd.f32 %v377, %v320
      %v435 = vadd.f32 %v381, %v321
      %v436 = vadd.f32 %v385, %v322
      %v437 = vadd.f32 %v389, %v323
      %438 = vset.pattern.permute.xlu0 1
      %439 = vperm.xlu0 %438, %v128
      %v440 = vpop.permute.xlu0 %439
      %442 = vset.pattern.permute.xlu0 1
      %443 = vperm.xlu0 %442, %v129
      %v444 = vpop.permute.xlu0 %443
      %v446 = vlaneseq
      %v447 = vshrl.u32 %v446, 7
      %v448 = vsub.s32 1, %v447
      %v449 = vrot.slane %v46, %v448
      %v450 = vlaneseq
      %v451 = vshrl.u32 %v450, 7
      %v452 = vsub.s32 5, %v451
      %v453 = vrot.slane %v46, %v452
      %v454 = vlaneseq
      %v455 = vshrl.u32 %v454, 7
      %v456 = vsub.s32 1, %v455
      %v457 = vrot.slane %v47, %v456
      %v458 = vlaneseq
      %v459 = vshrl.u32 %v458, 7
      %v460 = vsub.s32 5, %v459
      %v461 = vrot.slane %v47, %v460
      %v462 = vlaneseq
      %v463 = vshrl.u32 %v462, 7
      %v464 = vsub.s32 1, %v463
      %v465 = vrot.slane %v48, %v464
      %v466 = vlaneseq
      %v467 = vshrl.u32 %v466, 7
      %v468 = vsub.s32 5, %v467
      %v469 = vrot.slane %v48, %v468
      %v470 = vlaneseq
      %v471 = vshrl.u32 %v470, 7
      %v472 = vsub.s32 1, %v471
      %v473 = vrot.slane %v49, %v472
      %v474 = vlaneseq
      %v475 = vshrl.u32 %v474, 7
      %v476 = vsub.s32 5, %v475
      %v477 = vrot.slane %v49, %v476
      %v478 = vlaneseq
      %v479 = vshrl.u32 %v478, 7
      %v480 = vsub.s32 1, %v479
      %v481 = vrot.slane %v50, %v480
      %v482 = vlaneseq
      %v483 = vshrl.u32 %v482, 7
      %v484 = vsub.s32 5, %v483
      %v485 = vrot.slane %v50, %v484
      %v486 = vlaneseq
      %v487 = vshrl.u32 %v486, 7
      %v488 = vsub.s32 1, %v487
      %v489 = vrot.slane %v51, %v488
      %v490 = vlaneseq
      %v491 = vshrl.u32 %v490, 7
      %v492 = vsub.s32 5, %v491
      %v493 = vrot.slane %v51, %v492
      %v494 = vlaneseq
      %v495 = vshrl.u32 %v494, 7
      %v496 = vsub.s32 1, %v495
      %v497 = vrot.slane %v52, %v496
      %v498 = vlaneseq
      %v499 = vshrl.u32 %v498, 7
      %v500 = vsub.s32 5, %v499
      %v501 = vrot.slane %v52, %v500
      %v502 = vlaneseq
      %v503 = vshrl.u32 %v502, 7
      %v504 = vsub.s32 1, %v503
      %v505 = vrot.slane %v53, %v504
      %v506 = vlaneseq
      %v507 = vshrl.u32 %v506, 7
      %v508 = vsub.s32 5, %v507
      %v509 = vrot.slane %v53, %v508
      %v526 = vlaneseq
      %v527 = vshrl.u32 %v526, 7
      %v528 = vsub.s32 1, %v527
      %v529 = vrot.slane %v449, %v528
      %v530 = vlaneseq
      %v531 = vshrl.u32 %v530, 7
      %v532 = vsub.s32 1, %v531
      %v533 = vrot.slane %v453, %v532
      %v534 = vlaneseq
      %v535 = vshrl.u32 %v534, 7
      %v536 = vsub.s32 1, %v535
      %v537 = vrot.slane %v457, %v536
      %v538 = vlaneseq
      %v539 = vshrl.u32 %v538, 7
      %v540 = vsub.s32 1, %v539
      %v541 = vrot.slane %v461, %v540
      %v542 = vlaneseq
      %v543 = vshrl.u32 %v542, 7
      %v544 = vsub.s32 1, %v543
      %v545 = vrot.slane %v465, %v544
      %v546 = vlaneseq
      %v547 = vshrl.u32 %v546, 7
      %v548 = vsub.s32 1, %v547
      %v549 = vrot.slane %v469, %v548
      %v550 = vlaneseq
      %v551 = vshrl.u32 %v550, 7
      %v552 = vsub.s32 1, %v551
      %v553 = vrot.slane %v473, %v552
      %v554 = vlaneseq
      %v555 = vshrl.u32 %v554, 7
      %v556 = vsub.s32 1, %v555
      %v557 = vrot.slane %v477, %v556
      %v558 = vlaneseq
      %v559 = vshrl.u32 %v558, 7
      %v560 = vsub.s32 1, %v559
      %v561 = vrot.slane %v481, %v560
      %v562 = vlaneseq
      %v563 = vshrl.u32 %v562, 7
      %v564 = vsub.s32 1, %v563
      %v565 = vrot.slane %v485, %v564
      %v566 = vlaneseq
      %v567 = vshrl.u32 %v566, 7
      %v568 = vsub.s32 1, %v567
      %v569 = vrot.slane %v489, %v568
      %v570 = vlaneseq
      %v571 = vshrl.u32 %v570, 7
      %v572 = vsub.s32 1, %v571
      %v573 = vrot.slane %v493, %v572
      %v574 = vlaneseq
      %v575 = vshrl.u32 %v574, 7
      %v576 = vsub.s32 1, %v575
      %v577 = vrot.slane %v497, %v576
      %v578 = vlaneseq
      %v579 = vshrl.u32 %v578, 7
      %v580 = vsub.s32 1, %v579
      %v581 = vrot.slane %v501, %v580
      %v582 = vlaneseq
      %v583 = vshrl.u32 %v582, 7
      %v584 = vsub.s32 1, %v583
      %v585 = vrot.slane %v505, %v584
      %v586 = vlaneseq
      %v587 = vshrl.u32 %v586, 7
      %v588 = vsub.s32 1, %v587
      %v589 = vrot.slane %v509, %v588
      %v590 = vmul.f32 %v440, %v529
      %v591 = vmul.f32 %v440, %v533
      %v592 = vmul.f32 %v440, %v537
      %v593 = vmul.f32 %v440, %v541
      %v594 = vmul.f32 %v440, %v545
      %v595 = vmul.f32 %v440, %v549
      %v596 = vmul.f32 %v440, %v553
      %v597 = vmul.f32 %v440, %v557
      %v598 = vmul.f32 %v440, %v561
      %v599 = vmul.f32 %v440, %v565
      %v600 = vmul.f32 %v440, %v569
      %v601 = vmul.f32 %v440, %v573
      %v602 = vmul.f32 %v440, %v577
      %v603 = vmul.f32 %v440, %v581
      %v604 = vmul.f32 %v440, %v585
      %v605 = vmul.f32 %v440, %v589
      %v606 = vmul.f32 %v444, %v529
      %v607 = vmul.f32 %v444, %v533
      %v608 = vmul.f32 %v444, %v537
      %v609 = vmul.f32 %v444, %v541
      %v610 = vmul.f32 %v444, %v545
      %v611 = vmul.f32 %v444, %v549
      %v612 = vmul.f32 %v444, %v553
      %v613 = vmul.f32 %v444, %v557
      %v614 = vmul.f32 %v444, %v561
      %v615 = vmul.f32 %v444, %v565
      %v616 = vmul.f32 %v444, %v569
      %v617 = vmul.f32 %v444, %v573
      %v618 = vmul.f32 %v444, %v577
      %v619 = vmul.f32 %v444, %v581
      %v620 = vmul.f32 %v444, %v585
      %v621 = vmul.f32 %v444, %v589
      %v622 = vadd.f32 %v406, %v590
      %v623 = vadd.f32 %v407, %v591
      %v624 = vadd.f32 %v408, %v592
      %v625 = vadd.f32 %v409, %v593
      %v626 = vadd.f32 %v410, %v594
      %v627 = vadd.f32 %v411, %v595
      %v628 = vadd.f32 %v412, %v596
      %v629 = vadd.f32 %v413, %v597
      %v630 = vadd.f32 %v414, %v598
      %v631 = vadd.f32 %v415, %v599
      %v632 = vadd.f32 %v416, %v600
      %v633 = vadd.f32 %v417, %v601
      %v634 = vadd.f32 %v418, %v602
      %v635 = vadd.f32 %v419, %v603
      %v636 = vadd.f32 %v420, %v604
      %v637 = vadd.f32 %v421, %v605
      %v638 = vadd.f32 %v422, %v606
      %v639 = vadd.f32 %v423, %v607
      %v640 = vadd.f32 %v424, %v608
      %v641 = vadd.f32 %v425, %v609
      %v642 = vadd.f32 %v426, %v610
      %v643 = vadd.f32 %v427, %v611
      %v644 = vadd.f32 %v428, %v612
      %v645 = vadd.f32 %v429, %v613
      %v646 = vadd.f32 %v430, %v614
      %v647 = vadd.f32 %v431, %v615
      %v648 = vadd.f32 %v432, %v616
      %v649 = vadd.f32 %v433, %v617
      %v650 = vadd.f32 %v434, %v618
      %v651 = vadd.f32 %v435, %v619
      %v652 = vadd.f32 %v436, %v620
      %v653 = vadd.f32 %v437, %v621
      %654 = vset.pattern.permute.xlu0 2
      %655 = vperm.xlu0 %654, %v128
      %v656 = vpop.permute.xlu0 %655
      %658 = vset.pattern.permute.xlu0 2
      %659 = vperm.xlu0 %658, %v129
      %v660 = vpop.permute.xlu0 %659
      %v662 = vlaneseq
      %v663 = vshrl.u32 %v662, 7
      %v664 = vsub.s32 2, %v663
      %v665 = vrot.slane %v46, %v664
      %v666 = vlaneseq
      %v667 = vshrl.u32 %v666, 7
      %v668 = vsub.s32 6, %v667
      %v669 = vrot.slane %v46, %v668
      %v670 = vlaneseq
      %v671 = vshrl.u32 %v670, 7
      %v672 = vsub.s32 2, %v671
      %v673 = vrot.slane %v47, %v672
      %v674 = vlaneseq
      %v675 = vshrl.u32 %v674, 7
      %v676 = vsub.s32 6, %v675
      %v677 = vrot.slane %v47, %v676
      %v678 = vlaneseq
      %v679 = vshrl.u32 %v678, 7
      %v680 = vsub.s32 2, %v679
      %v681 = vrot.slane %v48, %v680
      %v682 = vlaneseq
      %v683 = vshrl.u32 %v682, 7
      %v684 = vsub.s32 6, %v683
      %v685 = vrot.slane %v48, %v684
      %v686 = vlaneseq
      %v687 = vshrl.u32 %v686, 7
      %v688 = vsub.s32 2, %v687
      %v689 = vrot.slane %v49, %v688
      %v690 = vlaneseq
      %v691 = vshrl.u32 %v690, 7
      %v692 = vsub.s32 6, %v691
      %v693 = vrot.slane %v49, %v692
      %v694 = vlaneseq
      %v695 = vshrl.u32 %v694, 7
      %v696 = vsub.s32 2, %v695
      %v697 = vrot.slane %v50, %v696
      %v698 = vlaneseq
      %v699 = vshrl.u32 %v698, 7
      %v700 = vsub.s32 6, %v699
      %v701 = vrot.slane %v50, %v700
      %v702 = vlaneseq
      %v703 = vshrl.u32 %v702, 7
      %v704 = vsub.s32 2, %v703
      %v705 = vrot.slane %v51, %v704
      %v706 = vlaneseq
      %v707 = vshrl.u32 %v706, 7
      %v708 = vsub.s32 6, %v707
      %v709 = vrot.slane %v51, %v708
      %v710 = vlaneseq
      %v711 = vshrl.u32 %v710, 7
      %v712 = vsub.s32 2, %v711
      %v713 = vrot.slane %v52, %v712
      %v714 = vlaneseq
      %v715 = vshrl.u32 %v714, 7
      %v716 = vsub.s32 6, %v715
      %v717 = vrot.slane %v52, %v716
      %v718 = vlaneseq
      %v719 = vshrl.u32 %v718, 7
      %v720 = vsub.s32 2, %v719
      %v721 = vrot.slane %v53, %v720
      %v722 = vlaneseq
      %v723 = vshrl.u32 %v722, 7
      %v724 = vsub.s32 6, %v723
      %v725 = vrot.slane %v53, %v724
      %v742 = vlaneseq
      %v743 = vshrl.u32 %v742, 7
      %v744 = vsub.s32 2, %v743
      %v745 = vrot.slane %v665, %v744
      %v746 = vlaneseq
      %v747 = vshrl.u32 %v746, 7
      %v748 = vsub.s32 2, %v747
      %v749 = vrot.slane %v669, %v748
      %v750 = vlaneseq
      %v751 = vshrl.u32 %v750, 7
      %v752 = vsub.s32 2, %v751
      %v753 = vrot.slane %v673, %v752
      %v754 = vlaneseq
      %v755 = vshrl.u32 %v754, 7
      %v756 = vsub.s32 2, %v755
      %v757 = vrot.slane %v677, %v756
      %v758 = vlaneseq
      %v759 = vshrl.u32 %v758, 7
      %v760 = vsub.s32 2, %v759
      %v761 = vrot.slane %v681, %v760
      %v762 = vlaneseq
      %v763 = vshrl.u32 %v762, 7
      %v764 = vsub.s32 2, %v763
      %v765 = vrot.slane %v685, %v764
      %v766 = vlaneseq
      %v767 = vshrl.u32 %v766, 7
      %v768 = vsub.s32 2, %v767
      %v769 = vrot.slane %v689, %v768
      %v770 = vlaneseq
      %v771 = vshrl.u32 %v770, 7
      %v772 = vsub.s32 2, %v771
      %v773 = vrot.slane %v693, %v772
      %v774 = vlaneseq
      %v775 = vshrl.u32 %v774, 7
      %v776 = vsub.s32 2, %v775
      %v777 = vrot.slane %v697, %v776
      %v778 = vlaneseq
      %v779 = vshrl.u32 %v778, 7
      %v780 = vsub.s32 2, %v779
      %v781 = vrot.slane %v701, %v780
      %v782 = vlaneseq
      %v783 = vshrl.u32 %v782, 7
      %v784 = vsub.s32 2, %v783
      %v785 = vrot.slane %v705, %v784
      %v786 = vlaneseq
      %v787 = vshrl.u32 %v786, 7
      %v788 = vsub.s32 2, %v787
      %v789 = vrot.slane %v709, %v788
      %v790 = vlaneseq
      %v791 = vshrl.u32 %v790, 7
      %v792 = vsub.s32 2, %v791
      %v793 = vrot.slane %v713, %v792
      %v794 = vlaneseq
      %v795 = vshrl.u32 %v794, 7
      %v796 = vsub.s32 2, %v795
      %v797 = vrot.slane %v717, %v796
      %v798 = vlaneseq
      %v799 = vshrl.u32 %v798, 7
      %v800 = vsub.s32 2, %v799
      %v801 = vrot.slane %v721, %v800
      %v802 = vlaneseq
      %v803 = vshrl.u32 %v802, 7
      %v804 = vsub.s32 2, %v803
      %v805 = vrot.slane %v725, %v804
      %v806 = vmul.f32 %v656, %v745
      %v807 = vmul.f32 %v656, %v749
      %v808 = vmul.f32 %v656, %v753
      %v809 = vmul.f32 %v656, %v757
      %v810 = vmul.f32 %v656, %v761
      %v811 = vmul.f32 %v656, %v765
      %v812 = vmul.f32 %v656, %v769
      %v813 = vmul.f32 %v656, %v773
      %v814 = vmul.f32 %v656, %v777
      %v815 = vmul.f32 %v656, %v781
      %v816 = vmul.f32 %v656, %v785
      %v817 = vmul.f32 %v656, %v789
      %v818 = vmul.f32 %v656, %v793
      %v819 = vmul.f32 %v656, %v797
      %v820 = vmul.f32 %v656, %v801
      %v821 = vmul.f32 %v656, %v805
      %v822 = vmul.f32 %v660, %v745
      %v823 = vmul.f32 %v660, %v749
      %v824 = vmul.f32 %v660, %v753
      %v825 = vmul.f32 %v660, %v757
      %v826 = vmul.f32 %v660, %v761
      %v827 = vmul.f32 %v660, %v765
      %v828 = vmul.f32 %v660, %v769
      %v829 = vmul.f32 %v660, %v773
      %v830 = vmul.f32 %v660, %v777
      %v831 = vmul.f32 %v660, %v781
      %v832 = vmul.f32 %v660, %v785
      %v833 = vmul.f32 %v660, %v789
      %v834 = vmul.f32 %v660, %v793
      %v835 = vmul.f32 %v660, %v797
      %v836 = vmul.f32 %v660, %v801
      %v837 = vmul.f32 %v660, %v805
      %v838 = vadd.f32 %v622, %v806
      %v839 = vadd.f32 %v623, %v807
      %v840 = vadd.f32 %v624, %v808
      %v841 = vadd.f32 %v625, %v809
      %v842 = vadd.f32 %v626, %v810
      %v843 = vadd.f32 %v627, %v811
      %v844 = vadd.f32 %v628, %v812
      %v845 = vadd.f32 %v629, %v813
      %v846 = vadd.f32 %v630, %v814
      %v847 = vadd.f32 %v631, %v815
      %v848 = vadd.f32 %v632, %v816
      %v849 = vadd.f32 %v633, %v817
      %v850 = vadd.f32 %v634, %v818
      %v851 = vadd.f32 %v635, %v819
      %v852 = vadd.f32 %v636, %v820
      %v853 = vadd.f32 %v637, %v821
      %v854 = vadd.f32 %v638, %v822
      %v855 = vadd.f32 %v639, %v823
      %v856 = vadd.f32 %v640, %v824
      %v857 = vadd.f32 %v641, %v825
      %v858 = vadd.f32 %v642, %v826
      %v859 = vadd.f32 %v643, %v827
      %v860 = vadd.f32 %v644, %v828
      %v861 = vadd.f32 %v645, %v829
      %v862 = vadd.f32 %v646, %v830
      %v863 = vadd.f32 %v647, %v831
      %v864 = vadd.f32 %v648, %v832
      %v865 = vadd.f32 %v649, %v833
      %v866 = vadd.f32 %v650, %v834
      %v867 = vadd.f32 %v651, %v835
      %v868 = vadd.f32 %v652, %v836
      %v869 = vadd.f32 %v653, %v837
      %v870 = vmax.f32 %v838, 0.0
      %v871 = vmax.f32 %v839, 0.0
      %v872 = vmax.f32 %v840, 0.0
      %v873 = vmax.f32 %v841, 0.0
      %v874 = vmax.f32 %v842, 0.0
      %v875 = vmax.f32 %v843, 0.0
      %v876 = vmax.f32 %v844, 0.0
      %v877 = vmax.f32 %v845, 0.0
      %v878 = vmax.f32 %v846, 0.0
      %v879 = vmax.f32 %v847, 0.0
      %v880 = vmax.f32 %v848, 0.0
      %v881 = vmax.f32 %v849, 0.0
      %v882 = vmax.f32 %v850, 0.0
      %v883 = vmax.f32 %v851, 0.0
      %v884 = vmax.f32 %v852, 0.0
      %v885 = vmax.f32 %v853, 0.0
      %v886 = vmax.f32 %v854, 0.0
      %v887 = vmax.f32 %v855, 0.0
      %v888 = vmax.f32 %v856, 0.0
      %v889 = vmax.f32 %v857, 0.0
      %v890 = vmax.f32 %v858, 0.0
      %v891 = vmax.f32 %v859, 0.0
      %v892 = vmax.f32 %v860, 0.0
      %v893 = vmax.f32 %v861, 0.0
      %v894 = vmax.f32 %v862, 0.0
      %v895 = vmax.f32 %v863, 0.0
      %v896 = vmax.f32 %v864, 0.0
      %v897 = vmax.f32 %v865, 0.0
      %v898 = vmax.f32 %v866, 0.0
      %v899 = vmax.f32 %v867, 0.0
      %v900 = vmax.f32 %v868, 0.0
      %v901 = vmax.f32 %v869, 0.0
      %v902 = vadd.f32 %v870, %v871
      %v903 = vadd.f32 %v902, %v872
      %v904 = vadd.f32 %v903, %v873
      %v905 = vadd.f32 %v904, %v874
      %v906 = vadd.f32 %v905, %v875
      %v907 = vadd.f32 %v906, %v876
      %v908 = vadd.f32 %v907, %v877
      %v909 = vadd.f32 %v908, %v878
      %v910 = vadd.f32 %v909, %v879
      %v911 = vadd.f32 %v910, %v880
      %v912 = vadd.f32 %v911, %v881
      %v913 = vadd.f32 %v912, %v882
      %v914 = vadd.f32 %v913, %v883
      %v915 = vadd.f32 %v914, %v884
      %v916 = vadd.f32 %v915, %v885
      %917 = vadd.xlane.f32.xlu0 %v916
      %v918 = vpop.xlane.xlu0 %917
      %v919 = vadd.f32 %v886, %v887
      %v920 = vadd.f32 %v919, %v888
      %v921 = vadd.f32 %v920, %v889
      %v922 = vadd.f32 %v921, %v890
      %v923 = vadd.f32 %v922, %v891
      %v924 = vadd.f32 %v923, %v892
      %v925 = vadd.f32 %v924, %v893
      %v926 = vadd.f32 %v925, %v894
      %v927 = vadd.f32 %v926, %v895
      %v928 = vadd.f32 %v927, %v896
      %v929 = vadd.f32 %v928, %v897
      %v930 = vadd.f32 %v929, %v898
      %v931 = vadd.f32 %v930, %v899
      %v932 = vadd.f32 %v931, %v900
      %v933 = vadd.f32 %v932, %v901
      %934 = vadd.xlane.f32.xlu0 %v933
      %v935 = vpop.xlane.xlu0 %934
      %v936 = vrcp.pop 2048.0
      %v937 = vmul.f32 %v918, %v936
      %v938 = vmul.f32 %v935, %v936
      %v939 = vmax.f32 %v870, %v872
      %v940 = vmax.f32 %v871, %v873
      %v941 = vmax.f32 %v939, %v874
      %v942 = vmax.f32 %v940, %v875
      %v943 = vmax.f32 %v941, %v876
      %v944 = vmax.f32 %v942, %v877
      %v945 = vmax.f32 %v943, %v878
      %v946 = vmax.f32 %v944, %v879
      %v947 = vmax.f32 %v945, %v880
      %v948 = vmax.f32 %v946, %v881
      %v949 = vmax.f32 %v947, %v882
      %v950 = vmax.f32 %v948, %v883
      %v951 = vmax.f32 %v949, %v884
      %v952 = vmax.f32 %v950, %v885
      %v953 = vmax.f32 %v951, %v952
      %954 = vmax.xlane.f32.xlu0 %v953
      %v955 = vpop.xlane.xlu0 %954
      %v956 = vmax.f32 %v886, %v888
      %v957 = vmax.f32 %v887, %v889
      %v958 = vmax.f32 %v956, %v890
      %v959 = vmax.f32 %v957, %v891
      %v960 = vmax.f32 %v958, %v892
      %v961 = vmax.f32 %v959, %v893
      %v962 = vmax.f32 %v960, %v894
      %v963 = vmax.f32 %v961, %v895
      %v964 = vmax.f32 %v962, %v896
      %v965 = vmax.f32 %v963, %v897
      %v966 = vmax.f32 %v964, %v898
      %v967 = vmax.f32 %v965, %v899
      %v968 = vmax.f32 %v966, %v900
      %v969 = vmax.f32 %v967, %v901
      %v970 = vmax.f32 %v968, %v969
      %971 = vmax.xlane.f32.xlu0 %v970
      %v972 = vpop.xlane.xlu0 %971
      %v973 = vstv %s43
      %v974 = vmul.f32 %v973, %v937
      %v975 = vmul.f32 %v973, %v938
      %v976 = vstv %s44
      %v977 = vmul.f32 %v976, %v955
      %v978 = vmul.f32 %v976, %v972
      %v979 = vadd.f32 %v974, %v977
      %v980 = vadd.f32 %v975, %v978
      %v981 = vstv %s45
      %v982 = vadd.f32 %v979, %v981
      %v983 = vadd.f32 %v980, %v981
      %v984 = vxor.u32 %v982, 2147483648
      %v985 = vxor.u32 %v983, 2147483648
      %v986 = vmul.f32 %v984, 1.442695
      %v987 = vpow.pop %v986
      %v988 = vmul.f32 %v985, 1.442695
      %v989 = vpow.pop %v988
      %v990 = vadd.f32 %v987, 1.0
      %v991 = vadd.f32 %v989, 1.0
      %v992 = vrcp.pop %v990
      %v993 = vmul.f32 1.0, %v992
      %v994 = vrcp.pop %v991
      %v995 = vmul.f32 1.0, %v994
      %v996 = vrot.slane %v870, 4
      %v997 = vadd.f32 %v870, %v996
      %v998 = vrot.slane %v997, 2
      %v999 = vadd.f32 %v997, %v998
      %v1000 = vrot.slane %v999, 1
      %v1001 = vadd.f32 %v999, %v1000
      %v1002 = vrot.slane %v871, 4
      %v1003 = vadd.f32 %v871, %v1002
      %v1004 = vrot.slane %v1003, 2
      %v1005 = vadd.f32 %v1003, %v1004
      %v1006 = vrot.slane %v1005, 1
      %v1007 = vadd.f32 %v1005, %v1006
      %v1008 = vrot.slane %v872, 4
      %v1009 = vadd.f32 %v872, %v1008
      %v1010 = vrot.slane %v1009, 2
      %v1011 = vadd.f32 %v1009, %v1010
      %v1012 = vrot.slane %v1011, 1
      %v1013 = vadd.f32 %v1011, %v1012
      %v1014 = vrot.slane %v873, 4
      %v1015 = vadd.f32 %v873, %v1014
      %v1016 = vrot.slane %v1015, 2
      %v1017 = vadd.f32 %v1015, %v1016
      %v1018 = vrot.slane %v1017, 1
      %v1019 = vadd.f32 %v1017, %v1018
      %v1020 = vrot.slane %v874, 4
      %v1021 = vadd.f32 %v874, %v1020
      %v1022 = vrot.slane %v1021, 2
      %v1023 = vadd.f32 %v1021, %v1022
      %v1024 = vrot.slane %v1023, 1
      %v1025 = vadd.f32 %v1023, %v1024
      %v1026 = vrot.slane %v875, 4
      %v1027 = vadd.f32 %v875, %v1026
      %v1028 = vrot.slane %v1027, 2
      %v1029 = vadd.f32 %v1027, %v1028
      %v1030 = vrot.slane %v1029, 1
      %v1031 = vadd.f32 %v1029, %v1030
      %v1032 = vrot.slane %v876, 4
      %v1033 = vadd.f32 %v876, %v1032
      %v1034 = vrot.slane %v1033, 2
      %v1035 = vadd.f32 %v1033, %v1034
      %v1036 = vrot.slane %v1035, 1
      %v1037 = vadd.f32 %v1035, %v1036
      %v1038 = vrot.slane %v877, 4
      %v1039 = vadd.f32 %v877, %v1038
      %v1040 = vrot.slane %v1039, 2
      %v1041 = vadd.f32 %v1039, %v1040
      %v1042 = vrot.slane %v1041, 1
      %v1043 = vadd.f32 %v1041, %v1042
      %v1044 = vrot.slane %v878, 4
      %v1045 = vadd.f32 %v878, %v1044
      %v1046 = vrot.slane %v1045, 2
      %v1047 = vadd.f32 %v1045, %v1046
      %v1048 = vrot.slane %v1047, 1
      %v1049 = vadd.f32 %v1047, %v1048
      %v1050 = vrot.slane %v879, 4
      %v1051 = vadd.f32 %v879, %v1050
      %v1052 = vrot.slane %v1051, 2
      %v1053 = vadd.f32 %v1051, %v1052
      %v1054 = vrot.slane %v1053, 1
      %v1055 = vadd.f32 %v1053, %v1054
      %v1056 = vrot.slane %v880, 4
      %v1057 = vadd.f32 %v880, %v1056
      %v1058 = vrot.slane %v1057, 2
      %v1059 = vadd.f32 %v1057, %v1058
      %v1060 = vrot.slane %v1059, 1
      %v1061 = vadd.f32 %v1059, %v1060
      %v1062 = vrot.slane %v881, 4
      %v1063 = vadd.f32 %v881, %v1062
      %v1064 = vrot.slane %v1063, 2
      %v1065 = vadd.f32 %v1063, %v1064
      %v1066 = vrot.slane %v1065, 1
      %v1067 = vadd.f32 %v1065, %v1066
      %v1068 = vrot.slane %v882, 4
      %v1069 = vadd.f32 %v882, %v1068
      %v1070 = vrot.slane %v1069, 2
      %v1071 = vadd.f32 %v1069, %v1070
      %v1072 = vrot.slane %v1071, 1
      %v1073 = vadd.f32 %v1071, %v1072
      %v1074 = vrot.slane %v883, 4
      %v1075 = vadd.f32 %v883, %v1074
      %v1076 = vrot.slane %v1075, 2
      %v1077 = vadd.f32 %v1075, %v1076
      %v1078 = vrot.slane %v1077, 1
      %v1079 = vadd.f32 %v1077, %v1078
      %v1080 = vrot.slane %v884, 4
      %v1081 = vadd.f32 %v884, %v1080
      %v1082 = vrot.slane %v1081, 2
      %v1083 = vadd.f32 %v1081, %v1082
      %v1084 = vrot.slane %v1083, 1
      %v1085 = vadd.f32 %v1083, %v1084
      %v1086 = vrot.slane %v885, 4
      %v1087 = vadd.f32 %v885, %v1086
      %v1088 = vrot.slane %v1087, 2
      %v1089 = vadd.f32 %v1087, %v1088
      %v1090 = vrot.slane %v1089, 1
      %v1091 = vadd.f32 %v1089, %v1090
      %v1092 = vrot.slane %v886, 4
      %v1093 = vadd.f32 %v886, %v1092
      %v1094 = vrot.slane %v1093, 2
      %v1095 = vadd.f32 %v1093, %v1094
      %v1096 = vrot.slane %v1095, 1
      %v1097 = vadd.f32 %v1095, %v1096
      %v1098 = vrot.slane %v887, 4
      %v1099 = vadd.f32 %v887, %v1098
      %v1100 = vrot.slane %v1099, 2
      %v1101 = vadd.f32 %v1099, %v1100
      %v1102 = vrot.slane %v1101, 1
      %v1103 = vadd.f32 %v1101, %v1102
      %v1104 = vrot.slane %v888, 4
      %v1105 = vadd.f32 %v888, %v1104
      %v1106 = vrot.slane %v1105, 2
      %v1107 = vadd.f32 %v1105, %v1106
      %v1108 = vrot.slane %v1107, 1
      %v1109 = vadd.f32 %v1107, %v1108
      %v1110 = vrot.slane %v889, 4
      %v1111 = vadd.f32 %v889, %v1110
      %v1112 = vrot.slane %v1111, 2
      %v1113 = vadd.f32 %v1111, %v1112
      %v1114 = vrot.slane %v1113, 1
      %v1115 = vadd.f32 %v1113, %v1114
      %v1116 = vrot.slane %v890, 4
      %v1117 = vadd.f32 %v890, %v1116
      %v1118 = vrot.slane %v1117, 2
      %v1119 = vadd.f32 %v1117, %v1118
      %v1120 = vrot.slane %v1119, 1
      %v1121 = vadd.f32 %v1119, %v1120
      %v1122 = vrot.slane %v891, 4
      %v1123 = vadd.f32 %v891, %v1122
      %v1124 = vrot.slane %v1123, 2
      %v1125 = vadd.f32 %v1123, %v1124
      %v1126 = vrot.slane %v1125, 1
      %v1127 = vadd.f32 %v1125, %v1126
      %v1128 = vrot.slane %v892, 4
      %v1129 = vadd.f32 %v892, %v1128
      %v1130 = vrot.slane %v1129, 2
      %v1131 = vadd.f32 %v1129, %v1130
      %v1132 = vrot.slane %v1131, 1
      %v1133 = vadd.f32 %v1131, %v1132
      %v1134 = vrot.slane %v893, 4
      %v1135 = vadd.f32 %v893, %v1134
      %v1136 = vrot.slane %v1135, 2
      %v1137 = vadd.f32 %v1135, %v1136
      %v1138 = vrot.slane %v1137, 1
      %v1139 = vadd.f32 %v1137, %v1138
      %v1140 = vrot.slane %v894, 4
      %v1141 = vadd.f32 %v894, %v1140
      %v1142 = vrot.slane %v1141, 2
      %v1143 = vadd.f32 %v1141, %v1142
      %v1144 = vrot.slane %v1143, 1
      %v1145 = vadd.f32 %v1143, %v1144
      %v1146 = vrot.slane %v895, 4
      %v1147 = vadd.f32 %v895, %v1146
      %v1148 = vrot.slane %v1147, 2
      %v1149 = vadd.f32 %v1147, %v1148
      %v1150 = vrot.slane %v1149, 1
      %v1151 = vadd.f32 %v1149, %v1150
      %v1152 = vrot.slane %v896, 4
      %v1153 = vadd.f32 %v896, %v1152
      %v1154 = vrot.slane %v1153, 2
      %v1155 = vadd.f32 %v1153, %v1154
      %v1156 = vrot.slane %v1155, 1
      %v1157 = vadd.f32 %v1155, %v1156
      %v1158 = vrot.slane %v897, 4
      %v1159 = vadd.f32 %v897, %v1158
      %v1160 = vrot.slane %v1159, 2
      %v1161 = vadd.f32 %v1159, %v1160
      %v1162 = vrot.slane %v1161, 1
      %v1163 = vadd.f32 %v1161, %v1162
      %v1164 = vrot.slane %v898, 4
      %v1165 = vadd.f32 %v898, %v1164
      %v1166 = vrot.slane %v1165, 2
      %v1167 = vadd.f32 %v1165, %v1166
      %v1168 = vrot.slane %v1167, 1
      %v1169 = vadd.f32 %v1167, %v1168
      %v1170 = vrot.slane %v899, 4
      %v1171 = vadd.f32 %v899, %v1170
      %v1172 = vrot.slane %v1171, 2
      %v1173 = vadd.f32 %v1171, %v1172
      %v1174 = vrot.slane %v1173, 1
      %v1175 = vadd.f32 %v1173, %v1174
      %v1176 = vrot.slane %v900, 4
      %v1177 = vadd.f32 %v900, %v1176
      %v1178 = vrot.slane %v1177, 2
      %v1179 = vadd.f32 %v1177, %v1178
      %v1180 = vrot.slane %v1179, 1
      %v1181 = vadd.f32 %v1179, %v1180
      %v1182 = vrot.slane %v901, 4
      %v1183 = vadd.f32 %v901, %v1182
      %v1184 = vrot.slane %v1183, 2
      %v1185 = vadd.f32 %v1183, %v1184
      %v1186 = vrot.slane %v1185, 1
      %v1187 = vadd.f32 %v1185, %v1186
      %v1188 = vadd.f32 %v62, %v1001
      %v1189 = vadd.f32 %v63, %v1007
      %v1190 = vadd.f32 %v64, %v1013
      %v1191 = vadd.f32 %v65, %v1019
      %v1192 = vadd.f32 %v66, %v1025
      %v1193 = vadd.f32 %v67, %v1031
      %v1194 = vadd.f32 %v68, %v1037
      %v1195 = vadd.f32 %v69, %v1043
      %v1196 = vadd.f32 %v70, %v1049
      %v1197 = vadd.f32 %v71, %v1055
      %v1198 = vadd.f32 %v72, %v1061
      %v1199 = vadd.f32 %v73, %v1067
      %v1200 = vadd.f32 %v74, %v1073
      %v1201 = vadd.f32 %v75, %v1079
      %v1202 = vadd.f32 %v76, %v1085
      %v1203 = vadd.f32 %v77, %v1091
      %v1204 = vadd.f32 %v78, %v1097
      %v1205 = vadd.f32 %v79, %v1103
      %v1206 = vadd.f32 %v80, %v1109
      %v1207 = vadd.f32 %v81, %v1115
      %v1208 = vadd.f32 %v82, %v1121
      %v1209 = vadd.f32 %v83, %v1127
      %v1210 = vadd.f32 %v84, %v1133
      %v1211 = vadd.f32 %v85, %v1139
      %v1212 = vadd.f32 %v86, %v1145
      %v1213 = vadd.f32 %v87, %v1151
      %v1214 = vadd.f32 %v88, %v1157
      %v1215 = vadd.f32 %v89, %v1163
      %v1216 = vadd.f32 %v90, %v1169
      %v1217 = vadd.f32 %v91, %v1175
      %v1218 = vadd.f32 %v92, %v1181
      %v1219 = vadd.f32 %v93, %v1187
      %v1220 = vmul.f32 %v870, %v993
      %v1221 = vmul.f32 %v871, %v993
      %v1222 = vmul.f32 %v872, %v993
      %v1223 = vmul.f32 %v873, %v993
      %v1224 = vmul.f32 %v874, %v993
      %v1225 = vmul.f32 %v875, %v993
      %v1226 = vmul.f32 %v876, %v993
      %v1227 = vmul.f32 %v877, %v993
      %v1228 = vmul.f32 %v878, %v993
      %v1229 = vmul.f32 %v879, %v993
      %v1230 = vmul.f32 %v880, %v993
      %v1231 = vmul.f32 %v881, %v993
      %v1232 = vmul.f32 %v882, %v993
      %v1233 = vmul.f32 %v883, %v993
      %v1234 = vmul.f32 %v884, %v993
      %v1235 = vmul.f32 %v885, %v993
      %v1236 = vmul.f32 %v886, %v995
      %v1237 = vmul.f32 %v887, %v995
      %v1238 = vmul.f32 %v888, %v995
      %v1239 = vmul.f32 %v889, %v995
      %v1240 = vmul.f32 %v890, %v995
      %v1241 = vmul.f32 %v891, %v995
      %v1242 = vmul.f32 %v892, %v995
      %v1243 = vmul.f32 %v893, %v995
      %v1244 = vmul.f32 %v894, %v995
      %v1245 = vmul.f32 %v895, %v995
      %v1246 = vmul.f32 %v896, %v995
      %v1247 = vmul.f32 %v897, %v995
      %v1248 = vmul.f32 %v898, %v995
      %v1249 = vmul.f32 %v899, %v995
      %v1250 = vmul.f32 %v900, %v995
      %v1251 = vmul.f32 %v901, %v995
      %v1252 = vrot.slane %v1220, 4
      %v1253 = vadd.f32 %v1220, %v1252
      %v1254 = vrot.slane %v1253, 2
      %v1255 = vadd.f32 %v1253, %v1254
      %v1256 = vrot.slane %v1255, 1
      %v1257 = vadd.f32 %v1255, %v1256
      %v1258 = vrot.slane %v1221, 4
      %v1259 = vadd.f32 %v1221, %v1258
      %v1260 = vrot.slane %v1259, 2
      %v1261 = vadd.f32 %v1259, %v1260
      %v1262 = vrot.slane %v1261, 1
      %v1263 = vadd.f32 %v1261, %v1262
      %v1264 = vrot.slane %v1222, 4
      %v1265 = vadd.f32 %v1222, %v1264
      %v1266 = vrot.slane %v1265, 2
      %v1267 = vadd.f32 %v1265, %v1266
      %v1268 = vrot.slane %v1267, 1
      %v1269 = vadd.f32 %v1267, %v1268
      %v1270 = vrot.slane %v1223, 4
      %v1271 = vadd.f32 %v1223, %v1270
      %v1272 = vrot.slane %v1271, 2
      %v1273 = vadd.f32 %v1271, %v1272
      %v1274 = vrot.slane %v1273, 1
      %v1275 = vadd.f32 %v1273, %v1274
      %v1276 = vrot.slane %v1224, 4
      %v1277 = vadd.f32 %v1224, %v1276
      %v1278 = vrot.slane %v1277, 2
      %v1279 = vadd.f32 %v1277, %v1278
      %v1280 = vrot.slane %v1279, 1
      %v1281 = vadd.f32 %v1279, %v1280
      %v1282 = vrot.slane %v1225, 4
      %v1283 = vadd.f32 %v1225, %v1282
      %v1284 = vrot.slane %v1283, 2
      %v1285 = vadd.f32 %v1283, %v1284
      %v1286 = vrot.slane %v1285, 1
      %v1287 = vadd.f32 %v1285, %v1286
      %v1288 = vrot.slane %v1226, 4
      %v1289 = vadd.f32 %v1226, %v1288
      %v1290 = vrot.slane %v1289, 2
      %v1291 = vadd.f32 %v1289, %v1290
      %v1292 = vrot.slane %v1291, 1
      %v1293 = vadd.f32 %v1291, %v1292
      %v1294 = vrot.slane %v1227, 4
      %v1295 = vadd.f32 %v1227, %v1294
      %v1296 = vrot.slane %v1295, 2
      %v1297 = vadd.f32 %v1295, %v1296
      %v1298 = vrot.slane %v1297, 1
      %v1299 = vadd.f32 %v1297, %v1298
      %v1300 = vrot.slane %v1228, 4
      %v1301 = vadd.f32 %v1228, %v1300
      %v1302 = vrot.slane %v1301, 2
      %v1303 = vadd.f32 %v1301, %v1302
      %v1304 = vrot.slane %v1303, 1
      %v1305 = vadd.f32 %v1303, %v1304
      %v1306 = vrot.slane %v1229, 4
      %v1307 = vadd.f32 %v1229, %v1306
      %v1308 = vrot.slane %v1307, 2
      %v1309 = vadd.f32 %v1307, %v1308
      %v1310 = vrot.slane %v1309, 1
      %v1311 = vadd.f32 %v1309, %v1310
      %v1312 = vrot.slane %v1230, 4
      %v1313 = vadd.f32 %v1230, %v1312
      %v1314 = vrot.slane %v1313, 2
      %v1315 = vadd.f32 %v1313, %v1314
      %v1316 = vrot.slane %v1315, 1
      %v1317 = vadd.f32 %v1315, %v1316
      %v1318 = vrot.slane %v1231, 4
      %v1319 = vadd.f32 %v1231, %v1318
      %v1320 = vrot.slane %v1319, 2
      %v1321 = vadd.f32 %v1319, %v1320
      %v1322 = vrot.slane %v1321, 1
      %v1323 = vadd.f32 %v1321, %v1322
      %v1324 = vrot.slane %v1232, 4
      %v1325 = vadd.f32 %v1232, %v1324
      %v1326 = vrot.slane %v1325, 2
      %v1327 = vadd.f32 %v1325, %v1326
      %v1328 = vrot.slane %v1327, 1
      %v1329 = vadd.f32 %v1327, %v1328
      %v1330 = vrot.slane %v1233, 4
      %v1331 = vadd.f32 %v1233, %v1330
      %v1332 = vrot.slane %v1331, 2
      %v1333 = vadd.f32 %v1331, %v1332
      %v1334 = vrot.slane %v1333, 1
      %v1335 = vadd.f32 %v1333, %v1334
      %v1336 = vrot.slane %v1234, 4
      %v1337 = vadd.f32 %v1234, %v1336
      %v1338 = vrot.slane %v1337, 2
      %v1339 = vadd.f32 %v1337, %v1338
      %v1340 = vrot.slane %v1339, 1
      %v1341 = vadd.f32 %v1339, %v1340
      %v1342 = vrot.slane %v1235, 4
      %v1343 = vadd.f32 %v1235, %v1342
      %v1344 = vrot.slane %v1343, 2
      %v1345 = vadd.f32 %v1343, %v1344
      %v1346 = vrot.slane %v1345, 1
      %v1347 = vadd.f32 %v1345, %v1346
      %v1348 = vrot.slane %v1236, 4
      %v1349 = vadd.f32 %v1236, %v1348
      %v1350 = vrot.slane %v1349, 2
      %v1351 = vadd.f32 %v1349, %v1350
      %v1352 = vrot.slane %v1351, 1
      %v1353 = vadd.f32 %v1351, %v1352
      %v1354 = vrot.slane %v1237, 4
      %v1355 = vadd.f32 %v1237, %v1354
      %v1356 = vrot.slane %v1355, 2
      %v1357 = vadd.f32 %v1355, %v1356
      %v1358 = vrot.slane %v1357, 1
      %v1359 = vadd.f32 %v1357, %v1358
      %v1360 = vrot.slane %v1238, 4
      %v1361 = vadd.f32 %v1238, %v1360
      %v1362 = vrot.slane %v1361, 2
      %v1363 = vadd.f32 %v1361, %v1362
      %v1364 = vrot.slane %v1363, 1
      %v1365 = vadd.f32 %v1363, %v1364
      %v1366 = vrot.slane %v1239, 4
      %v1367 = vadd.f32 %v1239, %v1366
      %v1368 = vrot.slane %v1367, 2
      %v1369 = vadd.f32 %v1367, %v1368
      %v1370 = vrot.slane %v1369, 1
      %v1371 = vadd.f32 %v1369, %v1370
      %v1372 = vrot.slane %v1240, 4
      %v1373 = vadd.f32 %v1240, %v1372
      %v1374 = vrot.slane %v1373, 2
      %v1375 = vadd.f32 %v1373, %v1374
      %v1376 = vrot.slane %v1375, 1
      %v1377 = vadd.f32 %v1375, %v1376
      %v1378 = vrot.slane %v1241, 4
      %v1379 = vadd.f32 %v1241, %v1378
      %v1380 = vrot.slane %v1379, 2
      %v1381 = vadd.f32 %v1379, %v1380
      %v1382 = vrot.slane %v1381, 1
      %v1383 = vadd.f32 %v1381, %v1382
      %v1384 = vrot.slane %v1242, 4
      %v1385 = vadd.f32 %v1242, %v1384
      %v1386 = vrot.slane %v1385, 2
      %v1387 = vadd.f32 %v1385, %v1386
      %v1388 = vrot.slane %v1387, 1
      %v1389 = vadd.f32 %v1387, %v1388
      %v1390 = vrot.slane %v1243, 4
      %v1391 = vadd.f32 %v1243, %v1390
      %v1392 = vrot.slane %v1391, 2
      %v1393 = vadd.f32 %v1391, %v1392
      %v1394 = vrot.slane %v1393, 1
      %v1395 = vadd.f32 %v1393, %v1394
      %v1396 = vrot.slane %v1244, 4
      %v1397 = vadd.f32 %v1244, %v1396
      %v1398 = vrot.slane %v1397, 2
      %v1399 = vadd.f32 %v1397, %v1398
      %v1400 = vrot.slane %v1399, 1
      %v1401 = vadd.f32 %v1399, %v1400
      %v1402 = vrot.slane %v1245, 4
      %v1403 = vadd.f32 %v1245, %v1402
      %v1404 = vrot.slane %v1403, 2
      %v1405 = vadd.f32 %v1403, %v1404
      %v1406 = vrot.slane %v1405, 1
      %v1407 = vadd.f32 %v1405, %v1406
      %v1408 = vrot.slane %v1246, 4
      %v1409 = vadd.f32 %v1246, %v1408
      %v1410 = vrot.slane %v1409, 2
      %v1411 = vadd.f32 %v1409, %v1410
      %v1412 = vrot.slane %v1411, 1
      %v1413 = vadd.f32 %v1411, %v1412
      %v1414 = vrot.slane %v1247, 4
      %v1415 = vadd.f32 %v1247, %v1414
      %v1416 = vrot.slane %v1415, 2
      %v1417 = vadd.f32 %v1415, %v1416
      %v1418 = vrot.slane %v1417, 1
      %v1419 = vadd.f32 %v1417, %v1418
      %v1420 = vrot.slane %v1248, 4
      %v1421 = vadd.f32 %v1248, %v1420
      %v1422 = vrot.slane %v1421, 2
      %v1423 = vadd.f32 %v1421, %v1422
      %v1424 = vrot.slane %v1423, 1
      %v1425 = vadd.f32 %v1423, %v1424
      %v1426 = vrot.slane %v1249, 4
      %v1427 = vadd.f32 %v1249, %v1426
      %v1428 = vrot.slane %v1427, 2
      %v1429 = vadd.f32 %v1427, %v1428
      %v1430 = vrot.slane %v1429, 1
      %v1431 = vadd.f32 %v1429, %v1430
      %v1432 = vrot.slane %v1250, 4
      %v1433 = vadd.f32 %v1250, %v1432
      %v1434 = vrot.slane %v1433, 2
      %v1435 = vadd.f32 %v1433, %v1434
      %v1436 = vrot.slane %v1435, 1
      %v1437 = vadd.f32 %v1435, %v1436
      %v1438 = vrot.slane %v1251, 4
      %v1439 = vadd.f32 %v1251, %v1438
      %v1440 = vrot.slane %v1439, 2
      %v1441 = vadd.f32 %v1439, %v1440
      %v1442 = vrot.slane %v1441, 1
      %v1443 = vadd.f32 %v1441, %v1442
      %v1444 = vadd.f32 %v94, %v1257
      %v1445 = vadd.f32 %v95, %v1263
      %v1446 = vadd.f32 %v96, %v1269
      %v1447 = vadd.f32 %v97, %v1275
      %v1448 = vadd.f32 %v98, %v1281
      %v1449 = vadd.f32 %v99, %v1287
      %v1450 = vadd.f32 %v100, %v1293
      %v1451 = vadd.f32 %v101, %v1299
      %v1452 = vadd.f32 %v102, %v1305
      %v1453 = vadd.f32 %v103, %v1311
      %v1454 = vadd.f32 %v104, %v1317
      %v1455 = vadd.f32 %v105, %v1323
      %v1456 = vadd.f32 %v106, %v1329
      %v1457 = vadd.f32 %v107, %v1335
      %v1458 = vadd.f32 %v108, %v1341
      %v1459 = vadd.f32 %v109, %v1347
      %v1460 = vadd.f32 %v110, %v1353
      %v1461 = vadd.f32 %v111, %v1359
      %v1462 = vadd.f32 %v112, %v1365
      %v1463 = vadd.f32 %v113, %v1371
      %v1464 = vadd.f32 %v114, %v1377
      %v1465 = vadd.f32 %v115, %v1383
      %v1466 = vadd.f32 %v116, %v1389
      %v1467 = vadd.f32 %v117, %v1395
      %v1468 = vadd.f32 %v118, %v1401
      %v1469 = vadd.f32 %v119, %v1407
      %v1470 = vadd.f32 %v120, %v1413
      %v1471 = vadd.f32 %v121, %v1419
      %v1472 = vadd.f32 %v122, %v1425
      %v1473 = vadd.f32 %v123, %v1431
      %v1474 = vadd.f32 %v124, %v1437
      %v1475 = vadd.f32 %v125, %v1443
    $region42: #{face_fake_net_forward.1} parent=1 // loop_footer
      %s61 = sadd.s32 1, %s57
    $region43: #{face_fake_net_forward.1} parent=1 // loop_footer_branch
      %56 = sbr.rel target = $region39
    $region44: #{face_fake_net_forward.1} parent=1 // loop_exit
      _
    %v1476 = vmul.f32 %v62, 0.00390625
    %v1477 = vmul.f32 %v63, 0.00390625
    %v1478 = vmul.f32 %v64, 0.00390625
    %v1479 = vmul.f32 %v65, 0.00390625
    %v1480 = vmul.f32 %v66, 0.00390625
    %v1481 = vmul.f32 %v67, 0.00390625
    %v1482 = vmul.f32 %v68, 0.00390625
    %v1483 = vmul.f32 %v69, 0.00390625
    %v1484 = vmul.f32 %v70, 0.00390625
    %v1485 = vmul.f32 %v71, 0.00390625
    %v1486 = vmul.f32 %v72, 0.00390625
    %v1487 = vmul.f32 %v73, 0.00390625
    %v1488 = vmul.f32 %v74, 0.00390625
    %v1489 = vmul.f32 %v75, 0.00390625
    %v1490 = vmul.f32 %v76, 0.00390625
    %v1491 = vmul.f32 %v77, 0.00390625
    %v1492 = vmul.f32 %v78, 0.00390625
    %v1493 = vmul.f32 %v79, 0.00390625
    %v1494 = vmul.f32 %v80, 0.00390625
    %v1495 = vmul.f32 %v81, 0.00390625
    %v1496 = vmul.f32 %v82, 0.00390625
    %v1497 = vmul.f32 %v83, 0.00390625
    %v1498 = vmul.f32 %v84, 0.00390625
    %v1499 = vmul.f32 %v85, 0.00390625
    %v1500 = vmul.f32 %v86, 0.00390625
    %v1501 = vmul.f32 %v87, 0.00390625
    %v1502 = vmul.f32 %v88, 0.00390625
    %v1503 = vmul.f32 %v89, 0.00390625
    %v1504 = vmul.f32 %v90, 0.00390625
    %v1505 = vmul.f32 %v91, 0.00390625
    %v1506 = vmul.f32 %v92, 0.00390625
    %v1507 = vmul.f32 %v93, 0.00390625
    %v1508 = vmul.f32 %v94, 0.00390625
    %v1509 = vmul.f32 %v95, 0.00390625
    %v1510 = vmul.f32 %v96, 0.00390625
    %v1511 = vmul.f32 %v97, 0.00390625
    %v1512 = vmul.f32 %v98, 0.00390625
    %v1513 = vmul.f32 %v99, 0.00390625
    %v1514 = vmul.f32 %v100, 0.00390625
    %v1515 = vmul.f32 %v101, 0.00390625
    %v1516 = vmul.f32 %v102, 0.00390625
    %v1517 = vmul.f32 %v103, 0.00390625
    %v1518 = vmul.f32 %v104, 0.00390625
    %v1519 = vmul.f32 %v105, 0.00390625
    %v1520 = vmul.f32 %v106, 0.00390625
    %v1521 = vmul.f32 %v107, 0.00390625
    %v1522 = vmul.f32 %v108, 0.00390625
    %v1523 = vmul.f32 %v109, 0.00390625
    %v1524 = vmul.f32 %v110, 0.00390625
    %v1525 = vmul.f32 %v111, 0.00390625
    %v1526 = vmul.f32 %v112, 0.00390625
    %v1527 = vmul.f32 %v113, 0.00390625
    %v1528 = vmul.f32 %v114, 0.00390625
    %v1529 = vmul.f32 %v115, 0.00390625
    %v1530 = vmul.f32 %v116, 0.00390625
    %v1531 = vmul.f32 %v117, 0.00390625
    %v1532 = vmul.f32 %v118, 0.00390625
    %v1533 = vmul.f32 %v119, 0.00390625
    %v1534 = vmul.f32 %v120, 0.00390625
    %v1535 = vmul.f32 %v121, 0.00390625
    %v1536 = vmul.f32 %v122, 0.00390625
    %v1537 = vmul.f32 %v123, 0.00390625
    %v1538 = vmul.f32 %v124, 0.00390625
    %v1539 = vmul.f32 %v125, 0.00390625
    %v1540 = vpack.c.bf16 %v1476, %v1476
    %v1541 = vpack.c.bf16 %v1477, %v1477
    %v1542 = vpack.c.bf16 %v1478, %v1478
    %v1543 = vpack.c.bf16 %v1479, %v1479
    %v1544 = vpack.c.bf16 %v1480, %v1480
    %v1545 = vpack.c.bf16 %v1481, %v1481
    %v1546 = vpack.c.bf16 %v1482, %v1482
    %v1547 = vpack.c.bf16 %v1483, %v1483
    %v1548 = vpack.c.bf16 %v1484, %v1484
    %v1549 = vpack.c.bf16 %v1485, %v1485
    %v1550 = vpack.c.bf16 %v1486, %v1486
    %v1551 = vpack.c.bf16 %v1487, %v1487
    %v1552 = vpack.c.bf16 %v1488, %v1488
    %v1553 = vpack.c.bf16 %v1489, %v1489
    %v1554 = vpack.c.bf16 %v1490, %v1490
    %v1555 = vpack.c.bf16 %v1491, %v1491
    %v1556 = vpack.c.bf16 %v1492, %v1492
    %v1557 = vpack.c.bf16 %v1493, %v1493
    %v1558 = vpack.c.bf16 %v1494, %v1494
    %v1559 = vpack.c.bf16 %v1495, %v1495
    %v1560 = vpack.c.bf16 %v1496, %v1496
    %v1561 = vpack.c.bf16 %v1497, %v1497
    %v1562 = vpack.c.bf16 %v1498, %v1498
    %v1563 = vpack.c.bf16 %v1499, %v1499
    %v1564 = vpack.c.bf16 %v1500, %v1500
    %v1565 = vpack.c.bf16 %v1501, %v1501
    %v1566 = vpack.c.bf16 %v1502, %v1502
    %v1567 = vpack.c.bf16 %v1503, %v1503
    %v1568 = vpack.c.bf16 %v1504, %v1504
    %v1569 = vpack.c.bf16 %v1505, %v1505
    %v1570 = vpack.c.bf16 %v1506, %v1506
    %v1571 = vpack.c.bf16 %v1507, %v1507
    %v1572 = vld [vmem:[%s4] sm:$0xf]
    %v1573 = vld [vmem:[%s4 + $0x4] sm:$0xf]
    %v1574 = vld [vmem:[%s4 + $0x8] sm:$0xf]
    %v1575 = vld [vmem:[%s4 + $0xc] sm:$0xf]
    %v1576 = vld [vmem:[%s4 + $0x10] sm:$0xf]
    %v1577 = vld [vmem:[%s4 + $0x14] sm:$0xf]
    %v1578 = vld [vmem:[%s4 + $0x18] sm:$0xf]
    %v1579 = vld [vmem:[%s4 + $0x1c] sm:$0xf]
    %v1580 = vld [vmem:[%s4 + $0x20] sm:$0xf]
    %v1581 = vld [vmem:[%s4 + $0x24] sm:$0xf]
    %v1582 = vld [vmem:[%s4 + $0x28] sm:$0xf]
    %v1583 = vld [vmem:[%s4 + $0x2c] sm:$0xf]
    %v1584 = vld [vmem:[%s4 + $0x30] sm:$0xf]
    %v1585 = vld [vmem:[%s4 + $0x34] sm:$0xf]
    %v1586 = vld [vmem:[%s4 + $0x38] sm:$0xf]
    %v1587 = vld [vmem:[%s4 + $0x3c] sm:$0xf]
    %v1588 = vld [vmem:[%s4 + $0x40] sm:$0xf]
    %v1589 = vld [vmem:[%s4 + $0x44] sm:$0xf]
    %v1590 = vld [vmem:[%s4 + $0x48] sm:$0xf]
    %v1591 = vld [vmem:[%s4 + $0x4c] sm:$0xf]
    %v1592 = vld [vmem:[%s4 + $0x50] sm:$0xf]
    %v1593 = vld [vmem:[%s4 + $0x54] sm:$0xf]
    %v1594 = vld [vmem:[%s4 + $0x58] sm:$0xf]
    %v1595 = vld [vmem:[%s4 + $0x5c] sm:$0xf]
    %v1596 = vld [vmem:[%s4 + $0x60] sm:$0xf]
    %v1597 = vld [vmem:[%s4 + $0x64] sm:$0xf]
    %v1598 = vld [vmem:[%s4 + $0x68] sm:$0xf]
    %v1599 = vld [vmem:[%s4 + $0x6c] sm:$0xf]
    %v1600 = vld [vmem:[%s4 + $0x70] sm:$0xf]
    %v1601 = vld [vmem:[%s4 + $0x74] sm:$0xf]
    %v1602 = vld [vmem:[%s4 + $0x78] sm:$0xf]
    %v1603 = vld [vmem:[%s4 + $0x7c] sm:$0xf]
    %v1604 = vld [vmem:[%s4 + $0x80] sm:$0xf]
    %v1605 = vld [vmem:[%s4 + $0x84] sm:$0xf]
    %v1606 = vld [vmem:[%s4 + $0x88] sm:$0xf]
    %v1607 = vld [vmem:[%s4 + $0x8c] sm:$0xf]
    %v1608 = vld [vmem:[%s4 + $0x90] sm:$0xf]
    %v1609 = vld [vmem:[%s4 + $0x94] sm:$0xf]
    %v1610 = vld [vmem:[%s4 + $0x98] sm:$0xf]
    %v1611 = vld [vmem:[%s4 + $0x9c] sm:$0xf]
    %v1612 = vld [vmem:[%s4 + $0xa0] sm:$0xf]
    %v1613 = vld [vmem:[%s4 + $0xa4] sm:$0xf]
    %v1614 = vld [vmem:[%s4 + $0xa8] sm:$0xf]
    %v1615 = vld [vmem:[%s4 + $0xac] sm:$0xf]
    %v1616 = vld [vmem:[%s4 + $0xb0] sm:$0xf]
    %v1617 = vld [vmem:[%s4 + $0xb4] sm:$0xf]
    %v1618 = vld [vmem:[%s4 + $0xb8] sm:$0xf]
    %v1619 = vld [vmem:[%s4 + $0xbc] sm:$0xf]
    %v1620 = vld [vmem:[%s4 + $0xc0] sm:$0xf]
    %v1621 = vld [vmem:[%s4 + $0xc4] sm:$0xf]
    %v1622 = vld [vmem:[%s4 + $0xc8] sm:$0xf]
    %v1623 = vld [vmem:[%s4 + $0xcc] sm:$0xf]
    %v1624 = vld [vmem:[%s4 + $0xd0] sm:$0xf]
    %v1625 = vld [vmem:[%s4 + $0xd4] sm:$0xf]
    %v1626 = vld [vmem:[%s4 + $0xd8] sm:$0xf]
    %v1627 = vld [vmem:[%s4 + $0xdc] sm:$0xf]
    %v1628 = vld [vmem:[%s4 + $0xe0] sm:$0xf]
    %v1629 = vld [vmem:[%s4 + $0xe4] sm:$0xf]
    %v1630 = vld [vmem:[%s4 + $0xe8] sm:$0xf]
    %v1631 = vld [vmem:[%s4 + $0xec] sm:$0xf]
    %v1632 = vld [vmem:[%s4 + $0xf0] sm:$0xf]
    %v1633 = vld [vmem:[%s4 + $0xf4] sm:$0xf]
    %v1634 = vld [vmem:[%s4 + $0xf8] sm:$0xf]
    %v1635 = vld [vmem:[%s4 + $0xfc] sm:$0xf]
    %v1636 = vld [vmem:[%s4 + $0x100] sm:$0xf]
    %v1637 = vld [vmem:[%s4 + $0x104] sm:$0xf]
    %v1638 = vld [vmem:[%s4 + $0x108] sm:$0xf]
    %v1639 = vld [vmem:[%s4 + $0x10c] sm:$0xf]
    %v1640 = vld [vmem:[%s4 + $0x110] sm:$0xf]
    %v1641 = vld [vmem:[%s4 + $0x114] sm:$0xf]
    %v1642 = vld [vmem:[%s4 + $0x118] sm:$0xf]
    %v1643 = vld [vmem:[%s4 + $0x11c] sm:$0xf]
    %v1644 = vld [vmem:[%s4 + $0x120] sm:$0xf]
    %v1645 = vld [vmem:[%s4 + $0x124] sm:$0xf]
    %v1646 = vld [vmem:[%s4 + $0x128] sm:$0xf]
    %v1647 = vld [vmem:[%s4 + $0x12c] sm:$0xf]
    %v1648 = vld [vmem:[%s4 + $0x130] sm:$0xf]
    %v1649 = vld [vmem:[%s4 + $0x134] sm:$0xf]
    %v1650 = vld [vmem:[%s4 + $0x138] sm:$0xf]
    %v1651 = vld [vmem:[%s4 + $0x13c] sm:$0xf]
    %v1652 = vld [vmem:[%s4 + $0x140] sm:$0xf]
    %v1653 = vld [vmem:[%s4 + $0x144] sm:$0xf]
    %v1654 = vld [vmem:[%s4 + $0x148] sm:$0xf]
    %v1655 = vld [vmem:[%s4 + $0x14c] sm:$0xf]
    %v1656 = vld [vmem:[%s4 + $0x150] sm:$0xf]
    %v1657 = vld [vmem:[%s4 + $0x154] sm:$0xf]
    %v1658 = vld [vmem:[%s4 + $0x158] sm:$0xf]
    %v1659 = vld [vmem:[%s4 + $0x15c] sm:$0xf]
    %v1660 = vld [vmem:[%s4 + $0x160] sm:$0xf]
    %v1661 = vld [vmem:[%s4 + $0x164] sm:$0xf]
    %v1662 = vld [vmem:[%s4 + $0x168] sm:$0xf]
    %v1663 = vld [vmem:[%s4 + $0x16c] sm:$0xf]
    %v1664 = vld [vmem:[%s4 + $0x170] sm:$0xf]
    %v1665 = vld [vmem:[%s4 + $0x174] sm:$0xf]
    %v1666 = vld [vmem:[%s4 + $0x178] sm:$0xf]
    %v1667 = vld [vmem:[%s4 + $0x17c] sm:$0xf]
    %v1668 = vld [vmem:[%s4 + $0x180] sm:$0xf]
    %v1669 = vld [vmem:[%s4 + $0x184] sm:$0xf]
    %v1670 = vld [vmem:[%s4 + $0x188] sm:$0xf]
    %v1671 = vld [vmem:[%s4 + $0x18c] sm:$0xf]
    %v1672 = vld [vmem:[%s4 + $0x190] sm:$0xf]
    %v1673 = vld [vmem:[%s4 + $0x194] sm:$0xf]
    %v1674 = vld [vmem:[%s4 + $0x198] sm:$0xf]
    %v1675 = vld [vmem:[%s4 + $0x19c] sm:$0xf]
    %v1676 = vld [vmem:[%s4 + $0x1a0] sm:$0xf]
    %v1677 = vld [vmem:[%s4 + $0x1a4] sm:$0xf]
    %v1678 = vld [vmem:[%s4 + $0x1a8] sm:$0xf]
    %v1679 = vld [vmem:[%s4 + $0x1ac] sm:$0xf]
    %v1680 = vld [vmem:[%s4 + $0x1b0] sm:$0xf]
    %v1681 = vld [vmem:[%s4 + $0x1b4] sm:$0xf]
    %v1682 = vld [vmem:[%s4 + $0x1b8] sm:$0xf]
    %v1683 = vld [vmem:[%s4 + $0x1bc] sm:$0xf]
    %v1684 = vld [vmem:[%s4 + $0x1c0] sm:$0xf]
    %v1685 = vld [vmem:[%s4 + $0x1c4] sm:$0xf]
    %v1686 = vld [vmem:[%s4 + $0x1c8] sm:$0xf]
    %v1687 = vld [vmem:[%s4 + $0x1cc] sm:$0xf]
    %v1688 = vld [vmem:[%s4 + $0x1d0] sm:$0xf]
    %v1689 = vld [vmem:[%s4 + $0x1d4] sm:$0xf]
    %v1690 = vld [vmem:[%s4 + $0x1d8] sm:$0xf]
    %v1691 = vld [vmem:[%s4 + $0x1dc] sm:$0xf]
    %v1692 = vld [vmem:[%s4 + $0x1e0] sm:$0xf]
    %v1693 = vld [vmem:[%s4 + $0x1e4] sm:$0xf]
    %v1694 = vld [vmem:[%s4 + $0x1e8] sm:$0xf]
    %v1695 = vld [vmem:[%s4 + $0x1ec] sm:$0xf]
    %v1696 = vld [vmem:[%s4 + $0x1f0] sm:$0xf]
    %v1697 = vld [vmem:[%s4 + $0x1f4] sm:$0xf]
    %v1698 = vld [vmem:[%s4 + $0x1f8] sm:$0xf]
    %v1699 = vld [vmem:[%s4 + $0x1fc] sm:$0xf]
    %v1700 = vld [vmem:[%s4 + $0x200] sm:$0xf]
    %v1701 = vld [vmem:[%s4 + $0x204] sm:$0xf]
    %v1702 = vld [vmem:[%s4 + $0x208] sm:$0xf]
    %v1703 = vld [vmem:[%s4 + $0x20c] sm:$0xf]
    %v1704 = vld [vmem:[%s4 + $0x210] sm:$0xf]
    %v1705 = vld [vmem:[%s4 + $0x214] sm:$0xf]
    %v1706 = vld [vmem:[%s4 + $0x218] sm:$0xf]
    %v1707 = vld [vmem:[%s4 + $0x21c] sm:$0xf]
    %v1708 = vld [vmem:[%s4 + $0x220] sm:$0xf]
    %v1709 = vld [vmem:[%s4 + $0x224] sm:$0xf]
    %v1710 = vld [vmem:[%s4 + $0x228] sm:$0xf]
    %v1711 = vld [vmem:[%s4 + $0x22c] sm:$0xf]
    %v1712 = vld [vmem:[%s4 + $0x230] sm:$0xf]
    %v1713 = vld [vmem:[%s4 + $0x234] sm:$0xf]
    %v1714 = vld [vmem:[%s4 + $0x238] sm:$0xf]
    %v1715 = vld [vmem:[%s4 + $0x23c] sm:$0xf]
    %v1716 = vld [vmem:[%s4 + $0x240] sm:$0xf]
    %v1717 = vld [vmem:[%s4 + $0x244] sm:$0xf]
    %v1718 = vld [vmem:[%s4 + $0x248] sm:$0xf]
    %v1719 = vld [vmem:[%s4 + $0x24c] sm:$0xf]
    %v1720 = vld [vmem:[%s4 + $0x250] sm:$0xf]
    %v1721 = vld [vmem:[%s4 + $0x254] sm:$0xf]
    %v1722 = vld [vmem:[%s4 + $0x258] sm:$0xf]
    %v1723 = vld [vmem:[%s4 + $0x25c] sm:$0xf]
    %v1724 = vld [vmem:[%s4 + $0x260] sm:$0xf]
    %v1725 = vld [vmem:[%s4 + $0x264] sm:$0xf]
    %v1726 = vld [vmem:[%s4 + $0x268] sm:$0xf]
    %v1727 = vld [vmem:[%s4 + $0x26c] sm:$0xf]
    %v1728 = vld [vmem:[%s4 + $0x270] sm:$0xf]
    %v1729 = vld [vmem:[%s4 + $0x274] sm:$0xf]
    %v1730 = vld [vmem:[%s4 + $0x278] sm:$0xf]
    %v1731 = vld [vmem:[%s4 + $0x27c] sm:$0xf]
    %v1732 = vld [vmem:[%s4 + $0x280] sm:$0xf]
    %v1733 = vld [vmem:[%s4 + $0x284] sm:$0xf]
    %v1734 = vld [vmem:[%s4 + $0x288] sm:$0xf]
    %v1735 = vld [vmem:[%s4 + $0x28c] sm:$0xf]
    %v1736 = vld [vmem:[%s4 + $0x290] sm:$0xf]
    %v1737 = vld [vmem:[%s4 + $0x294] sm:$0xf]
    %v1738 = vld [vmem:[%s4 + $0x298] sm:$0xf]
    %v1739 = vld [vmem:[%s4 + $0x29c] sm:$0xf]
    %v1740 = vld [vmem:[%s4 + $0x2a0] sm:$0xf]
    %v1741 = vld [vmem:[%s4 + $0x2a4] sm:$0xf]
    %v1742 = vld [vmem:[%s4 + $0x2a8] sm:$0xf]
    %v1743 = vld [vmem:[%s4 + $0x2ac] sm:$0xf]
    %v1744 = vld [vmem:[%s4 + $0x2b0] sm:$0xf]
    %v1745 = vld [vmem:[%s4 + $0x2b4] sm:$0xf]
    %v1746 = vld [vmem:[%s4 + $0x2b8] sm:$0xf]
    %v1747 = vld [vmem:[%s4 + $0x2bc] sm:$0xf]
    %v1748 = vld [vmem:[%s4 + $0x2c0] sm:$0xf]
    %v1749 = vld [vmem:[%s4 + $0x2c4] sm:$0xf]
    %v1750 = vld [vmem:[%s4 + $0x2c8] sm:$0xf]
    %v1751 = vld [vmem:[%s4 + $0x2cc] sm:$0xf]
    %v1752 = vld [vmem:[%s4 + $0x2d0] sm:$0xf]
    %v1753 = vld [vmem:[%s4 + $0x2d4] sm:$0xf]
    %v1754 = vld [vmem:[%s4 + $0x2d8] sm:$0xf]
    %v1755 = vld [vmem:[%s4 + $0x2dc] sm:$0xf]
    %v1756 = vld [vmem:[%s4 + $0x2e0] sm:$0xf]
    %v1757 = vld [vmem:[%s4 + $0x2e4] sm:$0xf]
    %v1758 = vld [vmem:[%s4 + $0x2e8] sm:$0xf]
    %v1759 = vld [vmem:[%s4 + $0x2ec] sm:$0xf]
    %v1760 = vld [vmem:[%s4 + $0x2f0] sm:$0xf]
    %v1761 = vld [vmem:[%s4 + $0x2f4] sm:$0xf]
    %v1762 = vld [vmem:[%s4 + $0x2f8] sm:$0xf]
    %v1763 = vld [vmem:[%s4 + $0x2fc] sm:$0xf]
    %v1764 = vld [vmem:[%s4 + $0x300] sm:$0xf]
    %v1765 = vld [vmem:[%s4 + $0x304] sm:$0xf]
    %v1766 = vld [vmem:[%s4 + $0x308] sm:$0xf]
    %v1767 = vld [vmem:[%s4 + $0x30c] sm:$0xf]
    %v1768 = vld [vmem:[%s4 + $0x310] sm:$0xf]
    %v1769 = vld [vmem:[%s4 + $0x314] sm:$0xf]
    %v1770 = vld [vmem:[%s4 + $0x318] sm:$0xf]
    %v1771 = vld [vmem:[%s4 + $0x31c] sm:$0xf]
    %v1772 = vld [vmem:[%s4 + $0x320] sm:$0xf]
    %v1773 = vld [vmem:[%s4 + $0x324] sm:$0xf]
    %v1774 = vld [vmem:[%s4 + $0x328] sm:$0xf]
    %v1775 = vld [vmem:[%s4 + $0x32c] sm:$0xf]
    %v1776 = vld [vmem:[%s4 + $0x330] sm:$0xf]
    %v1777 = vld [vmem:[%s4 + $0x334] sm:$0xf]
    %v1778 = vld [vmem:[%s4 + $0x338] sm:$0xf]
    %v1779 = vld [vmem:[%s4 + $0x33c] sm:$0xf]
    %v1780 = vld [vmem:[%s4 + $0x340] sm:$0xf]
    %v1781 = vld [vmem:[%s4 + $0x344] sm:$0xf]
    %v1782 = vld [vmem:[%s4 + $0x348] sm:$0xf]
    %v1783 = vld [vmem:[%s4 + $0x34c] sm:$0xf]
    %v1784 = vld [vmem:[%s4 + $0x350] sm:$0xf]
    %v1785 = vld [vmem:[%s4 + $0x354] sm:$0xf]
    %v1786 = vld [vmem:[%s4 + $0x358] sm:$0xf]
    %v1787 = vld [vmem:[%s4 + $0x35c] sm:$0xf]
    %v1788 = vld [vmem:[%s4 + $0x360] sm:$0xf]
    %v1789 = vld [vmem:[%s4 + $0x364] sm:$0xf]
    %v1790 = vld [vmem:[%s4 + $0x368] sm:$0xf]
    %v1791 = vld [vmem:[%s4 + $0x36c] sm:$0xf]
    %v1792 = vld [vmem:[%s4 + $0x370] sm:$0xf]
    %v1793 = vld [vmem:[%s4 + $0x374] sm:$0xf]
    %v1794 = vld [vmem:[%s4 + $0x378] sm:$0xf]
    %v1795 = vld [vmem:[%s4 + $0x37c] sm:$0xf]
    %v1796 = vld [vmem:[%s4 + $0x380] sm:$0xf]
    %v1797 = vld [vmem:[%s4 + $0x384] sm:$0xf]
    %v1798 = vld [vmem:[%s4 + $0x388] sm:$0xf]
    %v1799 = vld [vmem:[%s4 + $0x38c] sm:$0xf]
    %v1800 = vld [vmem:[%s4 + $0x390] sm:$0xf]
    %v1801 = vld [vmem:[%s4 + $0x394] sm:$0xf]
    %v1802 = vld [vmem:[%s4 + $0x398] sm:$0xf]
    %v1803 = vld [vmem:[%s4 + $0x39c] sm:$0xf]
    %v1804 = vld [vmem:[%s4 + $0x3a0] sm:$0xf]
    %v1805 = vld [vmem:[%s4 + $0x3a4] sm:$0xf]
    %v1806 = vld [vmem:[%s4 + $0x3a8] sm:$0xf]
    %v1807 = vld [vmem:[%s4 + $0x3ac] sm:$0xf]
    %v1808 = vld [vmem:[%s4 + $0x3b0] sm:$0xf]
    %v1809 = vld [vmem:[%s4 + $0x3b4] sm:$0xf]
    %v1810 = vld [vmem:[%s4 + $0x3b8] sm:$0xf]
    %v1811 = vld [vmem:[%s4 + $0x3bc] sm:$0xf]
    %v1812 = vld [vmem:[%s4 + $0x3c0] sm:$0xf]
    %v1813 = vld [vmem:[%s4 + $0x3c4] sm:$0xf]
    %v1814 = vld [vmem:[%s4 + $0x3c8] sm:$0xf]
    %v1815 = vld [vmem:[%s4 + $0x3cc] sm:$0xf]
    %v1816 = vld [vmem:[%s4 + $0x3d0] sm:$0xf]
    %v1817 = vld [vmem:[%s4 + $0x3d4] sm:$0xf]
    %v1818 = vld [vmem:[%s4 + $0x3d8] sm:$0xf]
    %v1819 = vld [vmem:[%s4 + $0x3dc] sm:$0xf]
    %v1820 = vld [vmem:[%s4 + $0x3e0] sm:$0xf]
    %v1821 = vld [vmem:[%s4 + $0x3e4] sm:$0xf]
    %v1822 = vld [vmem:[%s4 + $0x3e8] sm:$0xf]
    %v1823 = vld [vmem:[%s4 + $0x3ec] sm:$0xf]
    %v1824 = vld [vmem:[%s4 + $0x3f0] sm:$0xf]
    %v1825 = vld [vmem:[%s4 + $0x3f4] sm:$0xf]
    %v1826 = vld [vmem:[%s4 + $0x3f8] sm:$0xf]
    %v1827 = vld [vmem:[%s4 + $0x3fc] sm:$0xf]
    %v1828 = vld [vmem:[%s5] sm:$0x1]
    %v1830 = vlaneseq
    %v1831 = vshrl.u32 %v1830, 7
    %v1832 = vsub.s32 0, %v1831
    %v1833 = vrot.slane %v1828, %v1832
    %v1867 = vunpack.c.l.b16 %v1540
    %v1868 = vunpack.c.l.b16 %v1541
    %v1869 = vunpack.c.l.b16 %v1542
    %v1870 = vunpack.c.l.b16 %v1543
    %v1871 = vunpack.c.l.b16 %v1544
    %v1872 = vunpack.c.l.b16 %v1545
    %v1873 = vunpack.c.l.b16 %v1546
    %v1874 = vunpack.c.l.b16 %v1547
    %v1875 = vunpack.c.l.b16 %v1548
    %v1876 = vunpack.c.l.b16 %v1549
    %v1877 = vunpack.c.l.b16 %v1550
    %v1878 = vunpack.c.l.b16 %v1551
    %v1879 = vunpack.c.l.b16 %v1552
    %v1880 = vunpack.c.l.b16 %v1553
    %v1881 = vunpack.c.l.b16 %v1554
    %v1882 = vunpack.c.l.b16 %v1555
    %v1883 = vunpack.c.l.b16 %v1556
    %v1884 = vunpack.c.l.b16 %v1557
    %v1885 = vunpack.c.l.b16 %v1558
    %v1886 = vunpack.c.l.b16 %v1559
    %v1887 = vunpack.c.l.b16 %v1560
    %v1888 = vunpack.c.l.b16 %v1561
    %v1889 = vunpack.c.l.b16 %v1562
    %v1890 = vunpack.c.l.b16 %v1563
    %v1891 = vunpack.c.l.b16 %v1564
    %v1892 = vunpack.c.l.b16 %v1565
    %v1893 = vunpack.c.l.b16 %v1566
    %v1894 = vunpack.c.l.b16 %v1567
    %v1895 = vunpack.c.l.b16 %v1568
    %v1896 = vunpack.c.l.b16 %v1569
    %v1897 = vunpack.c.l.b16 %v1570
    %v1898 = vunpack.c.l.b16 %v1571
    %vm1899 = vcmask 1041409
    %v1900 = vsel %vm1899, %v1883, %v1867
    %v1901 = vsel %vm1899, %v1884, %v1868
    %v1902 = vsel %vm1899, %v1885, %v1869
    %v1903 = vsel %vm1899, %v1886, %v1870
    %v1904 = vsel %vm1899, %v1887, %v1871
    %v1905 = vsel %vm1899, %v1888, %v1872
    %v1906 = vsel %vm1899, %v1889, %v1873
    %v1907 = vsel %vm1899, %v1890, %v1874
    %v1908 = vsel %vm1899, %v1891, %v1875
    %v1909 = vsel %vm1899, %v1892, %v1876
    %v1910 = vsel %vm1899, %v1893, %v1877
    %v1911 = vsel %vm1899, %v1894, %v1878
    %v1912 = vsel %vm1899, %v1895, %v1879
    %v1913 = vsel %vm1899, %v1896, %v1880
    %v1914 = vsel %vm1899, %v1897, %v1881
    %v1915 = vsel %vm1899, %v1898, %v1882
    %v1916 = vpack.c.b16 %v1900, %v1900
    %v1917 = vpack.c.b16 %v1901, %v1901
    %v1918 = vpack.c.b16 %v1902, %v1902
    %v1919 = vpack.c.b16 %v1903, %v1903
    %v1920 = vpack.c.b16 %v1904, %v1904
    %v1921 = vpack.c.b16 %v1905, %v1905
    %v1922 = vpack.c.b16 %v1906, %v1906
    %v1923 = vpack.c.b16 %v1907, %v1907
    %v1924 = vpack.c.b16 %v1908, %v1908
    %v1925 = vpack.c.b16 %v1909, %v1909
    %v1926 = vpack.c.b16 %v1910, %v1910
    %v1927 = vpack.c.b16 %v1911, %v1911
    %v1928 = vpack.c.b16 %v1912, %v1912
    %v1929 = vpack.c.b16 %v1913, %v1913
    %v1930 = vpack.c.b16 %v1914, %v1914
    %v1931 = vpack.c.b16 %v1915, %v1915
    %v2204 = vunpack.c.l.b16 %v1572
    %v2205 = vunpack.c.l.b16 %v1573
    %v2206 = vunpack.c.l.b16 %v1574
    %v2207 = vunpack.c.l.b16 %v1575
    %v2208 = vunpack.c.l.b16 %v1576
    %v2209 = vunpack.c.l.b16 %v1577
    %v2210 = vunpack.c.l.b16 %v1578
    %v2211 = vunpack.c.l.b16 %v1579
    %v2212 = vunpack.c.l.b16 %v1580
    %v2213 = vunpack.c.l.b16 %v1581
    %v2214 = vunpack.c.l.b16 %v1582
    %v2215 = vunpack.c.l.b16 %v1583
    %v2216 = vunpack.c.l.b16 %v1584
    %v2217 = vunpack.c.l.b16 %v1585
    %v2218 = vunpack.c.l.b16 %v1586
    %v2219 = vunpack.c.l.b16 %v1587
    %v2220 = vunpack.c.l.b16 %v1588
    %v2221 = vunpack.c.l.b16 %v1589
    %v2222 = vunpack.c.l.b16 %v1590
    %v2223 = vunpack.c.l.b16 %v1591
    %v2224 = vunpack.c.l.b16 %v1592
    %v2225 = vunpack.c.l.b16 %v1593
    %v2226 = vunpack.c.l.b16 %v1594
    %v2227 = vunpack.c.l.b16 %v1595
    %v2228 = vunpack.c.l.b16 %v1596
    %v2229 = vunpack.c.l.b16 %v1597
    %v2230 = vunpack.c.l.b16 %v1598
    %v2231 = vunpack.c.l.b16 %v1599
    %v2232 = vunpack.c.l.b16 %v1600
    %v2233 = vunpack.c.l.b16 %v1601
    %v2234 = vunpack.c.l.b16 %v1602
    %v2235 = vunpack.c.l.b16 %v1603
    %v2236 = vunpack.c.l.b16 %v1604
    %v2237 = vunpack.c.l.b16 %v1605
    %v2238 = vunpack.c.l.b16 %v1606
    %v2239 = vunpack.c.l.b16 %v1607
    %v2240 = vunpack.c.l.b16 %v1608
    %v2241 = vunpack.c.l.b16 %v1609
    %v2242 = vunpack.c.l.b16 %v1610
    %v2243 = vunpack.c.l.b16 %v1611
    %v2244 = vunpack.c.l.b16 %v1612
    %v2245 = vunpack.c.l.b16 %v1613
    %v2246 = vunpack.c.l.b16 %v1614
    %v2247 = vunpack.c.l.b16 %v1615
    %v2248 = vunpack.c.l.b16 %v1616
    %v2249 = vunpack.c.l.b16 %v1617
    %v2250 = vunpack.c.l.b16 %v1618
    %v2251 = vunpack.c.l.b16 %v1619
    %v2252 = vunpack.c.l.b16 %v1620
    %v2253 = vunpack.c.l.b16 %v1621
    %v2254 = vunpack.c.l.b16 %v1622
    %v2255 = vunpack.c.l.b16 %v1623
    %v2256 = vunpack.c.l.b16 %v1624
    %v2257 = vunpack.c.l.b16 %v1625
    %v2258 = vunpack.c.l.b16 %v1626
    %v2259 = vunpack.c.l.b16 %v1627
    %v2260 = vunpack.c.l.b16 %v1628
    %v2261 = vunpack.c.l.b16 %v1629
    %v2262 = vunpack.c.l.b16 %v1630
    %v2263 = vunpack.c.l.b16 %v1631
    %v2264 = vunpack.c.l.b16 %v1632
    %v2265 = vunpack.c.l.b16 %v1633
    %v2266 = vunpack.c.l.b16 %v1634
    %v2267 = vunpack.c.l.b16 %v1635
    %v2268 = vunpack.c.l.b16 %v1636
    %v2269 = vunpack.c.l.b16 %v1637
    %v2270 = vunpack.c.l.b16 %v1638
    %v2271 = vunpack.c.l.b16 %v1639
    %v2272 = vunpack.c.l.b16 %v1640
    %v2273 = vunpack.c.l.b16 %v1641
    %v2274 = vunpack.c.l.b16 %v1642
    %v2275 = vunpack.c.l.b16 %v1643
    %v2276 = vunpack.c.l.b16 %v1644
    %v2277 = vunpack.c.l.b16 %v1645
    %v2278 = vunpack.c.l.b16 %v1646
    %v2279 = vunpack.c.l.b16 %v1647
    %v2280 = vunpack.c.l.b16 %v1648
    %v2281 = vunpack.c.l.b16 %v1649
    %v2282 = vunpack.c.l.b16 %v1650
    %v2283 = vunpack.c.l.b16 %v1651
    %v2284 = vunpack.c.l.b16 %v1652
    %v2285 = vunpack.c.l.b16 %v1653
    %v2286 = vunpack.c.l.b16 %v1654
    %v2287 = vunpack.c.l.b16 %v1655
    %v2288 = vunpack.c.l.b16 %v1656
    %v2289 = vunpack.c.l.b16 %v1657
    %v2290 = vunpack.c.l.b16 %v1658
    %v2291 = vunpack.c.l.b16 %v1659
    %v2292 = vunpack.c.l.b16 %v1660
    %v2293 = vunpack.c.l.b16 %v1661
    %v2294 = vunpack.c.l.b16 %v1662
    %v2295 = vunpack.c.l.b16 %v1663
    %v2296 = vunpack.c.l.b16 %v1664
    %v2297 = vunpack.c.l.b16 %v1665
    %v2298 = vunpack.c.l.b16 %v1666
    %v2299 = vunpack.c.l.b16 %v1667
    %v2300 = vunpack.c.l.b16 %v1668
    %v2301 = vunpack.c.l.b16 %v1669
    %v2302 = vunpack.c.l.b16 %v1670
    %v2303 = vunpack.c.l.b16 %v1671
    %v2304 = vunpack.c.l.b16 %v1672
    %v2305 = vunpack.c.l.b16 %v1673
    %v2306 = vunpack.c.l.b16 %v1674
    %v2307 = vunpack.c.l.b16 %v1675
    %v2308 = vunpack.c.l.b16 %v1676
    %v2309 = vunpack.c.l.b16 %v1677
    %v2310 = vunpack.c.l.b16 %v1678
    %v2311 = vunpack.c.l.b16 %v1679
    %v2312 = vunpack.c.l.b16 %v1680
    %v2313 = vunpack.c.l.b16 %v1681
    %v2314 = vunpack.c.l.b16 %v1682
    %v2315 = vunpack.c.l.b16 %v1683
    %v2316 = vunpack.c.l.b16 %v1684
    %v2317 = vunpack.c.l.b16 %v1685
    %v2318 = vunpack.c.l.b16 %v1686
    %v2319 = vunpack.c.l.b16 %v1687
    %v2320 = vunpack.c.l.b16 %v1688
    %v2321 = vunpack.c.l.b16 %v1689
    %v2322 = vunpack.c.l.b16 %v1690
    %v2323 = vunpack.c.l.b16 %v1691
    %v2324 = vunpack.c.l.b16 %v1692
    %v2325 = vunpack.c.l.b16 %v1693
    %v2326 = vunpack.c.l.b16 %v1694
    %v2327 = vunpack.c.l.b16 %v1695
    %v2328 = vunpack.c.l.b16 %v1696
    %v2329 = vunpack.c.l.b16 %v1697
    %v2330 = vunpack.c.l.b16 %v1698
    %v2331 = vunpack.c.l.b16 %v1699
    %v2332 = vunpack.c.l.b16 %v1700
    %v2333 = vunpack.c.l.b16 %v1701
    %v2334 = vunpack.c.l.b16 %v1702
    %v2335 = vunpack.c.l.b16 %v1703
    %v2336 = vunpack.c.l.b16 %v1704
    %v2337 = vunpack.c.l.b16 %v1705
    %v2338 = vunpack.c.l.b16 %v1706
    %v2339 = vunpack.c.l.b16 %v1707
    %v2340 = vunpack.c.l.b16 %v1708
    %v2341 = vunpack.c.l.b16 %v1709
    %v2342 = vunpack.c.l.b16 %v1710
    %v2343 = vunpack.c.l.b16 %v1711
    %v2344 = vunpack.c.l.b16 %v1712
    %v2345 = vunpack.c.l.b16 %v1713
    %v2346 = vunpack.c.l.b16 %v1714
    %v2347 = vunpack.c.l.b16 %v1715
    %v2348 = vunpack.c.l.b16 %v1716
    %v2349 = vunpack.c.l.b16 %v1717
    %v2350 = vunpack.c.l.b16 %v1718
    %v2351 = vunpack.c.l.b16 %v1719
    %v2352 = vunpack.c.l.b16 %v1720
    %v2353 = vunpack.c.l.b16 %v1721
    %v2354 = vunpack.c.l.b16 %v1722
    %v2355 = vunpack.c.l.b16 %v1723
    %v2356 = vunpack.c.l.b16 %v1724
    %v2357 = vunpack.c.l.b16 %v1725
    %v2358 = vunpack.c.l.b16 %v1726
    %v2359 = vunpack.c.l.b16 %v1727
    %v2360 = vunpack.c.l.b16 %v1728
    %v2361 = vunpack.c.l.b16 %v1729
    %v2362 = vunpack.c.l.b16 %v1730
    %v2363 = vunpack.c.l.b16 %v1731
    %v2364 = vunpack.c.l.b16 %v1732
    %v2365 = vunpack.c.l.b16 %v1733
    %v2366 = vunpack.c.l.b16 %v1734
    %v2367 = vunpack.c.l.b16 %v1735
    %v2368 = vunpack.c.l.b16 %v1736
    %v2369 = vunpack.c.l.b16 %v1737
    %v2370 = vunpack.c.l.b16 %v1738
    %v2371 = vunpack.c.l.b16 %v1739
    %v2372 = vunpack.c.l.b16 %v1740
    %v2373 = vunpack.c.l.b16 %v1741
    %v2374 = vunpack.c.l.b16 %v1742
    %v2375 = vunpack.c.l.b16 %v1743
    %v2376 = vunpack.c.l.b16 %v1744
    %v2377 = vunpack.c.l.b16 %v1745
    %v2378 = vunpack.c.l.b16 %v1746
    %v2379 = vunpack.c.l.b16 %v1747
    %v2380 = vunpack.c.l.b16 %v1748
    %v2381 = vunpack.c.l.b16 %v1749
    %v2382 = vunpack.c.l.b16 %v1750
    %v2383 = vunpack.c.l.b16 %v1751
    %v2384 = vunpack.c.l.b16 %v1752
    %v2385 = vunpack.c.l.b16 %v1753
    %v2386 = vunpack.c.l.b16 %v1754
    %v2387 = vunpack.c.l.b16 %v1755
    %v2388 = vunpack.c.l.b16 %v1756
    %v2389 = vunpack.c.l.b16 %v1757
    %v2390 = vunpack.c.l.b16 %v1758
    %v2391 = vunpack.c.l.b16 %v1759
    %v2392 = vunpack.c.l.b16 %v1760
    %v2393 = vunpack.c.l.b16 %v1761
    %v2394 = vunpack.c.l.b16 %v1762
    %v2395 = vunpack.c.l.b16 %v1763
    %v2396 = vunpack.c.l.b16 %v1764
    %v2397 = vunpack.c.l.b16 %v1765
    %v2398 = vunpack.c.l.b16 %v1766
    %v2399 = vunpack.c.l.b16 %v1767
    %v2400 = vunpack.c.l.b16 %v1768
    %v2401 = vunpack.c.l.b16 %v1769
    %v2402 = vunpack.c.l.b16 %v1770
    %v2403 = vunpack.c.l.b16 %v1771
    %v2404 = vunpack.c.l.b16 %v1772
    %v2405 = vunpack.c.l.b16 %v1773
    %v2406 = vunpack.c.l.b16 %v1774
    %v2407 = vunpack.c.l.b16 %v1775
    %v2408 = vunpack.c.l.b16 %v1776
    %v2409 = vunpack.c.l.b16 %v1777
    %v2410 = vunpack.c.l.b16 %v1778
    %v2411 = vunpack.c.l.b16 %v1779
    %v2412 = vunpack.c.l.b16 %v1780
    %v2413 = vunpack.c.l.b16 %v1781
    %v2414 = vunpack.c.l.b16 %v1782
    %v2415 = vunpack.c.l.b16 %v1783
    %v2416 = vunpack.c.l.b16 %v1784
    %v2417 = vunpack.c.l.b16 %v1785
    %v2418 = vunpack.c.l.b16 %v1786
    %v2419 = vunpack.c.l.b16 %v1787
    %v2420 = vunpack.c.l.b16 %v1788
    %v2421 = vunpack.c.l.b16 %v1789
    %v2422 = vunpack.c.l.b16 %v1790
    %v2423 = vunpack.c.l.b16 %v1791
    %v2424 = vunpack.c.l.b16 %v1792
    %v2425 = vunpack.c.l.b16 %v1793
    %v2426 = vunpack.c.l.b16 %v1794
    %v2427 = vunpack.c.l.b16 %v1795
    %v2428 = vunpack.c.l.b16 %v1796
    %v2429 = vunpack.c.l.b16 %v1797
    %v2430 = vunpack.c.l.b16 %v1798
    %v2431 = vunpack.c.l.b16 %v1799
    %v2432 = vunpack.c.l.b16 %v1800
    %v2433 = vunpack.c.l.b16 %v1801
    %v2434 = vunpack.c.l.b16 %v1802
    %v2435 = vunpack.c.l.b16 %v1803
    %v2436 = vunpack.c.l.b16 %v1804
    %v2437 = vunpack.c.l.b16 %v1805
    %v2438 = vunpack.c.l.b16 %v1806
    %v2439 = vunpack.c.l.b16 %v1807
    %v2440 = vunpack.c.l.b16 %v1808
    %v2441 = vunpack.c.l.b16 %v1809
    %v2442 = vunpack.c.l.b16 %v1810
    %v2443 = vunpack.c.l.b16 %v1811
    %v2444 = vunpack.c.l.b16 %v1812
    %v2445 = vunpack.c.l.b16 %v1813
    %v2446 = vunpack.c.l.b16 %v1814
    %v2447 = vunpack.c.l.b16 %v1815
    %v2448 = vunpack.c.l.b16 %v1816
    %v2449 = vunpack.c.l.b16 %v1817
    %v2450 = vunpack.c.l.b16 %v1818
    %v2451 = vunpack.c.l.b16 %v1819
    %v2452 = vunpack.c.l.b16 %v1820
    %v2453 = vunpack.c.l.b16 %v1821
    %v2454 = vunpack.c.l.b16 %v1822
    %v2455 = vunpack.c.l.b16 %v1823
    %v2456 = vunpack.c.l.b16 %v1824
    %v2457 = vunpack.c.l.b16 %v1825
    %v2458 = vunpack.c.l.b16 %v1826
    %v2459 = vunpack.c.l.b16 %v1827
    %v2460 = vpack.c.b16 %v2205, %v2204
    %v2461 = vpack.c.b16 %v2207, %v2206
    %v2462 = vpack.c.b16 %v2209, %v2208
    %v2463 = vpack.c.b16 %v2211, %v2210
    %v2464 = vpack.c.b16 %v2213, %v2212
    %v2465 = vpack.c.b16 %v2215, %v2214
    %v2466 = vpack.c.b16 %v2217, %v2216
    %v2467 = vpack.c.b16 %v2219, %v2218
    %v2468 = vpack.c.b16 %v2221, %v2220
    %v2469 = vpack.c.b16 %v2223, %v2222
    %v2470 = vpack.c.b16 %v2225, %v2224
    %v2471 = vpack.c.b16 %v2227, %v2226
    %v2472 = vpack.c.b16 %v2229, %v2228
    %v2473 = vpack.c.b16 %v2231, %v2230
    %v2474 = vpack.c.b16 %v2233, %v2232
    %v2475 = vpack.c.b16 %v2235, %v2234
    %v2476 = vpack.c.b16 %v2237, %v2236
    %v2477 = vpack.c.b16 %v2239, %v2238
    %v2478 = vpack.c.b16 %v2241, %v2240
    %v2479 = vpack.c.b16 %v2243, %v2242
    %v2480 = vpack.c.b16 %v2245, %v2244
    %v2481 = vpack.c.b16 %v2247, %v2246
    %v2482 = vpack.c.b16 %v2249, %v2248
    %v2483 = vpack.c.b16 %v2251, %v2250
    %v2484 = vpack.c.b16 %v2253, %v2252
    %v2485 = vpack.c.b16 %v2255, %v2254
    %v2486 = vpack.c.b16 %v2257, %v2256
    %v2487 = vpack.c.b16 %v2259, %v2258
    %v2488 = vpack.c.b16 %v2261, %v2260
    %v2489 = vpack.c.b16 %v2263, %v2262
    %v2490 = vpack.c.b16 %v2265, %v2264
    %v2491 = vpack.c.b16 %v2267, %v2266
    %v2492 = vpack.c.b16 %v2269, %v2268
    %v2493 = vpack.c.b16 %v2271, %v2270
    %v2494 = vpack.c.b16 %v2273, %v2272
    %v2495 = vpack.c.b16 %v2275, %v2274
    %v2496 = vpack.c.b16 %v2277, %v2276
    %v2497 = vpack.c.b16 %v2279, %v2278
    %v2498 = vpack.c.b16 %v2281, %v2280
    %v2499 = vpack.c.b16 %v2283, %v2282
    %v2500 = vpack.c.b16 %v2285, %v2284
    %v2501 = vpack.c.b16 %v2287, %v2286
    %v2502 = vpack.c.b16 %v2289, %v2288
    %v2503 = vpack.c.b16 %v2291, %v2290
    %v2504 = vpack.c.b16 %v2293, %v2292
    %v2505 = vpack.c.b16 %v2295, %v2294
    %v2506 = vpack.c.b16 %v2297, %v2296
    %v2507 = vpack.c.b16 %v2299, %v2298
    %v2508 = vpack.c.b16 %v2301, %v2300
    %v2509 = vpack.c.b16 %v2303, %v2302
    %v2510 = vpack.c.b16 %v2305, %v2304
    %v2511 = vpack.c.b16 %v2307, %v2306
    %v2512 = vpack.c.b16 %v2309, %v2308
    %v2513 = vpack.c.b16 %v2311, %v2310
    %v2514 = vpack.c.b16 %v2313, %v2312
    %v2515 = vpack.c.b16 %v2315, %v2314
    %v2516 = vpack.c.b16 %v2317, %v2316
    %v2517 = vpack.c.b16 %v2319, %v2318
    %v2518 = vpack.c.b16 %v2321, %v2320
    %v2519 = vpack.c.b16 %v2323, %v2322
    %v2520 = vpack.c.b16 %v2325, %v2324
    %v2521 = vpack.c.b16 %v2327, %v2326
    %v2522 = vpack.c.b16 %v2329, %v2328
    %v2523 = vpack.c.b16 %v2331, %v2330
    %v2524 = vpack.c.b16 %v2333, %v2332
    %v2525 = vpack.c.b16 %v2335, %v2334
    %v2526 = vpack.c.b16 %v2337, %v2336
    %v2527 = vpack.c.b16 %v2339, %v2338
    %v2528 = vpack.c.b16 %v2341, %v2340
    %v2529 = vpack.c.b16 %v2343, %v2342
    %v2530 = vpack.c.b16 %v2345, %v2344
    %v2531 = vpack.c.b16 %v2347, %v2346
    %v2532 = vpack.c.b16 %v2349, %v2348
    %v2533 = vpack.c.b16 %v2351, %v2350
    %v2534 = vpack.c.b16 %v2353, %v2352
    %v2535 = vpack.c.b16 %v2355, %v2354
    %v2536 = vpack.c.b16 %v2357, %v2356
    %v2537 = vpack.c.b16 %v2359, %v2358
    %v2538 = vpack.c.b16 %v2361, %v2360
    %v2539 = vpack.c.b16 %v2363, %v2362
    %v2540 = vpack.c.b16 %v2365, %v2364
    %v2541 = vpack.c.b16 %v2367, %v2366
    %v2542 = vpack.c.b16 %v2369, %v2368
    %v2543 = vpack.c.b16 %v2371, %v2370
    %v2544 = vpack.c.b16 %v2373, %v2372
    %v2545 = vpack.c.b16 %v2375, %v2374
    %v2546 = vpack.c.b16 %v2377, %v2376
    %v2547 = vpack.c.b16 %v2379, %v2378
    %v2548 = vpack.c.b16 %v2381, %v2380
    %v2549 = vpack.c.b16 %v2383, %v2382
    %v2550 = vpack.c.b16 %v2385, %v2384
    %v2551 = vpack.c.b16 %v2387, %v2386
    %v2552 = vpack.c.b16 %v2389, %v2388
    %v2553 = vpack.c.b16 %v2391, %v2390
    %v2554 = vpack.c.b16 %v2393, %v2392
    %v2555 = vpack.c.b16 %v2395, %v2394
    %v2556 = vpack.c.b16 %v2397, %v2396
    %v2557 = vpack.c.b16 %v2399, %v2398
    %v2558 = vpack.c.b16 %v2401, %v2400
    %v2559 = vpack.c.b16 %v2403, %v2402
    %v2560 = vpack.c.b16 %v2405, %v2404
    %v2561 = vpack.c.b16 %v2407, %v2406
    %v2562 = vpack.c.b16 %v2409, %v2408
    %v2563 = vpack.c.b16 %v2411, %v2410
    %v2564 = vpack.c.b16 %v2413, %v2412
    %v2565 = vpack.c.b16 %v2415, %v2414
    %v2566 = vpack.c.b16 %v2417, %v2416
    %v2567 = vpack.c.b16 %v2419, %v2418
    %v2568 = vpack.c.b16 %v2421, %v2420
    %v2569 = vpack.c.b16 %v2423, %v2422
    %v2570 = vpack.c.b16 %v2425, %v2424
    %v2571 = vpack.c.b16 %v2427, %v2426
    %v2572 = vpack.c.b16 %v2429, %v2428
    %v2573 = vpack.c.b16 %v2431, %v2430
    %v2574 = vpack.c.b16 %v2433, %v2432
    %v2575 = vpack.c.b16 %v2435, %v2434
    %v2576 = vpack.c.b16 %v2437, %v2436
    %v2577 = vpack.c.b16 %v2439, %v2438
    %v2578 = vpack.c.b16 %v2441, %v2440
    %v2579 = vpack.c.b16 %v2443, %v2442
    %v2580 = vpack.c.b16 %v2445, %v2444
    %v2581 = vpack.c.b16 %v2447, %v2446
    %v2582 = vpack.c.b16 %v2449, %v2448
    %v2583 = vpack.c.b16 %v2451, %v2450
    %v2584 = vpack.c.b16 %v2453, %v2452
    %v2585 = vpack.c.b16 %v2455, %v2454
    %v2586 = vpack.c.b16 %v2457, %v2456
    %v2587 = vpack.c.b16 %v2459, %v2458
    %2716 = vmatprep.subr.bf16.mxu0 0
    %2717 = vmatpush1.bf16.msra.mxu0 %v2460
    %2718 = vmatprep.subr.bf16.mxu0 0
    %2719 = vmatpush1.bf16.msra.mxu0 %v2461
    %2720 = vmatprep.subr.bf16.mxu0 0
    %2721 = vmatpush1.bf16.msra.mxu0 %v2462
    %2722 = vmatprep.subr.bf16.mxu0 0
    %2723 = vmatpush1.bf16.msra.mxu0 %v2463
    %2724 = vmatprep.subr.bf16.mxu0 0
    %2725 = vmatpush1.bf16.msra.mxu0 %v2464
    %2726 = vmatprep.subr.bf16.mxu0 0
    %2727 = vmatpush1.bf16.msra.mxu0 %v2465
    %2728 = vmatprep.subr.bf16.mxu0 0
    %2729 = vmatpush1.bf16.msra.mxu0 %v2466
    %2730 = vmatprep.subr.bf16.mxu0 0
    %2731 = vmatpush1.bf16.msra.mxu0 %v2467
    %2732 = vmatprep.subr.bf16.mxu0 0
    %2733 = vmatpush1.bf16.msra.mxu0 %v2468
    %2734 = vmatprep.subr.bf16.mxu0 0
    %2735 = vmatpush1.bf16.msra.mxu0 %v2469
    %2736 = vmatprep.subr.bf16.mxu0 0
    %2737 = vmatpush1.bf16.msra.mxu0 %v2470
    %2738 = vmatprep.subr.bf16.mxu0 0
    %2739 = vmatpush1.bf16.msra.mxu0 %v2471
    %2740 = vmatprep.subr.bf16.mxu0 0
    %2741 = vmatpush1.bf16.msra.mxu0 %v2472
    %2742 = vmatprep.subr.bf16.mxu0 0
    %2743 = vmatpush1.bf16.msra.mxu0 %v2473
    %2744 = vmatprep.subr.bf16.mxu0 0
    %2745 = vmatpush1.bf16.msra.mxu0 %v2474
    %2746 = vmatprep.subr.bf16.mxu0 0
    %2747 = vmatpush1.bf16.msra.mxu0 %v2475
    %2748 = vmatprep.mubr.bf16.mxu0 %v1917
    %2749 = vmatmul.mubr.bf16.gmra.mrb[0].mxu0 %v1916
    %v2750 = vpop.f32.mrb[0].mxu0
    %v2751 = vadd.f32 %v1833, %v2750
    %v2752 = vpop.f32.mrb[0].mxu0
    %v2753 = vpop.f32.mrb[0].mxu0
    %v2754 = vpop.f32.mrb[0].mxu0
    %2755 = vdwg.mxu0
    %2756 = vmatprep.subr.bf16.mxu0 0
    %2757 = vmatpush1.bf16.msra.mxu0 %v2476
    %2758 = vmatprep.subr.bf16.mxu0 0
    %2759 = vmatpush1.bf16.msra.mxu0 %v2477
    %2760 = vmatprep.subr.bf16.mxu0 0
    %2761 = vmatpush1.bf16.msra.mxu0 %v2478
    %2762 = vmatprep.subr.bf16.mxu0 0
    %2763 = vmatpush1.bf16.msra.mxu0 %v2479
    %2764 = vmatprep.subr.bf16.mxu0 0
    %2765 = vmatpush1.bf16.msra.mxu0 %v2480
    %2766 = vmatprep.subr.bf16.mxu0 0
    %2767 = vmatpush1.bf16.msra.mxu0 %v2481
    %2768 = vmatprep.subr.bf16.mxu0 0
    %2769 = vmatpush1.bf16.msra.mxu0 %v2482
    %2770 = vmatprep.subr.bf16.mxu0 0
    %2771 = vmatpush1.bf16.msra.mxu0 %v2483
    %2772 = vmatprep.subr.bf16.mxu0 0
    %2773 = vmatpush1.bf16.msra.mxu0 %v2484
    %2774 = vmatprep.subr.bf16.mxu0 0
    %2775 = vmatpush1.bf16.msra.mxu0 %v2485
    %2776 = vmatprep.subr.bf16.mxu0 0
    %2777 = vmatpush1.bf16.msra.mxu0 %v2486
    %2778 = vmatprep.subr.bf16.mxu0 0
    %2779 = vmatpush1.bf16.msra.mxu0 %v2487
    %2780 = vmatprep.subr.bf16.mxu0 0
    %2781 = vmatpush1.bf16.msra.mxu0 %v2488
    %2782 = vmatprep.subr.bf16.mxu0 0
    %2783 = vmatpush1.bf16.msra.mxu0 %v2489
    %2784 = vmatprep.subr.bf16.mxu0 0
    %2785 = vmatpush1.bf16.msra.mxu0 %v2490
    %2786 = vmatprep.subr.bf16.mxu0 0
    %2787 = vmatpush1.bf16.msra.mxu0 %v2491
    %2788 = vmatprep.mubr.bf16.mxu0 %v1919
    %2789 = vmatmul.mubr.bf16.gmra.mrb[0].mxu0 %v1918
    %v2790 = vpop.f32.mrb[0].mxu0
    %v2791 = vadd.f32 %v2751, %v2790
    %v2792 = vpop.f32.mrb[0].mxu0
    %v2793 = vpop.f32.mrb[0].mxu0
    %v2794 = vpop.f32.mrb[0].mxu0
    %2795 = vdwg.mxu0
    %2796 = vmatprep.subr.bf16.mxu0 0
    %2797 = vmatpush1.bf16.msra.mxu0 %v2492
    %2798 = vmatprep.subr.bf16.mxu0 0
    %2799 = vmatpush1.bf16.msra.mxu0 %v2493
    %2800 = vmatprep.subr.bf16.mxu0 0
    %2801 = vmatpush1.bf16.msra.mxu0 %v2494
    %2802 = vmatprep.subr.bf16.mxu0 0
    %2803 = vmatpush1.bf16.msra.mxu0 %v2495
    %2804 = vmatprep.subr.bf16.mxu0 0
    %2805 = vmatpush1.bf16.msra.mxu0 %v2496
    %2806 = vmatprep.subr.bf16.mxu0 0
    %2807 = vmatpush1.bf16.msra.mxu0 %v2497
    %2808 = vmatprep.subr.bf16.mxu0 0
    %2809 = vmatpush1.bf16.msra.mxu0 %v2498
    %2810 = vmatprep.subr.bf16.mxu0 0
    %2811 = vmatpush1.bf16.msra.mxu0 %v2499
    %2812 = vmatprep.subr.bf16.mxu0 0
    %2813 = vmatpush1.bf16.msra.mxu0 %v2500
    %2814 = vmatprep.subr.bf16.mxu0 0
    %2815 = vmatpush1.bf16.msra.mxu0 %v2501
    %2816 = vmatprep.subr.bf16.mxu0 0
    %2817 = vmatpush1.bf16.msra.mxu0 %v2502
    %2818 = vmatprep.subr.bf16.mxu0 0
    %2819 = vmatpush1.bf16.msra.mxu0 %v2503
    %2820 = vmatprep.subr.bf16.mxu0 0
    %2821 = vmatpush1.bf16.msra.mxu0 %v2504
    %2822 = vmatprep.subr.bf16.mxu0 0
    %2823 = vmatpush1.bf16.msra.mxu0 %v2505
    %2824 = vmatprep.subr.bf16.mxu0 0
    %2825 = vmatpush1.bf16.msra.mxu0 %v2506
    %2826 = vmatprep.subr.bf16.mxu0 0
    %2827 = vmatpush1.bf16.msra.mxu0 %v2507
    %2828 = vmatprep.mubr.bf16.mxu0 %v1921
    %2829 = vmatmul.mubr.bf16.gmra.mrb[0].mxu0 %v1920
    %v2830 = vpop.f32.mrb[0].mxu0
    %v2831 = vadd.f32 %v2791, %v2830
    %v2832 = vpop.f32.mrb[0].mxu0
    %v2833 = vpop.f32.mrb[0].mxu0
    %v2834 = vpop.f32.mrb[0].mxu0
    %2835 = vdwg.mxu0
    %2836 = vmatprep.subr.bf16.mxu0 0
    %2837 = vmatpush1.bf16.msra.mxu0 %v2508
    %2838 = vmatprep.subr.bf16.mxu0 0
    %2839 = vmatpush1.bf16.msra.mxu0 %v2509
    %2840 = vmatprep.subr.bf16.mxu0 0
    %2841 = vmatpush1.bf16.msra.mxu0 %v2510
    %2842 = vmatprep.subr.bf16.mxu0 0
    %2843 = vmatpush1.bf16.msra.mxu0 %v2511
    %2844 = vmatprep.subr.bf16.mxu0 0
    %2845 = vmatpush1.bf16.msra.mxu0 %v2512
    %2846 = vmatprep.subr.bf16.mxu0 0
    %2847 = vmatpush1.bf16.msra.mxu0 %v2513
    %2848 = vmatprep.subr.bf16.mxu0 0
    %2849 = vmatpush1.bf16.msra.mxu0 %v2514
    %2850 = vmatprep.subr.bf16.mxu0 0
    %2851 = vmatpush1.bf16.msra.mxu0 %v2515
    %2852 = vmatprep.subr.bf16.mxu0 0
    %2853 = vmatpush1.bf16.msra.mxu0 %v2516
    %2854 = vmatprep.subr.bf16.mxu0 0
    %2855 = vmatpush1.bf16.msra.mxu0 %v2517
    %2856 = vmatprep.subr.bf16.mxu0 0
    %2857 = vmatpush1.bf16.msra.mxu0 %v2518
    %2858 = vmatprep.subr.bf16.mxu0 0
    %2859 = vmatpush1.bf16.msra.mxu0 %v2519
    %2860 = vmatprep.subr.bf16.mxu0 0
    %2861 = vmatpush1.bf16.msra.mxu0 %v2520
    %2862 = vmatprep.subr.bf16.mxu0 0
    %2863 = vmatpush1.bf16.msra.mxu0 %v2521
    %2864 = vmatprep.subr.bf16.mxu0 0
    %2865 = vmatpush1.bf16.msra.mxu0 %v2522
    %2866 = vmatprep.subr.bf16.mxu0 0
    %2867 = vmatpush1.bf16.msra.mxu0 %v2523
    %2868 = vmatprep.mubr.bf16.mxu0 %v1923
    %2869 = vmatmul.mubr.bf16.gmra.mrb[0].mxu0 %v1922
    %v2870 = vpop.f32.mrb[0].mxu0
    %v2871 = vadd.f32 %v2831, %v2870
    %v2872 = vpop.f32.mrb[0].mxu0
    %v2873 = vpop.f32.mrb[0].mxu0
    %v2874 = vpop.f32.mrb[0].mxu0
    %2875 = vdwg.mxu0
    %2876 = vmatprep.subr.bf16.mxu0 0
    %2877 = vmatpush1.bf16.msra.mxu0 %v2524
    %2878 = vmatprep.subr.bf16.mxu0 0
    %2879 = vmatpush1.bf16.msra.mxu0 %v2525
    %2880 = vmatprep.subr.bf16.mxu0 0
    %2881 = vmatpush1.bf16.msra.mxu0 %v2526
    %2882 = vmatprep.subr.bf16.mxu0 0
    %2883 = vmatpush1.bf16.msra.mxu0 %v2527
    %2884 = vmatprep.subr.bf16.mxu0 0
    %2885 = vmatpush1.bf16.msra.mxu0 %v2528
    %2886 = vmatprep.subr.bf16.mxu0 0
    %2887 = vmatpush1.bf16.msra.mxu0 %v2529
    %2888 = vmatprep.subr.bf16.mxu0 0
    %2889 = vmatpush1.bf16.msra.mxu0 %v2530
    %2890 = vmatprep.subr.bf16.mxu0 0
    %2891 = vmatpush1.bf16.msra.mxu0 %v2531
    %2892 = vmatprep.subr.bf16.mxu0 0
    %2893 = vmatpush1.bf16.msra.mxu0 %v2532
    %2894 = vmatprep.subr.bf16.mxu0 0
    %2895 = vmatpush1.bf16.msra.mxu0 %v2533
    %2896 = vmatprep.subr.bf16.mxu0 0
    %2897 = vmatpush1.bf16.msra.mxu0 %v2534
    %2898 = vmatprep.subr.bf16.mxu0 0
    %2899 = vmatpush1.bf16.msra.mxu0 %v2535
    %2900 = vmatprep.subr.bf16.mxu0 0
    %2901 = vmatpush1.bf16.msra.mxu0 %v2536
    %2902 = vmatprep.subr.bf16.mxu0 0
    %2903 = vmatpush1.bf16.msra.mxu0 %v2537
    %2904 = vmatprep.subr.bf16.mxu0 0
    %2905 = vmatpush1.bf16.msra.mxu0 %v2538
    %2906 = vmatprep.subr.bf16.mxu0 0
    %2907 = vmatpush1.bf16.msra.mxu0 %v2539
    %2908 = vmatprep.mubr.bf16.mxu0 %v1925
    %2909 = vmatmul.mubr.bf16.gmra.mrb[0].mxu0 %v1924
    %v2910 = vpop.f32.mrb[0].mxu0
    %v2911 = vadd.f32 %v2871, %v2910
    %v2912 = vpop.f32.mrb[0].mxu0
    %v2913 = vpop.f32.mrb[0].mxu0
    %v2914 = vpop.f32.mrb[0].mxu0
    %2915 = vdwg.mxu0
    %2916 = vmatprep.subr.bf16.mxu0 0
    %2917 = vmatpush1.bf16.msra.mxu0 %v2540
    %2918 = vmatprep.subr.bf16.mxu0 0
    %2919 = vmatpush1.bf16.msra.mxu0 %v2541
    %2920 = vmatprep.subr.bf16.mxu0 0
    %2921 = vmatpush1.bf16.msra.mxu0 %v2542
    %2922 = vmatprep.subr.bf16.mxu0 0
    %2923 = vmatpush1.bf16.msra.mxu0 %v2543
    %2924 = vmatprep.subr.bf16.mxu0 0
    %2925 = vmatpush1.bf16.msra.mxu0 %v2544
    %2926 = vmatprep.subr.bf16.mxu0 0
    %2927 = vmatpush1.bf16.msra.mxu0 %v2545
    %2928 = vmatprep.subr.bf16.mxu0 0
    %2929 = vmatpush1.bf16.msra.mxu0 %v2546
    %2930 = vmatprep.subr.bf16.mxu0 0
    %2931 = vmatpush1.bf16.msra.mxu0 %v2547
    %2932 = vmatprep.subr.bf16.mxu0 0
    %2933 = vmatpush1.bf16.msra.mxu0 %v2548
    %2934 = vmatprep.subr.bf16.mxu0 0
    %2935 = vmatpush1.bf16.msra.mxu0 %v2549
    %2936 = vmatprep.subr.bf16.mxu0 0
    %2937 = vmatpush1.bf16.msra.mxu0 %v2550
    %2938 = vmatprep.subr.bf16.mxu0 0
    %2939 = vmatpush1.bf16.msra.mxu0 %v2551
    %2940 = vmatprep.subr.bf16.mxu0 0
    %2941 = vmatpush1.bf16.msra.mxu0 %v2552
    %2942 = vmatprep.subr.bf16.mxu0 0
    %2943 = vmatpush1.bf16.msra.mxu0 %v2553
    %2944 = vmatprep.subr.bf16.mxu0 0
    %2945 = vmatpush1.bf16.msra.mxu0 %v2554
    %2946 = vmatprep.subr.bf16.mxu0 0
    %2947 = vmatpush1.bf16.msra.mxu0 %v2555
    %2948 = vmatprep.mubr.bf16.mxu0 %v1927
    %2949 = vmatmul.mubr.bf16.gmra.mrb[0].mxu0 %v1926
    %v2950 = vpop.f32.mrb[0].mxu0
    %v2951 = vadd.f32 %v2911, %v2950
    %v2952 = vpop.f32.mrb[0].mxu0
    %v2953 = vpop.f32.mrb[0].mxu0
    %v2954 = vpop.f32.mrb[0].mxu0
    %2955 = vdwg.mxu0
    %2956 = vmatprep.subr.bf16.mxu0 0
    %2957 = vmatpush1.bf16.msra.mxu0 %v2556
    %2958 = vmatprep.subr.bf16.mxu0 0
    %2959 = vmatpush1.bf16.msra.mxu0 %v2557
    %2960 = vmatprep.subr.bf16.mxu0 0
    %2961 = vmatpush1.bf16.msra.mxu0 %v2558
    %2962 = vmatprep.subr.bf16.mxu0 0
    %2963 = vmatpush1.bf16.msra.mxu0 %v2559
    %2964 = vmatprep.subr.bf16.mxu0 0
    %2965 = vmatpush1.bf16.msra.mxu0 %v2560
    %2966 = vmatprep.subr.bf16.mxu0 0
    %2967 = vmatpush1.bf16.msra.mxu0 %v2561
    %2968 = vmatprep.subr.bf16.mxu0 0
    %2969 = vmatpush1.bf16.msra.mxu0 %v2562
    %2970 = vmatprep.subr.bf16.mxu0 0
    %2971 = vmatpush1.bf16.msra.mxu0 %v2563
    %2972 = vmatprep.subr.bf16.mxu0 0
    %2973 = vmatpush1.bf16.msra.mxu0 %v2564
    %2974 = vmatprep.subr.bf16.mxu0 0
    %2975 = vmatpush1.bf16.msra.mxu0 %v2565
    %2976 = vmatprep.subr.bf16.mxu0 0
    %2977 = vmatpush1.bf16.msra.mxu0 %v2566
    %2978 = vmatprep.subr.bf16.mxu0 0
    %2979 = vmatpush1.bf16.msra.mxu0 %v2567
    %2980 = vmatprep.subr.bf16.mxu0 0
    %2981 = vmatpush1.bf16.msra.mxu0 %v2568
    %2982 = vmatprep.subr.bf16.mxu0 0
    %2983 = vmatpush1.bf16.msra.mxu0 %v2569
    %2984 = vmatprep.subr.bf16.mxu0 0
    %2985 = vmatpush1.bf16.msra.mxu0 %v2570
    %2986 = vmatprep.subr.bf16.mxu0 0
    %2987 = vmatpush1.bf16.msra.mxu0 %v2571
    %2988 = vmatprep.mubr.bf16.mxu0 %v1929
    %2989 = vmatmul.mubr.bf16.gmra.mrb[0].mxu0 %v1928
    %v2990 = vpop.f32.mrb[0].mxu0
    %v2991 = vadd.f32 %v2951, %v2990
    %v2992 = vpop.f32.mrb[0].mxu0
    %v2993 = vpop.f32.mrb[0].mxu0
    %v2994 = vpop.f32.mrb[0].mxu0
    %2995 = vdwg.mxu0
    %2996 = vmatprep.subr.bf16.mxu0 0
    %2997 = vmatpush1.bf16.msra.mxu0 %v2572
    %2998 = vmatprep.subr.bf16.mxu0 0
    %2999 = vmatpush1.bf16.msra.mxu0 %v2573
    %3000 = vmatprep.subr.bf16.mxu0 0
    %3001 = vmatpush1.bf16.msra.mxu0 %v2574
    %3002 = vmatprep.subr.bf16.mxu0 0
    %3003 = vmatpush1.bf16.msra.mxu0 %v2575
    %3004 = vmatprep.subr.bf16.mxu0 0
    %3005 = vmatpush1.bf16.msra.mxu0 %v2576
    %3006 = vmatprep.subr.bf16.mxu0 0
    %3007 = vmatpush1.bf16.msra.mxu0 %v2577
    %3008 = vmatprep.subr.bf16.mxu0 0
    %3009 = vmatpush1.bf16.msra.mxu0 %v2578
    %3010 = vmatprep.subr.bf16.mxu0 0
    %3011 = vmatpush1.bf16.msra.mxu0 %v2579
    %3012 = vmatprep.subr.bf16.mxu0 0
    %3013 = vmatpush1.bf16.msra.mxu0 %v2580
    %3014 = vmatprep.subr.bf16.mxu0 0
    %3015 = vmatpush1.bf16.msra.mxu0 %v2581
    %3016 = vmatprep.subr.bf16.mxu0 0
    %3017 = vmatpush1.bf16.msra.mxu0 %v2582
    %3018 = vmatprep.subr.bf16.mxu0 0
    %3019 = vmatpush1.bf16.msra.mxu0 %v2583
    %3020 = vmatprep.subr.bf16.mxu0 0
    %3021 = vmatpush1.bf16.msra.mxu0 %v2584
    %3022 = vmatprep.subr.bf16.mxu0 0
    %3023 = vmatpush1.bf16.msra.mxu0 %v2585
    %3024 = vmatprep.subr.bf16.mxu0 0
    %3025 = vmatpush1.bf16.msra.mxu0 %v2586
    %3026 = vmatprep.subr.bf16.mxu0 0
    %3027 = vmatpush1.bf16.msra.mxu0 %v2587
    %3028 = vmatprep.mubr.bf16.mxu0 %v1931
    %3029 = vmatmul.mubr.bf16.gmra.mrb[0].mxu0 %v1930
    %v3030 = vpop.f32.mrb[0].mxu0
    %v3031 = vadd.f32 %v2991, %v3030
    %v3032 = vpop.f32.mrb[0].mxu0
    %v3033 = vpop.f32.mrb[0].mxu0
    %v3034 = vpop.f32.mrb[0].mxu0
    %3035 = vdwg.mxu0
    %v3036 = vmax.f32 %v3031, 0.0
    %v3037 = vpack.c.bf16 %v3036, %v3036
    %v3038 = vld [vmem:[%s6] sm:$0xff]
    %v3039 = vld [vmem:[%s6 + $0x8] sm:$0xff]
    %v3040 = vld [vmem:[%s6 + $0x10] sm:$0xff]
    %v3041 = vld [vmem:[%s6 + $0x18] sm:$0xff]
    %v3042 = vld [vmem:[%s6 + $0x20] sm:$0xff]
    %v3043 = vld [vmem:[%s6 + $0x28] sm:$0xff]
    %v3044 = vld [vmem:[%s6 + $0x30] sm:$0xff]
    %v3045 = vld [vmem:[%s6 + $0x38] sm:$0xff]
    %v3046 = vld [vmem:[%s6 + $0x40] sm:$0xff]
    %v3047 = vld [vmem:[%s6 + $0x48] sm:$0xff]
    %v3048 = vld [vmem:[%s6 + $0x50] sm:$0xff]
    %v3049 = vld [vmem:[%s6 + $0x58] sm:$0xff]
    %v3050 = vld [vmem:[%s6 + $0x60] sm:$0xff]
    %v3051 = vld [vmem:[%s6 + $0x68] sm:$0xff]
    %v3052 = vld [vmem:[%s6 + $0x70] sm:$0xff]
    %v3053 = vld [vmem:[%s6 + $0x78] sm:$0xff]
    %v3054 = vld [vmem:[%s6 + $0x80] sm:$0xff]
    %v3055 = vld [vmem:[%s6 + $0x88] sm:$0xff]
    %v3056 = vld [vmem:[%s6 + $0x90] sm:$0xff]
    %v3057 = vld [vmem:[%s6 + $0x98] sm:$0xff]
    %v3058 = vld [vmem:[%s6 + $0xa0] sm:$0xff]
    %v3059 = vld [vmem:[%s6 + $0xa8] sm:$0xff]
    %v3060 = vld [vmem:[%s6 + $0xb0] sm:$0xff]
    %v3061 = vld [vmem:[%s6 + $0xb8] sm:$0xff]
    %v3062 = vld [vmem:[%s6 + $0xc0] sm:$0xff]
    %v3063 = vld [vmem:[%s6 + $0xc8] sm:$0xff]
    %v3064 = vld [vmem:[%s6 + $0xd0] sm:$0xff]
    %v3065 = vld [vmem:[%s6 + $0xd8] sm:$0xff]
    %v3066 = vld [vmem:[%s6 + $0xe0] sm:$0xff]
    %v3067 = vld [vmem:[%s6 + $0xe8] sm:$0xff]
    %v3068 = vld [vmem:[%s6 + $0xf0] sm:$0xff]
    %v3069 = vld [vmem:[%s6 + $0xf8] sm:$0xff]
    %v3070 = vld [vmem:[%s6 + $0x100] sm:$0xff]
    %v3071 = vld [vmem:[%s6 + $0x108] sm:$0xff]
    %v3072 = vld [vmem:[%s6 + $0x110] sm:$0xff]
    %v3073 = vld [vmem:[%s6 + $0x118] sm:$0xff]
    %v3074 = vld [vmem:[%s6 + $0x120] sm:$0xff]
    %v3075 = vld [vmem:[%s6 + $0x128] sm:$0xff]
    %v3076 = vld [vmem:[%s6 + $0x130] sm:$0xff]
    %v3077 = vld [vmem:[%s6 + $0x138] sm:$0xff]
    %v3078 = vld [vmem:[%s6 + $0x140] sm:$0xff]
    %v3079 = vld [vmem:[%s6 + $0x148] sm:$0xff]
    %v3080 = vld [vmem:[%s6 + $0x150] sm:$0xff]
    %v3081 = vld [vmem:[%s6 + $0x158] sm:$0xff]
    %v3082 = vld [vmem:[%s6 + $0x160] sm:$0xff]
    %v3083 = vld [vmem:[%s6 + $0x168] sm:$0xff]
    %v3084 = vld [vmem:[%s6 + $0x170] sm:$0xff]
    %v3085 = vld [vmem:[%s6 + $0x178] sm:$0xff]
    %v3086 = vld [vmem:[%s6 + $0x180] sm:$0xff]
    %v3087 = vld [vmem:[%s6 + $0x188] sm:$0xff]
    %v3088 = vld [vmem:[%s6 + $0x190] sm:$0xff]
    %v3089 = vld [vmem:[%s6 + $0x198] sm:$0xff]
    %v3090 = vld [vmem:[%s6 + $0x1a0] sm:$0xff]
    %v3091 = vld [vmem:[%s6 + $0x1a8] sm:$0xff]
    %v3092 = vld [vmem:[%s6 + $0x1b0] sm:$0xff]
    %v3093 = vld [vmem:[%s6 + $0x1b8] sm:$0xff]
    %v3094 = vld [vmem:[%s6 + $0x1c0] sm:$0xff]
    %v3095 = vld [vmem:[%s6 + $0x1c8] sm:$0xff]
    %v3096 = vld [vmem:[%s6 + $0x1d0] sm:$0xff]
    %v3097 = vld [vmem:[%s6 + $0x1d8] sm:$0xff]
    %v3098 = vld [vmem:[%s6 + $0x1e0] sm:$0xff]
    %v3099 = vld [vmem:[%s6 + $0x1e8] sm:$0xff]
    %v3100 = vld [vmem:[%s6 + $0x1f0] sm:$0xff]
    %v3101 = vld [vmem:[%s6 + $0x1f8] sm:$0xff]
    %v3102 = vld [vmem:[%s6 + $0x200] sm:$0xff]
    %v3103 = vld [vmem:[%s6 + $0x208] sm:$0xff]
    %v3104 = vld [vmem:[%s6 + $0x210] sm:$0xff]
    %v3105 = vld [vmem:[%s6 + $0x218] sm:$0xff]
    %v3106 = vld [vmem:[%s6 + $0x220] sm:$0xff]
    %v3107 = vld [vmem:[%s6 + $0x228] sm:$0xff]
    %v3108 = vld [vmem:[%s6 + $0x230] sm:$0xff]
    %v3109 = vld [vmem:[%s6 + $0x238] sm:$0xff]
    %v3110 = vld [vmem:[%s6 + $0x240] sm:$0xff]
    %v3111 = vld [vmem:[%s6 + $0x248] sm:$0xff]
    %v3112 = vld [vmem:[%s6 + $0x250] sm:$0xff]
    %v3113 = vld [vmem:[%s6 + $0x258] sm:$0xff]
    %v3114 = vld [vmem:[%s6 + $0x260] sm:$0xff]
    %v3115 = vld [vmem:[%s6 + $0x268] sm:$0xff]
    %v3116 = vld [vmem:[%s6 + $0x270] sm:$0xff]
    %v3117 = vld [vmem:[%s6 + $0x278] sm:$0xff]
    %v3118 = vld [vmem:[%s6 + $0x280] sm:$0xff]
    %v3119 = vld [vmem:[%s6 + $0x288] sm:$0xff]
    %v3120 = vld [vmem:[%s6 + $0x290] sm:$0xff]
    %v3121 = vld [vmem:[%s6 + $0x298] sm:$0xff]
    %v3122 = vld [vmem:[%s6 + $0x2a0] sm:$0xff]
    %v3123 = vld [vmem:[%s6 + $0x2a8] sm:$0xff]
    %v3124 = vld [vmem:[%s6 + $0x2b0] sm:$0xff]
    %v3125 = vld [vmem:[%s6 + $0x2b8] sm:$0xff]
    %v3126 = vld [vmem:[%s6 + $0x2c0] sm:$0xff]
    %v3127 = vld [vmem:[%s6 + $0x2c8] sm:$0xff]
    %v3128 = vld [vmem:[%s6 + $0x2d0] sm:$0xff]
    %v3129 = vld [vmem:[%s6 + $0x2d8] sm:$0xff]
    %v3130 = vld [vmem:[%s6 + $0x2e0] sm:$0xff]
    %v3131 = vld [vmem:[%s6 + $0x2e8] sm:$0xff]
    %v3132 = vld [vmem:[%s6 + $0x2f0] sm:$0xff]
    %v3133 = vld [vmem:[%s6 + $0x2f8] sm:$0xff]
    %v3134 = vld [vmem:[%s6 + $0x300] sm:$0xff]
    %v3135 = vld [vmem:[%s6 + $0x308] sm:$0xff]
    %v3136 = vld [vmem:[%s6 + $0x310] sm:$0xff]
    %v3137 = vld [vmem:[%s6 + $0x318] sm:$0xff]
    %v3138 = vld [vmem:[%s6 + $0x320] sm:$0xff]
    %v3139 = vld [vmem:[%s6 + $0x328] sm:$0xff]
    %v3140 = vld [vmem:[%s6 + $0x330] sm:$0xff]
    %v3141 = vld [vmem:[%s6 + $0x338] sm:$0xff]
    %v3142 = vld [vmem:[%s6 + $0x340] sm:$0xff]
    %v3143 = vld [vmem:[%s6 + $0x348] sm:$0xff]
    %v3144 = vld [vmem:[%s6 + $0x350] sm:$0xff]
    %v3145 = vld [vmem:[%s6 + $0x358] sm:$0xff]
    %v3146 = vld [vmem:[%s6 + $0x360] sm:$0xff]
    %v3147 = vld [vmem:[%s6 + $0x368] sm:$0xff]
    %v3148 = vld [vmem:[%s6 + $0x370] sm:$0xff]
    %v3149 = vld [vmem:[%s6 + $0x378] sm:$0xff]
    %v3150 = vld [vmem:[%s6 + $0x380] sm:$0xff]
    %v3151 = vld [vmem:[%s6 + $0x388] sm:$0xff]
    %v3152 = vld [vmem:[%s6 + $0x390] sm:$0xff]
    %v3153 = vld [vmem:[%s6 + $0x398] sm:$0xff]
    %v3154 = vld [vmem:[%s6 + $0x3a0] sm:$0xff]
    %v3155 = vld [vmem:[%s6 + $0x3a8] sm:$0xff]
    %v3156 = vld [vmem:[%s6 + $0x3b0] sm:$0xff]
    %v3157 = vld [vmem:[%s6 + $0x3b8] sm:$0xff]
    %v3158 = vld [vmem:[%s6 + $0x3c0] sm:$0xff]
    %v3159 = vld [vmem:[%s6 + $0x3c8] sm:$0xff]
    %v3160 = vld [vmem:[%s6 + $0x3d0] sm:$0xff]
    %v3161 = vld [vmem:[%s6 + $0x3d8] sm:$0xff]
    %v3162 = vld [vmem:[%s6 + $0x3e0] sm:$0xff]
    %v3163 = vld [vmem:[%s6 + $0x3e8] sm:$0xff]
    %v3164 = vld [vmem:[%s6 + $0x3f0] sm:$0xff]
    %v3165 = vld [vmem:[%s6 + $0x3f8] sm:$0xff]
    %v3166 = vld [vmem:[%s7] sm:$0xff]
    %v3167 = vld [vmem:[%s7 + $0x8] sm:$0xff]
    %v3170 = vlaneseq
    %v3171 = vshrl.u32 %v3170, 7
    %v3172 = vsub.s32 0, %v3171
    %v3173 = vrot.slane %v3166, %v3172
    %v3174 = vlaneseq
    %v3175 = vshrl.u32 %v3174, 7
    %v3176 = vsub.s32 1, %v3175
    %v3177 = vrot.slane %v3166, %v3176
    %v3178 = vlaneseq
    %v3179 = vshrl.u32 %v3178, 7
    %v3180 = vsub.s32 2, %v3179
    %v3181 = vrot.slane %v3166, %v3180
    %v3182 = vlaneseq
    %v3183 = vshrl.u32 %v3182, 7
    %v3184 = vsub.s32 3, %v3183
    %v3185 = vrot.slane %v3166, %v3184
    %v3186 = vlaneseq
    %v3187 = vshrl.u32 %v3186, 7
    %v3188 = vsub.s32 4, %v3187
    %v3189 = vrot.slane %v3166, %v3188
    %v3190 = vlaneseq
    %v3191 = vshrl.u32 %v3190, 7
    %v3192 = vsub.s32 5, %v3191
    %v3193 = vrot.slane %v3166, %v3192
    %v3194 = vlaneseq
    %v3195 = vshrl.u32 %v3194, 7
    %v3196 = vsub.s32 6, %v3195
    %v3197 = vrot.slane %v3166, %v3196
    %v3198 = vlaneseq
    %v3199 = vshrl.u32 %v3198, 7
    %v3200 = vsub.s32 7, %v3199
    %v3201 = vrot.slane %v3166, %v3200
    %v3202 = vlaneseq
    %v3203 = vshrl.u32 %v3202, 7
    %v3204 = vsub.s32 0, %v3203
    %v3205 = vrot.slane %v3167, %v3204
    %v3206 = vlaneseq
    %v3207 = vshrl.u32 %v3206, 7
    %v3208 = vsub.s32 1, %v3207
    %v3209 = vrot.slane %v3167, %v3208
    %v3210 = vlaneseq
    %v3211 = vshrl.u32 %v3210, 7
    %v3212 = vsub.s32 2, %v3211
    %v3213 = vrot.slane %v3167, %v3212
    %v3214 = vlaneseq
    %v3215 = vshrl.u32 %v3214, 7
    %v3216 = vsub.s32 3, %v3215
    %v3217 = vrot.slane %v3167, %v3216
    %v3218 = vlaneseq
    %v3219 = vshrl.u32 %v3218, 7
    %v3220 = vsub.s32 4, %v3219
    %v3221 = vrot.slane %v3167, %v3220
    %v3222 = vlaneseq
    %v3223 = vshrl.u32 %v3222, 7
    %v3224 = vsub.s32 5, %v3223
    %v3225 = vrot.slane %v3167, %v3224
    %v3226 = vlaneseq
    %v3227 = vshrl.u32 %v3226, 7
    %v3228 = vsub.s32 6, %v3227
    %v3229 = vrot.slane %v3167, %v3228
    %v3230 = vlaneseq
    %v3231 = vshrl.u32 %v3230, 7
    %v3232 = vsub.s32 7, %v3231
    %v3233 = vrot.slane %v3167, %v3232
    %v3378 = vunpack.c.l.b16 %v3038
    %v3379 = vunpack.c.h.b16 %v3038
    %v3380 = vunpack.c.l.b16 %v3039
    %v3381 = vunpack.c.h.b16 %v3039
    %v3382 = vunpack.c.l.b16 %v3040
    %v3383 = vunpack.c.h.b16 %v3040
    %v3384 = vunpack.c.l.b16 %v3041
    %v3385 = vunpack.c.h.b16 %v3041
    %v3386 = vunpack.c.l.b16 %v3042
    %v3387 = vunpack.c.h.b16 %v3042
    %v3388 = vunpack.c.l.b16 %v3043
    %v3389 = vunpack.c.h.b16 %v3043
    %v3390 = vunpack.c.l.b16 %v3044
    %v3391 = vunpack.c.h.b16 %v3044
    %v3392 = vunpack.c.l.b16 %v3045
    %v3393 = vunpack.c.h.b16 %v3045
    %v3394 = vunpack.c.l.b16 %v3046
    %v3395 = vunpack.c.h.b16 %v3046
    %v3396 = vunpack.c.l.b16 %v3047
    %v3397 = vunpack.c.h.b16 %v3047
    %v3398 = vunpack.c.l.b16 %v3048
    %v3399 = vunpack.c.h.b16 %v3048
    %v3400 = vunpack.c.l.b16 %v3049
    %v3401 = vunpack.c.h.b16 %v3049
    %v3402 = vunpack.c.l.b16 %v3050
    %v3403 = vunpack.c.h.b16 %v3050
    %v3404 = vunpack.c.l.b16 %v3051
    %v3405 = vunpack.c.h.b16 %v3051
    %v3406 = vunpack.c.l.b16 %v3052
    %v3407 = vunpack.c.h.b16 %v3052
    %v3408 = vunpack.c.l.b16 %v3053
    %v3409 = vunpack.c.h.b16 %v3053
    %v3410 = vunpack.c.l.b16 %v3054
    %v3411 = vunpack.c.h.b16 %v3054
    %v3412 = vunpack.c.l.b16 %v3055
    %v3413 = vunpack.c.h.b16 %v3055
    %v3414 = vunpack.c.l.b16 %v3056
    %v3415 = vunpack.c.h.b16 %v3056
    %v3416 = vunpack.c.l.b16 %v3057
    %v3417 = vunpack.c.h.b16 %v3057
    %v3418 = vunpack.c.l.b16 %v3058
    %v3419 = vunpack.c.h.b16 %v3058
    %v3420 = vunpack.c.l.b16 %v3059
    %v3421 = vunpack.c.h.b16 %v3059
    %v3422 = vunpack.c.l.b16 %v3060
    %v3423 = vunpack.c.h.b16 %v3060
    %v3424 = vunpack.c.l.b16 %v3061
    %v3425 = vunpack.c.h.b16 %v3061
    %v3426 = vunpack.c.l.b16 %v3062
    %v3427 = vunpack.c.h.b16 %v3062
    %v3428 = vunpack.c.l.b16 %v3063
    %v3429 = vunpack.c.h.b16 %v3063
    %v3430 = vunpack.c.l.b16 %v3064
    %v3431 = vunpack.c.h.b16 %v3064
    %v3432 = vunpack.c.l.b16 %v3065
    %v3433 = vunpack.c.h.b16 %v3065
    %v3434 = vunpack.c.l.b16 %v3066
    %v3435 = vunpack.c.h.b16 %v3066
    %v3436 = vunpack.c.l.b16 %v3067
    %v3437 = vunpack.c.h.b16 %v3067
    %v3438 = vunpack.c.l.b16 %v3068
    %v3439 = vunpack.c.h.b16 %v3068
    %v3440 = vunpack.c.l.b16 %v3069
    %v3441 = vunpack.c.h.b16 %v3069
    %v3442 = vunpack.c.l.b16 %v3070
    %v3443 = vunpack.c.h.b16 %v3070
    %v3444 = vunpack.c.l.b16 %v3071
    %v3445 = vunpack.c.h.b16 %v3071
    %v3446 = vunpack.c.l.b16 %v3072
    %v3447 = vunpack.c.h.b16 %v3072
    %v3448 = vunpack.c.l.b16 %v3073
    %v3449 = vunpack.c.h.b16 %v3073
    %v3450 = vunpack.c.l.b16 %v3074
    %v3451 = vunpack.c.h.b16 %v3074
    %v3452 = vunpack.c.l.b16 %v3075
    %v3453 = vunpack.c.h.b16 %v3075
    %v3454 = vunpack.c.l.b16 %v3076
    %v3455 = vunpack.c.h.b16 %v3076
    %v3456 = vunpack.c.l.b16 %v3077
    %v3457 = vunpack.c.h.b16 %v3077
    %v3458 = vunpack.c.l.b16 %v3078
    %v3459 = vunpack.c.h.b16 %v3078
    %v3460 = vunpack.c.l.b16 %v3079
    %v3461 = vunpack.c.h.b16 %v3079
    %v3462 = vunpack.c.l.b16 %v3080
    %v3463 = vunpack.c.h.b16 %v3080
    %v3464 = vunpack.c.l.b16 %v3081
    %v3465 = vunpack.c.h.b16 %v3081
    %v3466 = vunpack.c.l.b16 %v3082
    %v3467 = vunpack.c.h.b16 %v3082
    %v3468 = vunpack.c.l.b16 %v3083
    %v3469 = vunpack.c.h.b16 %v3083
    %v3470 = vunpack.c.l.b16 %v3084
    %v3471 = vunpack.c.h.b16 %v3084
    %v3472 = vunpack.c.l.b16 %v3085
    %v3473 = vunpack.c.h.b16 %v3085
    %v3474 = vunpack.c.l.b16 %v3086
    %v3475 = vunpack.c.h.b16 %v3086
    %v3476 = vunpack.c.l.b16 %v3087
    %v3477 = vunpack.c.h.b16 %v3087
    %v3478 = vunpack.c.l.b16 %v3088
    %v3479 = vunpack.c.h.b16 %v3088
    %v3480 = vunpack.c.l.b16 %v3089
    %v3481 = vunpack.c.h.b16 %v3089
    %v3482 = vunpack.c.l.b16 %v3090
    %v3483 = vunpack.c.h.b16 %v3090
    %v3484 = vunpack.c.l.b16 %v3091
    %v3485 = vunpack.c.h.b16 %v3091
    %v3486 = vunpack.c.l.b16 %v3092
    %v3487 = vunpack.c.h.b16 %v3092
    %v3488 = vunpack.c.l.b16 %v3093
    %v3489 = vunpack.c.h.b16 %v3093
    %v3490 = vunpack.c.l.b16 %v3094
    %v3491 = vunpack.c.h.b16 %v3094
    %v3492 = vunpack.c.l.b16 %v3095
    %v3493 = vunpack.c.h.b16 %v3095
    %v3494 = vunpack.c.l.b16 %v3096
    %v3495 = vunpack.c.h.b16 %v3096
    %v3496 = vunpack.c.l.b16 %v3097
    %v3497 = vunpack.c.h.b16 %v3097
    %v3498 = vunpack.c.l.b16 %v3098
    %v3499 = vunpack.c.h.b16 %v3098
    %v3500 = vunpack.c.l.b16 %v3099
    %v3501 = vunpack.c.h.b16 %v3099
    %v3502 = vunpack.c.l.b16 %v3100
    %v3503 = vunpack.c.h.b16 %v3100
    %v3504 = vunpack.c.l.b16 %v3101
    %v3505 = vunpack.c.h.b16 %v3101
    %v3506 = vunpack.c.l.b16 %v3102
    %v3507 = vunpack.c.h.b16 %v3102
    %v3508 = vunpack.c.l.b16 %v3103
    %v3509 = vunpack.c.h.b16 %v3103
    %v3510 = vunpack.c.l.b16 %v3104
    %v3511 = vunpack.c.h.b16 %v3104
    %v3512 = vunpack.c.l.b16 %v3105
    %v3513 = vunpack.c.h.b16 %v3105
    %v3514 = vunpack.c.l.b16 %v3106
    %v3515 = vunpack.c.h.b16 %v3106
    %v3516 = vunpack.c.l.b16 %v3107
    %v3517 = vunpack.c.h.b16 %v3107
    %v3518 = vunpack.c.l.b16 %v3108
    %v3519 = vunpack.c.h.b16 %v3108
    %v3520 = vunpack.c.l.b16 %v3109
    %v3521 = vunpack.c.h.b16 %v3109
    %v3522 = vunpack.c.l.b16 %v3110
    %v3523 = vunpack.c.h.b16 %v3110
    %v3524 = vunpack.c.l.b16 %v3111
    %v3525 = vunpack.c.h.b16 %v3111
    %v3526 = vunpack.c.l.b16 %v3112
    %v3527 = vunpack.c.h.b16 %v3112
    %v3528 = vunpack.c.l.b16 %v3113
    %v3529 = vunpack.c.h.b16 %v3113
    %v3530 = vunpack.c.l.b16 %v3114
    %v3531 = vunpack.c.h.b16 %v3114
    %v3532 = vunpack.c.l.b16 %v3115
    %v3533 = vunpack.c.h.b16 %v3115
    %v3534 = vunpack.c.l.b16 %v3116
    %v3535 = vunpack.c.h.b16 %v3116
    %v3536 = vunpack.c.l.b16 %v3117
    %v3537 = vunpack.c.h.b16 %v3117
    %v3538 = vunpack.c.l.b16 %v3118
    %v3539 = vunpack.c.h.b16 %v3118
    %v3540 = vunpack.c.l.b16 %v3119
    %v3541 = vunpack.c.h.b16 %v3119
    %v3542 = vunpack.c.l.b16 %v3120
    %v3543 = vunpack.c.h.b16 %v3120
    %v3544 = vunpack.c.l.b16 %v3121
    %v3545 = vunpack.c.h.b16 %v3121
    %v3546 = vunpack.c.l.b16 %v3122
    %v3547 = vunpack.c.h.b16 %v3122
    %v3548 = vunpack.c.l.b16 %v3123
    %v3549 = vunpack.c.h.b16 %v3123
    %v3550 = vunpack.c.l.b16 %v3124
    %v3551 = vunpack.c.h.b16 %v3124
    %v3552 = vunpack.c.l.b16 %v3125
    %v3553 = vunpack.c.h.b16 %v3125
    %v3554 = vunpack.c.l.b16 %v3126
    %v3555 = vunpack.c.h.b16 %v3126
    %v3556 = vunpack.c.l.b16 %v3127
    %v3557 = vunpack.c.h.b16 %v3127
    %v3558 = vunpack.c.l.b16 %v3128
    %v3559 = vunpack.c.h.b16 %v3128
    %v3560 = vunpack.c.l.b16 %v3129
    %v3561 = vunpack.c.h.b16 %v3129
    %v3562 = vunpack.c.l.b16 %v3130
    %v3563 = vunpack.c.h.b16 %v3130
    %v3564 = vunpack.c.l.b16 %v3131
    %v3565 = vunpack.c.h.b16 %v3131
    %v3566 = vunpack.c.l.b16 %v3132
    %v3567 = vunpack.c.h.b16 %v3132
    %v3568 = vunpack.c.l.b16 %v3133
    %v3569 = vunpack.c.h.b16 %v3133
    %v3570 = vunpack.c.l.b16 %v3134
    %v3571 = vunpack.c.h.b16 %v3134
    %v3572 = vunpack.c.l.b16 %v3135
    %v3573 = vunpack.c.h.b16 %v3135
    %v3574 = vunpack.c.l.b16 %v3136
    %v3575 = vunpack.c.h.b16 %v3136
    %v3576 = vunpack.c.l.b16 %v3137
    %v3577 = vunpack.c.h.b16 %v3137
    %v3578 = vunpack.c.l.b16 %v3138
    %v3579 = vunpack.c.h.b16 %v3138
    %v3580 = vunpack.c.l.b16 %v3139
    %v3581 = vunpack.c.h.b16 %v3139
    %v3582 = vunpack.c.l.b16 %v3140
    %v3583 = vunpack.c.h.b16 %v3140
    %v3584 = vunpack.c.l.b16 %v3141
    %v3585 = vunpack.c.h.b16 %v3141
    %v3586 = vunpack.c.l.b16 %v3142
    %v3587 = vunpack.c.h.b16 %v3142
    %v3588 = vunpack.c.l.b16 %v3143
    %v3589 = vunpack.c.h.b16 %v3143
    %v3590 = vunpack.c.l.b16 %v3144
    %v3591 = vunpack.c.h.b16 %v3144
    %v3592 = vunpack.c.l.b16 %v3145
    %v3593 = vunpack.c.h.b16 %v3145
    %v3594 = vunpack.c.l.b16 %v3146
    %v3595 = vunpack.c.h.b16 %v3146
    %v3596 = vunpack.c.l.b16 %v3147
    %v3597 = vunpack.c.h.b16 %v3147
    %v3598 = vunpack.c.l.b16 %v3148
    %v3599 = vunpack.c.h.b16 %v3148
    %v3600 = vunpack.c.l.b16 %v3149
    %v3601 = vunpack.c.h.b16 %v3149
    %v3602 = vunpack.c.l.b16 %v3150
    %v3603 = vunpack.c.h.b16 %v3150
    %v3604 = vunpack.c.l.b16 %v3151
    %v3605 = vunpack.c.h.b16 %v3151
    %v3606 = vunpack.c.l.b16 %v3152
    %v3607 = vunpack.c.h.b16 %v3152
    %v3608 = vunpack.c.l.b16 %v3153
    %v3609 = vunpack.c.h.b16 %v3153
    %v3610 = vunpack.c.l.b16 %v3154
    %v3611 = vunpack.c.h.b16 %v3154
    %v3612 = vunpack.c.l.b16 %v3155
    %v3613 = vunpack.c.h.b16 %v3155
    %v3614 = vunpack.c.l.b16 %v3156
    %v3615 = vunpack.c.h.b16 %v3156
    %v3616 = vunpack.c.l.b16 %v3157
    %v3617 = vunpack.c.h.b16 %v3157
    %v3618 = vunpack.c.l.b16 %v3158
    %v3619 = vunpack.c.h.b16 %v3158
    %v3620 = vunpack.c.l.b16 %v3159
    %v3621 = vunpack.c.h.b16 %v3159
    %v3622 = vunpack.c.l.b16 %v3160
    %v3623 = vunpack.c.h.b16 %v3160
    %v3624 = vunpack.c.l.b16 %v3161
    %v3625 = vunpack.c.h.b16 %v3161
    %v3626 = vunpack.c.l.b16 %v3162
    %v3627 = vunpack.c.h.b16 %v3162
    %v3628 = vunpack.c.l.b16 %v3163
    %v3629 = vunpack.c.h.b16 %v3163
    %v3630 = vunpack.c.l.b16 %v3164
    %v3631 = vunpack.c.h.b16 %v3164
    %v3632 = vunpack.c.l.b16 %v3165
    %v3633 = vunpack.c.h.b16 %v3165
    %v3634 = vpack.c.b16 %v3394, %v3378
    %v3635 = vpack.c.b16 %v3395, %v3379
    %v3636 = vpack.c.b16 %v3396, %v3380
    %v3637 = vpack.c.b16 %v3397, %v3381
    %v3638 = vpack.c.b16 %v3398, %v3382
    %v3639 = vpack.c.b16 %v3399, %v3383
    %v3640 = vpack.c.b16 %v3400, %v3384
    %v3641 = vpack.c.b16 %v3401, %v3385
    %v3642 = vpack.c.b16 %v3402, %v3386
    %v3643 = vpack.c.b16 %v3403, %v3387
    %v3644 = vpack.c.b16 %v3404, %v3388
    %v3645 = vpack.c.b16 %v3405, %v3389
    %v3646 = vpack.c.b16 %v3406, %v3390
    %v3647 = vpack.c.b16 %v3407, %v3391
    %v3648 = vpack.c.b16 %v3408, %v3392
    %v3649 = vpack.c.b16 %v3409, %v3393
    %v3650 = vpack.c.b16 %v3426, %v3410
    %v3651 = vpack.c.b16 %v3427, %v3411
    %v3652 = vpack.c.b16 %v3428, %v3412
    %v3653 = vpack.c.b16 %v3429, %v3413
    %v3654 = vpack.c.b16 %v3430, %v3414
    %v3655 = vpack.c.b16 %v3431, %v3415
    %v3656 = vpack.c.b16 %v3432, %v3416
    %v3657 = vpack.c.b16 %v3433, %v3417
    %v3658 = vpack.c.b16 %v3434, %v3418
    %v3659 = vpack.c.b16 %v3435, %v3419
    %v3660 = vpack.c.b16 %v3436, %v3420
    %v3661 = vpack.c.b16 %v3437, %v3421
    %v3662 = vpack.c.b16 %v3438, %v3422
    %v3663 = vpack.c.b16 %v3439, %v3423
    %v3664 = vpack.c.b16 %v3440, %v3424
    %v3665 = vpack.c.b16 %v3441, %v3425
    %v3666 = vpack.c.b16 %v3458, %v3442
    %v3667 = vpack.c.b16 %v3459, %v3443
    %v3668 = vpack.c.b16 %v3460, %v3444
    %v3669 = vpack.c.b16 %v3461, %v3445
    %v3670 = vpack.c.b16 %v3462, %v3446
    %v3671 = vpack.c.b16 %v3463, %v3447
    %v3672 = vpack.c.b16 %v3464, %v3448
    %v3673 = vpack.c.b16 %v3465, %v3449
    %v3674 = vpack.c.b16 %v3466, %v3450
    %v3675 = vpack.c.b16 %v3467, %v3451
    %v3676 = vpack.c.b16 %v3468, %v3452
    %v3677 = vpack.c.b16 %v3469, %v3453
    %v3678 = vpack.c.b16 %v3470, %v3454
    %v3679 = vpack.c.b16 %v3471, %v3455
    %v3680 = vpack.c.b16 %v3472, %v3456
    %v3681 = vpack.c.b16 %v3473, %v3457
    %v3682 = vpack.c.b16 %v3490, %v3474
    %v3683 = vpack.c.b16 %v3491, %v3475
    %v3684 = vpack.c.b16 %v3492, %v3476
    %v3685 = vpack.c.b16 %v3493, %v3477
    %v3686 = vpack.c.b16 %v3494, %v3478
    %v3687 = vpack.c.b16 %v3495, %v3479
    %v3688 = vpack.c.b16 %v3496, %v3480
    %v3689 = vpack.c.b16 %v3497, %v3481
    %v3690 = vpack.c.b16 %v3498, %v3482
    %v3691 = vpack.c.b16 %v3499, %v3483
    %v3692 = vpack.c.b16 %v3500, %v3484
    %v3693 = vpack.c.b16 %v3501, %v3485
    %v3694 = vpack.c.b16 %v3502, %v3486
    %v3695 = vpack.c.b16 %v3503, %v3487
    %v3696 = vpack.c.b16 %v3504, %v3488
    %v3697 = vpack.c.b16 %v3505, %v3489
    %v3698 = vpack.c.b16 %v3522, %v3506
    %v3699 = vpack.c.b16 %v3523, %v3507
    %v3700 = vpack.c.b16 %v3524, %v3508
    %v3701 = vpack.c.b16 %v3525, %v3509
    %v3702 = vpack.c.b16 %v3526, %v3510
    %v3703 = vpack.c.b16 %v3527, %v3511
    %v3704 = vpack.c.b16 %v3528, %v3512
    %v3705 = vpack.c.b16 %v3529, %v3513
    %v3706 = vpack.c.b16 %v3530, %v3514
    %v3707 = vpack.c.b16 %v3531, %v3515
    %v3708 = vpack.c.b16 %v3532, %v3516
    %v3709 = vpack.c.b16 %v3533, %v3517
    %v3710 = vpack.c.b16 %v3534, %v3518
    %v3711 = vpack.c.b16 %v3535, %v3519
    %v3712 = vpack.c.b16 %v3536, %v3520
    %v3713 = vpack.c.b16 %v3537, %v3521
    %v3714 = vpack.c.b16 %v3554, %v3538
    %v3715 = vpack.c.b16 %v3555, %v3539
    %v3716 = vpack.c.b16 %v3556, %v3540
    %v3717 = vpack.c.b16 %v3557, %v3541
    %v3718 = vpack.c.b16 %v3558, %v3542
    %v3719 = vpack.c.b16 %v3559, %v3543
    %v3720 = vpack.c.b16 %v3560, %v3544
    %v3721 = vpack.c.b16 %v3561, %v3545
    %v3722 = vpack.c.b16 %v3562, %v3546
    %v3723 = vpack.c.b16 %v3563, %v3547
    %v3724 = vpack.c.b16 %v3564, %v3548
    %v3725 = vpack.c.b16 %v3565, %v3549
    %v3726 = vpack.c.b16 %v3566, %v3550
    %v3727 = vpack.c.b16 %v3567, %v3551
    %v3728 = vpack.c.b16 %v3568, %v3552
    %v3729 = vpack.c.b16 %v3569, %v3553
    %v3730 = vpack.c.b16 %v3586, %v3570
    %v3731 = vpack.c.b16 %v3587, %v3571
    %v3732 = vpack.c.b16 %v3588, %v3572
    %v3733 = vpack.c.b16 %v3589, %v3573
    %v3734 = vpack.c.b16 %v3590, %v3574
    %v3735 = vpack.c.b16 %v3591, %v3575
    %v3736 = vpack.c.b16 %v3592, %v3576
    %v3737 = vpack.c.b16 %v3593, %v3577
    %v3738 = vpack.c.b16 %v3594, %v3578
    %v3739 = vpack.c.b16 %v3595, %v3579
    %v3740 = vpack.c.b16 %v3596, %v3580
    %v3741 = vpack.c.b16 %v3597, %v3581
    %v3742 = vpack.c.b16 %v3598, %v3582
    %v3743 = vpack.c.b16 %v3599, %v3583
    %v3744 = vpack.c.b16 %v3600, %v3584
    %v3745 = vpack.c.b16 %v3601, %v3585
    %v3746 = vpack.c.b16 %v3618, %v3602
    %v3747 = vpack.c.b16 %v3619, %v3603
    %v3748 = vpack.c.b16 %v3620, %v3604
    %v3749 = vpack.c.b16 %v3621, %v3605
    %v3750 = vpack.c.b16 %v3622, %v3606
    %v3751 = vpack.c.b16 %v3623, %v3607
    %v3752 = vpack.c.b16 %v3624, %v3608
    %v3753 = vpack.c.b16 %v3625, %v3609
    %v3754 = vpack.c.b16 %v3626, %v3610
    %v3755 = vpack.c.b16 %v3627, %v3611
    %v3756 = vpack.c.b16 %v3628, %v3612
    %v3757 = vpack.c.b16 %v3629, %v3613
    %v3758 = vpack.c.b16 %v3630, %v3614
    %v3759 = vpack.c.b16 %v3631, %v3615
    %v3760 = vpack.c.b16 %v3632, %v3616
    %v3761 = vpack.c.b16 %v3633, %v3617
    %3890 = vmatprep.subr.bf16.mxu0 %v3635
    %3891 = vmatpush1.bf16.msra.mxu0 %v3634
    %3892 = vmatprep.subr.bf16.mxu0 %v3651
    %3893 = vmatpush1.bf16.msra.mxu0 %v3650
    %3894 = vmatprep.subr.bf16.mxu0 %v3667
    %3895 = vmatpush1.bf16.msra.mxu0 %v3666
    %3896 = vmatprep.subr.bf16.mxu0 %v3683
    %3897 = vmatpush1.bf16.msra.mxu0 %v3682
    %3898 = vmatprep.subr.bf16.mxu0 %v3699
    %3899 = vmatpush1.bf16.msra.mxu0 %v3698
    %3900 = vmatprep.subr.bf16.mxu0 %v3715
    %3901 = vmatpush1.bf16.msra.mxu0 %v3714
    %3902 = vmatprep.subr.bf16.mxu0 %v3731
    %3903 = vmatpush1.bf16.msra.mxu0 %v3730
    %3904 = vmatprep.subr.bf16.mxu0 %v3747
    %3905 = vmatpush1.bf16.msra.mxu0 %v3746
    %3906 = vmatprep.subr.bf16.mxu0 0
    %3907 = vmatpush1.bf16.msra.mxu0 0
    %3908 = vmatprep.subr.bf16.mxu0 0
    %3909 = vmatpush1.bf16.msra.mxu0 0
    %3910 = vmatprep.subr.bf16.mxu0 0
    %3911 = vmatpush1.bf16.msra.mxu0 0
    %3912 = vmatprep.subr.bf16.mxu0 0
    %3913 = vmatpush1.bf16.msra.mxu0 0
    %3914 = vmatprep.subr.bf16.mxu0 0
    %3915 = vmatpush1.bf16.msra.mxu0 0
    %3916 = vmatprep.subr.bf16.mxu0 0
    %3917 = vmatpush1.bf16.msra.mxu0 0
    %3918 = vmatprep.subr.bf16.mxu0 0
    %3919 = vmatpush1.bf16.msra.mxu0 0
    %3920 = vmatprep.subr.bf16.mxu0 0
    %3921 = vmatpush1.bf16.msra.mxu0 0
    %3922 = vmatprep.mubr.bf16.mxu0 0
    %3923 = vmatmul.mubr.bf16.gmra.mrb[0].mxu0 %v3037
    %v3924 = vpop.f32.mrb[0].mxu0
    %v3925 = vadd.f32 %v3173, %v3924
    %v3926 = vpop.f32.mrb[0].mxu0
    %v3927 = vadd.f32 %v3177, %v3926
    %v3928 = vpop.f32.mrb[0].mxu0
    %v3929 = vpop.f32.mrb[0].mxu0
    %3930 = vdwg.mxu0
    %3931 = vmatprep.subr.bf16.mxu0 %v3637
    %3932 = vmatpush1.bf16.msra.mxu0 %v3636
    %3933 = vmatprep.subr.bf16.mxu0 %v3653
    %3934 = vmatpush1.bf16.msra.mxu0 %v3652
    %3935 = vmatprep.subr.bf16.mxu0 %v3669
    %3936 = vmatpush1.bf16.msra.mxu0 %v3668
    %3937 = vmatprep.subr.bf16.mxu0 %v3685
    %3938 = vmatpush1.bf16.msra.mxu0 %v3684
    %3939 = vmatprep.subr.bf16.mxu0 %v3701
    %3940 = vmatpush1.bf16.msra.mxu0 %v3700
    %3941 = vmatprep.subr.bf16.mxu0 %v3717
    %3942 = vmatpush1.bf16.msra.mxu0 %v3716
    %3943 = vmatprep.subr.bf16.mxu0 %v3733
    %3944 = vmatpush1.bf16.msra.mxu0 %v3732
    %3945 = vmatprep.subr.bf16.mxu0 %v3749
    %3946 = vmatpush1.bf16.msra.mxu0 %v3748
    %3947 = vmatprep.subr.bf16.mxu0 0
    %3948 = vmatpush1.bf16.msra.mxu0 0
    %3949 = vmatprep.subr.bf16.mxu0 0
    %3950 = vmatpush1.bf16.msra.mxu0 0
    %3951 = vmatprep.subr.bf16.mxu0 0
    %3952 = vmatpush1.bf16.msra.mxu0 0
    %3953 = vmatprep.subr.bf16.mxu0 0
    %3954 = vmatpush1.bf16.msra.mxu0 0
    %3955 = vmatprep.subr.bf16.mxu0 0
    %3956 = vmatpush1.bf16.msra.mxu0 0
    %3957 = vmatprep.subr.bf16.mxu0 0
    %3958 = vmatpush1.bf16.msra.mxu0 0
    %3959 = vmatprep.subr.bf16.mxu0 0
    %3960 = vmatpush1.bf16.msra.mxu0 0
    %3961 = vmatprep.subr.bf16.mxu0 0
    %3962 = vmatpush1.bf16.msra.mxu0 0
    %3963 = vmatprep.mubr.bf16.mxu0 0
    %3964 = vmatmul.mubr.bf16.gmra.mrb[0].mxu0 %v3037
    %v3965 = vpop.f32.mrb[0].mxu0
    %v3966 = vadd.f32 %v3181, %v3965
    %v3967 = vpop.f32.mrb[0].mxu0
    %v3968 = vadd.f32 %v3185, %v3967
    %v3969 = vpop.f32.mrb[0].mxu0
    %v3970 = vpop.f32.mrb[0].mxu0
    %3971 = vdwg.mxu0
    %3972 = vmatprep.subr.bf16.mxu0 %v3639
    %3973 = vmatpush1.bf16.msra.mxu0 %v3638
    %3974 = vmatprep.subr.bf16.mxu0 %v3655
    %3975 = vmatpush1.bf16.msra.mxu0 %v3654
    %3976 = vmatprep.subr.bf16.mxu0 %v3671
    %3977 = vmatpush1.bf16.msra.mxu0 %v3670
    %3978 = vmatprep.subr.bf16.mxu0 %v3687
    %3979 = vmatpush1.bf16.msra.mxu0 %v3686
    %3980 = vmatprep.subr.bf16.mxu0 %v3703
    %3981 = vmatpush1.bf16.msra.mxu0 %v3702
    %3982 = vmatprep.subr.bf16.mxu0 %v3719
    %3983 = vmatpush1.bf16.msra.mxu0 %v3718
    %3984 = vmatprep.subr.bf16.mxu0 %v3735
    %3985 = vmatpush1.bf16.msra.mxu0 %v3734
    %3986 = vmatprep.subr.bf16.mxu0 %v3751
    %3987 = vmatpush1.bf16.msra.mxu0 %v3750
    %3988 = vmatprep.subr.bf16.mxu0 0
    %3989 = vmatpush1.bf16.msra.mxu0 0
    %3990 = vmatprep.subr.bf16.mxu0 0
    %3991 = vmatpush1.bf16.msra.mxu0 0
    %3992 = vmatprep.subr.bf16.mxu0 0
    %3993 = vmatpush1.bf16.msra.mxu0 0
    %3994 = vmatprep.subr.bf16.mxu0 0
    %3995 = vmatpush1.bf16.msra.mxu0 0
    %3996 = vmatprep.subr.bf16.mxu0 0
    %3997 = vmatpush1.bf16.msra.mxu0 0
    %3998 = vmatprep.subr.bf16.mxu0 0
    %3999 = vmatpush1.bf16.msra.mxu0 0
    %4000 = vmatprep.subr.bf16.mxu0 0
    %4001 = vmatpush1.bf16.msra.mxu0 0
    %4002 = vmatprep.subr.bf16.mxu0 0
    %4003 = vmatpush1.bf16.msra.mxu0 0
    %4004 = vmatprep.mubr.bf16.mxu0 0
    %4005 = vmatmul.mubr.bf16.gmra.mrb[0].mxu0 %v3037
    %v4006 = vpop.f32.mrb[0].mxu0
    %v4007 = vadd.f32 %v3189, %v4006
    %v4008 = vpop.f32.mrb[0].mxu0
    %v4009 = vadd.f32 %v3193, %v4008
    %v4010 = vpop.f32.mrb[0].mxu0
    %v4011 = vpop.f32.mrb[0].mxu0
    %4012 = vdwg.mxu0
    %4013 = vmatprep.subr.bf16.mxu0 %v3641
    %4014 = vmatpush1.bf16.msra.mxu0 %v3640
    %4015 = vmatprep.subr.bf16.mxu0 %v3657
    %4016 = vmatpush1.bf16.msra.mxu0 %v3656
    %4017 = vmatprep.subr.bf16.mxu0 %v3673
    %4018 = vmatpush1.bf16.msra.mxu0 %v3672
    %4019 = vmatprep.subr.bf16.mxu0 %v3689
    %4020 = vmatpush1.bf16.msra.mxu0 %v3688
    %4021 = vmatprep.subr.bf16.mxu0 %v3705
    %4022 = vmatpush1.bf16.msra.mxu0 %v3704
    %4023 = vmatprep.subr.bf16.mxu0 %v3721
    %4024 = vmatpush1.bf16.msra.mxu0 %v3720
    %4025 = vmatprep.subr.bf16.mxu0 %v3737
    %4026 = vmatpush1.bf16.msra.mxu0 %v3736
    %4027 = vmatprep.subr.bf16.mxu0 %v3753
    %4028 = vmatpush1.bf16.msra.mxu0 %v3752
    %4029 = vmatprep.subr.bf16.mxu0 0
    %4030 = vmatpush1.bf16.msra.mxu0 0
    %4031 = vmatprep.subr.bf16.mxu0 0
    %4032 = vmatpush1.bf16.msra.mxu0 0
    %4033 = vmatprep.subr.bf16.mxu0 0
    %4034 = vmatpush1.bf16.msra.mxu0 0
    %4035 = vmatprep.subr.bf16.mxu0 0
    %4036 = vmatpush1.bf16.msra.mxu0 0
    %4037 = vmatprep.subr.bf16.mxu0 0
    %4038 = vmatpush1.bf16.msra.mxu0 0
    %4039 = vmatprep.subr.bf16.mxu0 0
    %4040 = vmatpush1.bf16.msra.mxu0 0
    %4041 = vmatprep.subr.bf16.mxu0 0
    %4042 = vmatpush1.bf16.msra.mxu0 0
    %4043 = vmatprep.subr.bf16.mxu0 0
    %4044 = vmatpush1.bf16.msra.mxu0 0
    %4045 = vmatprep.mubr.bf16.mxu0 0
    %4046 = vmatmul.mubr.bf16.gmra.mrb[0].mxu0 %v3037
    %v4047 = vpop.f32.mrb[0].mxu0
    %v4048 = vadd.f32 %v3197, %v4047
    %v4049 = vpop.f32.mrb[0].mxu0
    %v4050 = vadd.f32 %v3201, %v4049
    %v4051 = vpop.f32.mrb[0].mxu0
    %v4052 = vpop.f32.mrb[0].mxu0
    %4053 = vdwg.mxu0
    %4054 = vmatprep.subr.bf16.mxu0 %v3643
    %4055 = vmatpush1.bf16.msra.mxu0 %v3642
    %4056 = vmatprep.subr.bf16.mxu0 %v3659
    %4057 = vmatpush1.bf16.msra.mxu0 %v3658
    %4058 = vmatprep.subr.bf16.mxu0 %v3675
    %4059 = vmatpush1.bf16.msra.mxu0 %v3674
    %4060 = vmatprep.subr.bf16.mxu0 %v3691
    %4061 = vmatpush1.bf16.msra.mxu0 %v3690
    %4062 = vmatprep.subr.bf16.mxu0 %v3707
    %4063 = vmatpush1.bf16.msra.mxu0 %v3706
    %4064 = vmatprep.subr.bf16.mxu0 %v3723
    %4065 = vmatpush1.bf16.msra.mxu0 %v3722
    %4066 = vmatprep.subr.bf16.mxu0 %v3739
    %4067 = vmatpush1.bf16.msra.mxu0 %v3738
    %4068 = vmatprep.subr.bf16.mxu0 %v3755
    %4069 = vmatpush1.bf16.msra.mxu0 %v3754
    %4070 = vmatprep.subr.bf16.mxu0 0
    %4071 = vmatpush1.bf16.msra.mxu0 0
    %4072 = vmatprep.subr.bf16.mxu0 0
    %4073 = vmatpush1.bf16.msra.mxu0 0
    %4074 = vmatprep.subr.bf16.mxu0 0
    %4075 = vmatpush1.bf16.msra.mxu0 0
    %4076 = vmatprep.subr.bf16.mxu0 0
    %4077 = vmatpush1.bf16.msra.mxu0 0
    %4078 = vmatprep.subr.bf16.mxu0 0
    %4079 = vmatpush1.bf16.msra.mxu0 0
    %4080 = vmatprep.subr.bf16.mxu0 0
    %4081 = vmatpush1.bf16.msra.mxu0 0
    %4082 = vmatprep.subr.bf16.mxu0 0
    %4083 = vmatpush1.bf16.msra.mxu0 0
    %4084 = vmatprep.subr.bf16.mxu0 0
    %4085 = vmatpush1.bf16.msra.mxu0 0
    %4086 = vmatprep.mubr.bf16.mxu0 0
    %4087 = vmatmul.mubr.bf16.gmra.mrb[0].mxu0 %v3037
    %v4088 = vpop.f32.mrb[0].mxu0
    %v4089 = vadd.f32 %v3205, %v4088
    %v4090 = vpop.f32.mrb[0].mxu0
    %v4091 = vadd.f32 %v3209, %v4090
    %v4092 = vpop.f32.mrb[0].mxu0
    %v4093 = vpop.f32.mrb[0].mxu0
    %4094 = vdwg.mxu0
    %4095 = vmatprep.subr.bf16.mxu0 %v3645
    %4096 = vmatpush1.bf16.msra.mxu0 %v3644
    %4097 = vmatprep.subr.bf16.mxu0 %v3661
    %4098 = vmatpush1.bf16.msra.mxu0 %v3660
    %4099 = vmatprep.subr.bf16.mxu0 %v3677
    %4100 = vmatpush1.bf16.msra.mxu0 %v3676
    %4101 = vmatprep.subr.bf16.mxu0 %v3693
    %4102 = vmatpush1.bf16.msra.mxu0 %v3692
    %4103 = vmatprep.subr.bf16.mxu0 %v3709
    %4104 = vmatpush1.bf16.msra.mxu0 %v3708
    %4105 = vmatprep.subr.bf16.mxu0 %v3725
    %4106 = vmatpush1.bf16.msra.mxu0 %v3724
    %4107 = vmatprep.subr.bf16.mxu0 %v3741
    %4108 = vmatpush1.bf16.msra.mxu0 %v3740
    %4109 = vmatprep.subr.bf16.mxu0 %v3757
    %4110 = vmatpush1.bf16.msra.mxu0 %v3756
    %4111 = vmatprep.subr.bf16.mxu0 0
    %4112 = vmatpush1.bf16.msra.mxu0 0
    %4113 = vmatprep.subr.bf16.mxu0 0
    %4114 = vmatpush1.bf16.msra.mxu0 0
    %4115 = vmatprep.subr.bf16.mxu0 0
    %4116 = vmatpush1.bf16.msra.mxu0 0
    %4117 = vmatprep.subr.bf16.mxu0 0
    %4118 = vmatpush1.bf16.msra.mxu0 0
    %4119 = vmatprep.subr.bf16.mxu0 0
    %4120 = vmatpush1.bf16.msra.mxu0 0
    %4121 = vmatprep.subr.bf16.mxu0 0
    %4122 = vmatpush1.bf16.msra.mxu0 0
    %4123 = vmatprep.subr.bf16.mxu0 0
    %4124 = vmatpush1.bf16.msra.mxu0 0
    %4125 = vmatprep.subr.bf16.mxu0 0
    %4126 = vmatpush1.bf16.msra.mxu0 0
    %4127 = vmatprep.mubr.bf16.mxu0 0
    %4128 = vmatmul.mubr.bf16.gmra.mrb[0].mxu0 %v3037
    %v4129 = vpop.f32.mrb[0].mxu0
    %v4130 = vadd.f32 %v3213, %v4129
    %v4131 = vpop.f32.mrb[0].mxu0
    %v4132 = vadd.f32 %v3217, %v4131
    %v4133 = vpop.f32.mrb[0].mxu0
    %v4134 = vpop.f32.mrb[0].mxu0
    %4135 = vdwg.mxu0
    %4136 = vmatprep.subr.bf16.mxu0 %v3647
    %4137 = vmatpush1.bf16.msra.mxu0 %v3646
    %4138 = vmatprep.subr.bf16.mxu0 %v3663
    %4139 = vmatpush1.bf16.msra.mxu0 %v3662
    %4140 = vmatprep.subr.bf16.mxu0 %v3679
    %4141 = vmatpush1.bf16.msra.mxu0 %v3678
    %4142 = vmatprep.subr.bf16.mxu0 %v3695
    %4143 = vmatpush1.bf16.msra.mxu0 %v3694
    %4144 = vmatprep.subr.bf16.mxu0 %v3711
    %4145 = vmatpush1.bf16.msra.mxu0 %v3710
    %4146 = vmatprep.subr.bf16.mxu0 %v3727
    %4147 = vmatpush1.bf16.msra.mxu0 %v3726
    %4148 = vmatprep.subr.bf16.mxu0 %v3743
    %4149 = vmatpush1.bf16.msra.mxu0 %v3742
    %4150 = vmatprep.subr.bf16.mxu0 %v3759
    %4151 = vmatpush1.bf16.msra.mxu0 %v3758
    %4152 = vmatprep.subr.bf16.mxu0 0
    %4153 = vmatpush1.bf16.msra.mxu0 0
    %4154 = vmatprep.subr.bf16.mxu0 0
    %4155 = vmatpush1.bf16.msra.mxu0 0
    %4156 = vmatprep.subr.bf16.mxu0 0
    %4157 = vmatpush1.bf16.msra.mxu0 0
    %4158 = vmatprep.subr.bf16.mxu0 0
    %4159 = vmatpush1.bf16.msra.mxu0 0
    %4160 = vmatprep.subr.bf16.mxu0 0
    %4161 = vmatpush1.bf16.msra.mxu0 0
    %4162 = vmatprep.subr.bf16.mxu0 0
    %4163 = vmatpush1.bf16.msra.mxu0 0
    %4164 = vmatprep.subr.bf16.mxu0 0
    %4165 = vmatpush1.bf16.msra.mxu0 0
    %4166 = vmatprep.subr.bf16.mxu0 0
    %4167 = vmatpush1.bf16.msra.mxu0 0
    %4168 = vmatprep.mubr.bf16.mxu0 0
    %4169 = vmatmul.mubr.bf16.gmra.mrb[0].mxu0 %v3037
    %v4170 = vpop.f32.mrb[0].mxu0
    %v4171 = vadd.f32 %v3221, %v4170
    %v4172 = vpop.f32.mrb[0].mxu0
    %v4173 = vadd.f32 %v3225, %v4172
    %v4174 = vpop.f32.mrb[0].mxu0
    %v4175 = vpop.f32.mrb[0].mxu0
    %4176 = vdwg.mxu0
    %4177 = vmatprep.subr.bf16.mxu0 %v3649
    %4178 = vmatpush1.bf16.msra.mxu0 %v3648
    %4179 = vmatprep.subr.bf16.mxu0 %v3665
    %4180 = vmatpush1.bf16.msra.mxu0 %v3664
    %4181 = vmatprep.subr.bf16.mxu0 %v3681
    %4182 = vmatpush1.bf16.msra.mxu0 %v3680
    %4183 = vmatprep.subr.bf16.mxu0 %v3697
    %4184 = vmatpush1.bf16.msra.mxu0 %v3696
    %4185 = vmatprep.subr.bf16.mxu0 %v3713
    %4186 = vmatpush1.bf16.msra.mxu0 %v3712
    %4187 = vmatprep.subr.bf16.mxu0 %v3729
    %4188 = vmatpush1.bf16.msra.mxu0 %v3728
    %4189 = vmatprep.subr.bf16.mxu0 %v3745
    %4190 = vmatpush1.bf16.msra.mxu0 %v3744
    %4191 = vmatprep.subr.bf16.mxu0 %v3761
    %4192 = vmatpush1.bf16.msra.mxu0 %v3760
    %4193 = vmatprep.subr.bf16.mxu0 0
    %4194 = vmatpush1.bf16.msra.mxu0 0
    %4195 = vmatprep.subr.bf16.mxu0 0
    %4196 = vmatpush1.bf16.msra.mxu0 0
    %4197 = vmatprep.subr.bf16.mxu0 0
    %4198 = vmatpush1.bf16.msra.mxu0 0
    %4199 = vmatprep.subr.bf16.mxu0 0
    %4200 = vmatpush1.bf16.msra.mxu0 0
    %4201 = vmatprep.subr.bf16.mxu0 0
    %4202 = vmatpush1.bf16.msra.mxu0 0
    %4203 = vmatprep.subr.bf16.mxu0 0
    %4204 = vmatpush1.bf16.msra.mxu0 0
    %4205 = vmatprep.subr.bf16.mxu0 0
    %4206 = vmatpush1.bf16.msra.mxu0 0
    %4207 = vmatprep.subr.bf16.mxu0 0
    %4208 = vmatpush1.bf16.msra.mxu0 0
    %4209 = vmatprep.mubr.bf16.mxu0 0
    %4210 = vmatmul.mubr.bf16.gmra.mrb[0].mxu0 %v3037
    %v4211 = vpop.f32.mrb[0].mxu0
    %v4212 = vadd.f32 %v3229, %v4211
    %v4213 = vpop.f32.mrb[0].mxu0
    %v4214 = vadd.f32 %v3233, %v4213
    %v4215 = vpop.f32.mrb[0].mxu0
    %v4216 = vpop.f32.mrb[0].mxu0
    %4217 = vdwg.mxu0
    %v4218 = vxor.u32 %v3925, 2147483648
    %v4219 = vxor.u32 %v3927, 2147483648
    %v4220 = vxor.u32 %v3966, 2147483648
    %v4221 = vxor.u32 %v3968, 2147483648
    %v4222 = vxor.u32 %v4007, 2147483648
    %v4223 = vxor.u32 %v4009, 2147483648
    %v4224 = vxor.u32 %v4048, 2147483648
    %v4225 = vxor.u32 %v4050, 2147483648
    %v4226 = vxor.u32 %v4089, 2147483648
    %v4227 = vxor.u32 %v4091, 2147483648
    %v4228 = vxor.u32 %v4130, 2147483648
    %v4229 = vxor.u32 %v4132, 2147483648
    %v4230 = vxor.u32 %v4171, 2147483648
    %v4231 = vxor.u32 %v4173, 2147483648
    %v4232 = vxor.u32 %v4212, 2147483648
    %v4233 = vxor.u32 %v4214, 2147483648
    %v4234 = vmul.f32 %v4218, 1.442695
    %v4235 = vpow.pop %v4234
    %v4236 = vmul.f32 %v4219, 1.442695
    %v4237 = vpow.pop %v4236
    %v4238 = vmul.f32 %v4220, 1.442695
    %v4239 = vpow.pop %v4238
    %v4240 = vmul.f32 %v4221, 1.442695
    %v4241 = vpow.pop %v4240
    %v4242 = vmul.f32 %v4222, 1.442695
    %v4243 = vpow.pop %v4242
    %v4244 = vmul.f32 %v4223, 1.442695
    %v4245 = vpow.pop %v4244
    %v4246 = vmul.f32 %v4224, 1.442695
    %v4247 = vpow.pop %v4246
    %v4248 = vmul.f32 %v4225, 1.442695
    %v4249 = vpow.pop %v4248
    %v4250 = vmul.f32 %v4226, 1.442695
    %v4251 = vpow.pop %v4250
    %v4252 = vmul.f32 %v4227, 1.442695
    %v4253 = vpow.pop %v4252
    %v4254 = vmul.f32 %v4228, 1.442695
    %v4255 = vpow.pop %v4254
    %v4256 = vmul.f32 %v4229, 1.442695
    %v4257 = vpow.pop %v4256
    %v4258 = vmul.f32 %v4230, 1.442695
    %v4259 = vpow.pop %v4258
    %v4260 = vmul.f32 %v4231, 1.442695
    %v4261 = vpow.pop %v4260
    %v4262 = vmul.f32 %v4232, 1.442695
    %v4263 = vpow.pop %v4262
    %v4264 = vmul.f32 %v4233, 1.442695
    %v4265 = vpow.pop %v4264
    %v4266 = vadd.f32 %v4235, 1.0
    %v4267 = vadd.f32 %v4237, 1.0
    %v4268 = vadd.f32 %v4239, 1.0
    %v4269 = vadd.f32 %v4241, 1.0
    %v4270 = vadd.f32 %v4243, 1.0
    %v4271 = vadd.f32 %v4245, 1.0
    %v4272 = vadd.f32 %v4247, 1.0
    %v4273 = vadd.f32 %v4249, 1.0
    %v4274 = vadd.f32 %v4251, 1.0
    %v4275 = vadd.f32 %v4253, 1.0
    %v4276 = vadd.f32 %v4255, 1.0
    %v4277 = vadd.f32 %v4257, 1.0
    %v4278 = vadd.f32 %v4259, 1.0
    %v4279 = vadd.f32 %v4261, 1.0
    %v4280 = vadd.f32 %v4263, 1.0
    %v4281 = vadd.f32 %v4265, 1.0
    %v4282 = vrcp.pop %v4266
    %v4283 = vmul.f32 1.0, %v4282
    %v4284 = vrcp.pop %v4267
    %v4285 = vmul.f32 1.0, %v4284
    %v4286 = vrcp.pop %v4268
    %v4287 = vmul.f32 1.0, %v4286
    %v4288 = vrcp.pop %v4269
    %v4289 = vmul.f32 1.0, %v4288
    %v4290 = vrcp.pop %v4270
    %v4291 = vmul.f32 1.0, %v4290
    %v4292 = vrcp.pop %v4271
    %v4293 = vmul.f32 1.0, %v4292
    %v4294 = vrcp.pop %v4272
    %v4295 = vmul.f32 1.0, %v4294
    %v4296 = vrcp.pop %v4273
    %v4297 = vmul.f32 1.0, %v4296
    %v4298 = vrcp.pop %v4274
    %v4299 = vmul.f32 1.0, %v4298
    %v4300 = vrcp.pop %v4275
    %v4301 = vmul.f32 1.0, %v4300
    %v4302 = vrcp.pop %v4276
    %v4303 = vmul.f32 1.0, %v4302
    %v4304 = vrcp.pop %v4277
    %v4305 = vmul.f32 1.0, %v4304
    %v4306 = vrcp.pop %v4278
    %v4307 = vmul.f32 1.0, %v4306
    %v4308 = vrcp.pop %v4279
    %v4309 = vmul.f32 1.0, %v4308
    %v4310 = vrcp.pop %v4280
    %v4311 = vmul.f32 1.0, %v4310
    %v4312 = vrcp.pop %v4281
    %v4313 = vmul.f32 1.0, %v4312
    %v4346 = vsel %vm1899, %v1492, %v1476
    %v4347 = vsel %vm1899, %v1493, %v1477
    %v4348 = vsel %vm1899, %v1494, %v1478
    %v4349 = vsel %vm1899, %v1495, %v1479
    %v4350 = vsel %vm1899, %v1496, %v1480
    %v4351 = vsel %vm1899, %v1497, %v1481
    %v4352 = vsel %vm1899, %v1498, %v1482
    %v4353 = vsel %vm1899, %v1499, %v1483
    %v4354 = vsel %vm1899, %v1500, %v1484
    %v4355 = vsel %vm1899, %v1501, %v1485
    %v4356 = vsel %vm1899, %v1502, %v1486
    %v4357 = vsel %vm1899, %v1503, %v1487
    %v4358 = vsel %vm1899, %v1504, %v1488
    %v4359 = vsel %vm1899, %v1505, %v1489
    %v4360 = vsel %vm1899, %v1506, %v1490
    %v4361 = vsel %vm1899, %v1507, %v1491
    %v4378 = vmul.f32 %v4283, %v4346
    %v4379 = vmul.f32 %v4285, %v4347
    %v4380 = vmul.f32 %v4287, %v4348
    %v4381 = vmul.f32 %v4289, %v4349
    %v4382 = vmul.f32 %v4291, %v4350
    %v4383 = vmul.f32 %v4293, %v4351
    %v4384 = vmul.f32 %v4295, %v4352
    %v4385 = vmul.f32 %v4297, %v4353
    %v4386 = vmul.f32 %v4299, %v4354
    %v4387 = vmul.f32 %v4301, %v4355
    %v4388 = vmul.f32 %v4303, %v4356
    %v4389 = vmul.f32 %v4305, %v4357
    %v4390 = vmul.f32 %v4307, %v4358
    %v4391 = vmul.f32 %v4309, %v4359
    %v4392 = vmul.f32 %v4311, %v4360
    %v4393 = vmul.f32 %v4313, %v4361
    %v4410 = vcombine.low %v4378, %v4379
    %v4411 = vcombine.low %v4380, %v4381
    %v4413 = vunpack.c.l.s4 1983009808
    %v4414 = vunpack.c.0.s8 %v4413
    %v4415 = vlaneseq
    %v4416 = vshrl.u32 %v4415, 7
    %v4417 = vsub.s32 %v4414, %v4416
    %v4418 = vrot.slane %v4410, %v4417
    %v4420 = vunpack.c.l.s4 1983009808
    %v4421 = vunpack.c.0.s8 %v4420
    %v4422 = vlaneseq
    %v4423 = vshrl.u32 %v4422, 7
    %v4424 = vsub.s32 %v4421, %v4423
    %v4425 = vrot.slane %v4411, %v4424
    %v4426 = vcombine.low %v4418, %v4425
    %v4427 = vcombine.low %v4382, %v4383
    %v4428 = vcombine.low %v4384, %v4385
    %v4430 = vunpack.c.l.s4 1983009808
    %v4431 = vunpack.c.0.s8 %v4430
    %v4432 = vlaneseq
    %v4433 = vshrl.u32 %v4432, 7
    %v4434 = vsub.s32 %v4431, %v4433
    %v4435 = vrot.slane %v4427, %v4434
    %v4437 = vunpack.c.l.s4 1983009808
    %v4438 = vunpack.c.0.s8 %v4437
    %v4439 = vlaneseq
    %v4440 = vshrl.u32 %v4439, 7
    %v4441 = vsub.s32 %v4438, %v4440
    %v4442 = vrot.slane %v4428, %v4441
    %v4443 = vcombine.low %v4435, %v4442
    %v4444 = vcombine.low %v4386, %v4387
    %v4445 = vcombine.low %v4388, %v4389
    %v4447 = vunpack.c.l.s4 1983009808
    %v4448 = vunpack.c.0.s8 %v4447
    %v4449 = vlaneseq
    %v4450 = vshrl.u32 %v4449, 7
    %v4451 = vsub.s32 %v4448, %v4450
    %v4452 = vrot.slane %v4444, %v4451
    %v4454 = vunpack.c.l.s4 1983009808
    %v4455 = vunpack.c.0.s8 %v4454
    %v4456 = vlaneseq
    %v4457 = vshrl.u32 %v4456, 7
    %v4458 = vsub.s32 %v4455, %v4457
    %v4459 = vrot.slane %v4445, %v4458
    %v4460 = vcombine.low %v4452, %v4459
    %v4461 = vcombine.low %v4390, %v4391
    %v4462 = vcombine.low %v4392, %v4393
    %v4464 = vunpack.c.l.s4 1983009808
    %v4465 = vunpack.c.0.s8 %v4464
    %v4466 = vlaneseq
    %v4467 = vshrl.u32 %v4466, 7
    %v4468 = vsub.s32 %v4465, %v4467
    %v4469 = vrot.slane %v4461, %v4468
    %v4471 = vunpack.c.l.s4 1983009808
    %v4472 = vunpack.c.0.s8 %v4471
    %v4473 = vlaneseq
    %v4474 = vshrl.u32 %v4473, 7
    %v4475 = vsub.s32 %v4472, %v4474
    %v4476 = vrot.slane %v4462, %v4475
    %v4477 = vcombine.low %v4469, %v4476
    %4482 = vst [vmem:[%s8] sm:$0xff] %v4426
    %4483 = vst [vmem:[%s8 + $0x8] sm:$0xff] %v4443
    %4484 = vst [vmem:[%s8 + $0x10] sm:$0xff] %v4460
    %4485 = vst [vmem:[%s8 + $0x18] sm:$0xff] %v4477
    %v4518 = vcombine.low %v1508, %v1509
    %v4519 = vcombine.low %v1510, %v1511
    %v4521 = vunpack.c.l.s4 1983009808
    %v4522 = vunpack.c.0.s8 %v4521
    %v4523 = vlaneseq
    %v4524 = vshrl.u32 %v4523, 7
    %v4525 = vsub.s32 %v4522, %v4524
    %v4526 = vrot.slane %v4518, %v4525
    %v4528 = vunpack.c.l.s4 1983009808
    %v4529 = vunpack.c.0.s8 %v4528
    %v4530 = vlaneseq
    %v4531 = vshrl.u32 %v4530, 7
    %v4532 = vsub.s32 %v4529, %v4531
    %v4533 = vrot.slane %v4519, %v4532
    %v4534 = vcombine.low %v4526, %v4533
    %v4535 = vcombine.low %v1512, %v1513
    %v4536 = vcombine.low %v1514, %v1515
    %v4538 = vunpack.c.l.s4 1983009808
    %v4539 = vunpack.c.0.s8 %v4538
    %v4540 = vlaneseq
    %v4541 = vshrl.u32 %v4540, 7
    %v4542 = vsub.s32 %v4539, %v4541
    %v4543 = vrot.slane %v4535, %v4542
    %v4545 = vunpack.c.l.s4 1983009808
    %v4546 = vunpack.c.0.s8 %v4545
    %v4547 = vlaneseq
    %v4548 = vshrl.u32 %v4547, 7
    %v4549 = vsub.s32 %v4546, %v4548
    %v4550 = vrot.slane %v4536, %v4549
    %v4551 = vcombine.low %v4543, %v4550
    %v4552 = vcombine.low %v1516, %v1517
    %v4553 = vcombine.low %v1518, %v1519
    %v4555 = vunpack.c.l.s4 1983009808
    %v4556 = vunpack.c.0.s8 %v4555
    %v4557 = vlaneseq
    %v4558 = vshrl.u32 %v4557, 7
    %v4559 = vsub.s32 %v4556, %v4558
    %v4560 = vrot.slane %v4552, %v4559
    %v4562 = vunpack.c.l.s4 1983009808
    %v4563 = vunpack.c.0.s8 %v4562
    %v4564 = vlaneseq
    %v4565 = vshrl.u32 %v4564, 7
    %v4566 = vsub.s32 %v4563, %v4565
    %v4567 = vrot.slane %v4553, %v4566
    %v4568 = vcombine.low %v4560, %v4567
    %v4569 = vcombine.low %v1520, %v1521
    %v4570 = vcombine.low %v1522, %v1523
    %v4572 = vunpack.c.l.s4 1983009808
    %v4573 = vunpack.c.0.s8 %v4572
    %v4574 = vlaneseq
    %v4575 = vshrl.u32 %v4574, 7
    %v4576 = vsub.s32 %v4573, %v4575
    %v4577 = vrot.slane %v4569, %v4576
    %v4579 = vunpack.c.l.s4 1983009808
    %v4580 = vunpack.c.0.s8 %v4579
    %v4581 = vlaneseq
    %v4582 = vshrl.u32 %v4581, 7
    %v4583 = vsub.s32 %v4580, %v4582
    %v4584 = vrot.slane %v4570, %v4583
    %v4585 = vcombine.low %v4577, %v4584
    %v4586 = vcombine.low %v1524, %v1525
    %v4587 = vcombine.low %v1526, %v1527
    %v4589 = vunpack.c.l.s4 1983009808
    %v4590 = vunpack.c.0.s8 %v4589
    %v4591 = vlaneseq
    %v4592 = vshrl.u32 %v4591, 7
    %v4593 = vsub.s32 %v4590, %v4592
    %v4594 = vrot.slane %v4586, %v4593
    %v4596 = vunpack.c.l.s4 1983009808
    %v4597 = vunpack.c.0.s8 %v4596
    %v4598 = vlaneseq
    %v4599 = vshrl.u32 %v4598, 7
    %v4600 = vsub.s32 %v4597, %v4599
    %v4601 = vrot.slane %v4587, %v4600
    %v4602 = vcombine.low %v4594, %v4601
    %v4603 = vcombine.low %v1528, %v1529
    %v4604 = vcombine.low %v1530, %v1531
    %v4606 = vunpack.c.l.s4 1983009808
    %v4607 = vunpack.c.0.s8 %v4606
    %v4608 = vlaneseq
    %v4609 = vshrl.u32 %v4608, 7
    %v4610 = vsub.s32 %v4607, %v4609
    %v4611 = vrot.slane %v4603, %v4610
    %v4613 = vunpack.c.l.s4 1983009808
    %v4614 = vunpack.c.0.s8 %v4613
    %v4615 = vlaneseq
    %v4616 = vshrl.u32 %v4615, 7
    %v4617 = vsub.s32 %v4614, %v4616
    %v4618 = vrot.slane %v4604, %v4617
    %v4619 = vcombine.low %v4611, %v4618
    %v4620 = vcombine.low %v1532, %v1533
    %v4621 = vcombine.low %v1534, %v1535
    %v4623 = vunpack.c.l.s4 1983009808
    %v4624 = vunpack.c.0.s8 %v4623
    %v4625 = vlaneseq
    %v4626 = vshrl.u32 %v4625, 7
    %v4627 = vsub.s32 %v4624, %v4626
    %v4628 = vrot.slane %v4620, %v4627
    %v4630 = vunpack.c.l.s4 1983009808
    %v4631 = vunpack.c.0.s8 %v4630
    %v4632 = vlaneseq
    %v4633 = vshrl.u32 %v4632, 7
    %v4634 = vsub.s32 %v4631, %v4633
    %v4635 = vrot.slane %v4621, %v4634
    %v4636 = vcombine.low %v4628, %v4635
    %v4637 = vcombine.low %v1536, %v1537
    %v4638 = vcombine.low %v1538, %v1539
    %v4640 = vunpack.c.l.s4 1983009808
    %v4641 = vunpack.c.0.s8 %v4640
    %v4642 = vlaneseq
    %v4643 = vshrl.u32 %v4642, 7
    %v4644 = vsub.s32 %v4641, %v4643
    %v4645 = vrot.slane %v4637, %v4644
    %v4647 = vunpack.c.l.s4 1983009808
    %v4648 = vunpack.c.0.s8 %v4647
    %v4649 = vlaneseq
    %v4650 = vshrl.u32 %v4649, 7
    %v4651 = vsub.s32 %v4648, %v4650
    %v4652 = vrot.slane %v4638, %v4651
    %v4653 = vcombine.low %v4645, %v4652
    %vm4654 = vcmask 1044484
    %v4655 = vsel %vm4654, %v4534, %v4534
    %vm4656 = vcmask 1046534
    %v4657 = vsel %vm4656, %v4534, %v4655
    %v4658 = vrot.slane %v4602, 7
    %v4659 = vsel %vm1899, %v4658, %v4657
    %vm4660 = vcmask 1043459
    %v4661 = vsel %vm4660, %v4658, %v4659
    %vm4662 = vcmask 1045509
    %v4663 = vsel %vm4662, %v4658, %v4661
    %vm4664 = vcmask 1047559
    %v4665 = vsel %vm4664, %v4658, %v4663
    %v4666 = vsel %vm4654, %v4551, %v4551
    %v4667 = vsel %vm4656, %v4551, %v4666
    %v4668 = vrot.slane %v4619, 7
    %v4669 = vsel %vm1899, %v4668, %v4667
    %v4670 = vsel %vm4660, %v4668, %v4669
    %v4671 = vsel %vm4662, %v4668, %v4670
    %v4672 = vsel %vm4664, %v4668, %v4671
    %v4673 = vsel %vm4654, %v4568, %v4568
    %v4674 = vsel %vm4656, %v4568, %v4673
    %v4675 = vrot.slane %v4636, 7
    %v4676 = vsel %vm1899, %v4675, %v4674
    %v4677 = vsel %vm4660, %v4675, %v4676
    %v4678 = vsel %vm4662, %v4675, %v4677
    %v4679 = vsel %vm4664, %v4675, %v4678
    %v4680 = vsel %vm4654, %v4585, %v4585
    %v4681 = vsel %vm4656, %v4585, %v4680
    %v4682 = vrot.slane %v4653, 7
    %v4683 = vsel %vm1899, %v4682, %v4681
    %v4684 = vsel %vm4660, %v4682, %v4683
    %v4685 = vsel %vm4662, %v4682, %v4684
    %v4686 = vsel %vm4664, %v4682, %v4685
    %4691 = vst [vmem:[%s8 + $0x20] sm:$0xff] %v4665
    %4692 = vst [vmem:[%s8 + $0x28] sm:$0xff] %v4672
    %4693 = vst [vmem:[%s8 + $0x30] sm:$0xff] %v4679
    %4694 = vst [vmem:[%s8 + $0x38] sm:$0xff] %v4686
    // Predicated region
    $region45: #{face_fake_net_forward.1} parent=1 // pred_check
      _
    $region46: #{face_fake_net_forward.1} parent=1 // pred_check_branch
      %4696 = sbr.rel (0) target = $region48
    $region47: #{face_fake_net_forward.1} parent=1 // pred_region
      _
    $region48: #{face_fake_net_forward.1} parent=1 // pred_fallthru
      _
    // Predicated region
    $region49: #{face_fake_net_forward.1} parent=1 // pred_check
      _
    $region50: #{face_fake_net_forward.1} parent=1 // pred_check_branch
      %4698 = sbr.rel (0) target = $region52
    $region51: #{face_fake_net_forward.1} parent=1 // pred_region
      _
    $region52: #{face_fake_net_forward.1} parent=1 // pred_fallthru
      _
    %4699 = vsyncpa [#allocation3], 1

</llo_original>
